<compile_context>
chip_gen: v5e
topology: v5e:2x2
jax: 0.10.0
libtpu: 0.0.40
codegen_flags: <defaults>
</compile_context>

<pallas_src>
import math
import jax
import jax.numpy as jnp
from jax.experimental import pallas as pl

# ----------------------------- configuration -------------------------------
IMG = 16
PATCH = 4
IN_CHANS = 3
EMBED = 32
DEPTH = 2
HEADS = 4
MLP_RATIO = 4
NUM_CLASSES = 10
BATCH = 2

HEAD_DIM = EMBED // HEADS
N_PATCH = (IMG // PATCH) ** 2            # 16
SEQ = N_PATCH + 1                        # +1 cls token -> 17
SP = ((SEQ + 7) // 8) * 8                # sequence padded to sublane tile -> 24
CPP = IN_CHANS * PATCH * PATCH           # 48
MLP_HIDDEN = EMBED * MLP_RATIO           # 128
EPS = 1e-6
INV_SQRT2 = 0.7071067811865476
N_BLOCK_PARAMS = 12


# ----------------------------- shared math ---------------------------------
def _mm(a, b):
    # bf16 operands (MXU native on v6e/v7x), f32 accumulation.
    return jnp.dot(a.astype(jnp.bfloat16), b.astype(jnp.bfloat16),
                   preferred_element_type=jnp.float32)


def _layernorm(x, g, b):
    mu = jnp.mean(x, axis=-1, keepdims=True)
    var = jnp.mean((x - mu) ** 2, axis=-1, keepdims=True)
    return (x - mu) * jax.lax.rsqrt(var + EPS) * g + b


def _gelu(x):
    # exact (erf) GELU, matching nn.GELU default
    return 0.5 * x * (1.0 + jax.lax.erf(x * INV_SQRT2))


# ----------------------------- fused kernel --------------------------------
def _encoder_block(x, kbias, nb,
                   ln1g, ln1b, wqkv, bqkv, wproj, bproj,
                   ln2g, ln2b, wfc1, bfc1, wfc2, bfc2):
    """One transformer encoder block on flat tokens x: (nb*SP, D)."""
    scale = 1.0 / math.sqrt(HEAD_DIM)

    # --- attention branch ---
    xn = _layernorm(x, ln1g, ln1b)
    qkv = _mm(xn, wqkv) + bqkv                                # (nb*SP, 3D)

    attn_rows = []
    for b in range(nb):                                       # static; SP-aligned slabs
        rows = slice(b * SP, (b + 1) * SP)
        acc = jnp.zeros((SP, EMBED), jnp.float32)
        for h in range(HEADS):                                # static unrolled
            c0 = h * HEAD_DIM
            qh = qkv[rows, c0:c0 + HEAD_DIM]
            kh = qkv[rows, EMBED + c0:EMBED + c0 + HEAD_DIM]
            vh = qkv[rows, 2 * EMBED + c0:2 * EMBED + c0 + HEAD_DIM]

            s = _mm(qh, kh.T) * scale + kbias                 # mask padded keys
            s = s - jnp.max(s, axis=-1, keepdims=True)
            p = jnp.exp(s)
            p = p / jnp.sum(p, axis=-1, keepdims=True)
            oh = _mm(p, vh)                                   # (SP, hd)
            # fold the head output straight into the output projection
            acc = acc + _mm(oh, wproj[c0:c0 + HEAD_DIM, :])
        attn_rows.append(acc)
    attn = attn_rows[0] if nb == 1 else jnp.concatenate(attn_rows, axis=0)
    x = x + attn + bproj

    # --- MLP branch ---
    xn2 = _layernorm(x, ln2g, ln2b)
    h1 = _gelu(_mm(xn2, wfc1) + bfc1)
    x = x + _mm(h1, wfc2) + bfc2
    return x


def vit_kernel(*refs):
    xpad_ref, patch_w_ref, base_ref = refs[0], refs[1], refs[2]
    n_blk = DEPTH * N_BLOCK_PARAMS
    blk_refs = refs[3:3 + n_blk]
    norm_g_ref, norm_b_ref, head_w_ref, head_b_ref = refs[3 + n_blk:3 + n_blk + 4]
    out_ref = refs[-1]

    n_rows = xpad_ref.shape[0]          # B * SP (static)
    nb = n_rows // SP

    # additive softmax bias masking out the padded key positions (>= SEQ)
    key_idx = jax.lax.broadcasted_iota(jnp.int32, (SP, SP), 1)
    kbias = jnp.where(key_idx < SEQ, jnp.float32(0.0), jnp.float32(-1e30))

    # patch embed + cls token + positional embedding, all in one shot:
    # `base` already folds pos_embed, the patch bias and the cls token; the
    # cls/padded rows of xpad are zero so the matmul leaves them untouched.
    x = _mm(xpad_ref[...], patch_w_ref[...]) + base_ref[...]   # (B*SP, D)

    for d in range(DEPTH):
        p = tuple(r[...] for r in blk_refs[d * N_BLOCK_PARAMS:(d + 1) * N_BLOCK_PARAMS])
        x = _encoder_block(x, kbias, nb, *p)

    # head: gather only the cls rows (global_pool='token'), then final
    # LayerNorm + linear head on just those rows.
    cls_rows = [x[b * SP:b * SP + 1, :] for b in range(nb)]
    cls = cls_rows[0] if nb == 1 else jnp.concatenate(cls_rows, axis=0)   # (B, D)
    cls = _layernorm(cls, norm_g_ref[...], norm_b_ref[...])
    out_ref[...] = _mm(cls, head_w_ref[...]) + head_b_ref[...]


# ----------------------------- forward pass ---------------------------------
def vit_forward(x, params):
    B = x.shape[0]

    # Patch extraction (layout glue; equivalent to the stride-P conv unfold).
    xp = x.reshape(B, IN_CHANS, IMG // PATCH, PATCH, IMG // PATCH, PATCH)
    xp = xp.transpose(0, 2, 4, 1, 3, 5).reshape(B, N_PATCH, CPP)
    # rows: [cls(=0) | patches | pad(=0)] per batch element, then flatten.
    xpad = jnp.pad(xp, ((0, 0), (1, SP - SEQ), (0, 0))).reshape(B * SP, CPP)

    # per-row additive base: cls_token + pos[0] for the cls row,
    # patch_bias + pos[1:] for patch rows, zeros for padded rows.
    cls_row = params["cls_token"][0] + params["pos_embed"][0, 0:1]        # (1, D)
    patch_rows = params["pos_embed"][0, 1:] + params["patch_b"]           # (N_PATCH, D)
    base = jnp.concatenate([cls_row, patch_rows], axis=0)                 # (SEQ, D)
    base = jnp.pad(base, ((0, SP - SEQ), (0, 0)))                         # (SP, D)
    base = jnp.tile(base[None], (B, 1, 1)).reshape(B * SP, EMBED)

    flat_blk = [p for blk in params["blocks"] for p in blk]

    return pl.pallas_call(
        vit_kernel,
        out_shape=jax.ShapeDtypeStruct((B, NUM_CLASSES), jnp.float32),
    )(xpad, params["patch_w"], base, *flat_blk,
      params["norm_g"], params["norm_b"], params["head_w"], params["head_b"])


vit_forward_jit = jax.jit(vit_forward)


# ----------------------------- pure-JAX reference ---------------------------
def vit_reference(x, params):
    B = x.shape[0]
    xp = x.reshape(B, IN_CHANS, IMG // PATCH, PATCH, IMG // PATCH, PATCH)
    xp = xp.transpose(0, 2, 4, 1, 3, 5).reshape(B, N_PATCH, -1)
    tok = _mm(xp, params["patch_w"]) + params["patch_b"]
    cls = jnp.broadcast_to(params["cls_token"], (B, 1, EMBED))
    tok = jnp.concatenate([cls, tok], axis=1) + params["pos_embed"]
    scale = 1.0 / math.sqrt(HEAD_DIM)

    for blk in params["blocks"]:
        (ln1g, ln1b, wqkv, bqkv, wproj, bproj,
         ln2g, ln2b, wfc1, bfc1, wfc2, bfc2) = blk
        xn = _layernorm(tok, ln1g, ln1b)
        qkv = _mm(xn, wqkv) + bqkv
        q, k, v = jnp.split(qkv, 3, axis=-1)
        q = q.reshape(B, SEQ, HEADS, HEAD_DIM).transpose(0, 2, 1, 3)
        k = k.reshape(B, SEQ, HEADS, HEAD_DIM).transpose(0, 2, 1, 3)
        v = v.reshape(B, SEQ, HEADS, HEAD_DIM).transpose(0, 2, 1, 3)
        s = jnp.einsum("bhqd,bhkd->bhqk", q.astype(jnp.bfloat16),
                       k.astype(jnp.bfloat16),
                       preferred_element_type=jnp.float32) * scale
        s = s - jnp.max(s, axis=-1, keepdims=True)
        p = jnp.exp(s)
        p = p / jnp.sum(p, axis=-1, keepdims=True)
        o = jnp.einsum("bhqk,bhkd->bhqd", p.astype(jnp.bfloat16),
                       v.astype(jnp.bfloat16),
                       preferred_element_type=jnp.float32)
        o = o.transpose(0, 2, 1, 3).reshape(B, SEQ, EMBED)
        tok = tok + _mm(o, wproj) + bproj
        xn2 = _layernorm(tok, ln2g, ln2b)
        h = _gelu(_mm(xn2, wfc1) + bfc1)
        tok = tok + _mm(h, wfc2) + bfc2

    cls_out = _layernorm(tok, params["norm_g"], params["norm_b"])[:, 0]
    return _mm(cls_out, params["head_w"]) + params["head_b"]


# ----------------------------- parameter init -------------------------------
def init_params(key):
    def nrm(k, shape, std=0.02):
        return (std * jax.random.normal(k, shape)).astype(jnp.float32)

    keys = iter(jax.random.split(key, 8 + DEPTH * 8))
    params = {}

    # patch embed: PyTorch conv weight [D, C, P, P] -> flattened [C*P*P, D]
    conv_w = nrm(next(keys), (EMBED, IN_CHANS, PATCH, PATCH))
    params["patch_w"] = conv_w.reshape(EMBED, -1).T
    params["patch_b"] = jnp.zeros((1, EMBED), jnp.float32)

    params["cls_token"] = jnp.zeros((1, 1, EMBED), jnp.float32)      # zeros, as in __init__
    params["pos_embed"] = nrm(next(keys), (1, SEQ, EMBED))           # randn * 0.02

    blocks = []
    for _ in range(DEPTH):
        blk = [
            jnp.ones((1, EMBED), jnp.float32),                        # ln1 gamma
            jnp.zeros((1, EMBED), jnp.float32),                       # ln1 beta
            nrm(next(keys), (EMBED, 3 * EMBED)),                      # Wqkv  [in, out]
            jnp.zeros((1, 3 * EMBED), jnp.float32),                   # bqkv
            nrm(next(keys), (EMBED, EMBED)),                          # Wproj
            jnp.zeros((1, EMBED), jnp.float32),                       # bproj
            jnp.ones((1, EMBED), jnp.float32),                        # ln2 gamma
            jnp.zeros((1, EMBED), jnp.float32),                       # ln2 beta
            nrm(next(keys), (EMBED, MLP_HIDDEN)),                     # Wfc1
            jnp.zeros((1, MLP_HIDDEN), jnp.float32),                  # bfc1
            nrm(next(keys), (MLP_HIDDEN, EMBED)),                     # Wfc2
            jnp.zeros((1, EMBED), jnp.float32),                       # bfc2
        ]
        blocks.append(blk)
    params["blocks"] = blocks

    params["norm_g"] = jnp.ones((1, EMBED), jnp.float32)
    params["norm_b"] = jnp.zeros((1, EMBED), jnp.float32)
    params["head_w"] = nrm(next(keys), (EMBED, NUM_CLASSES))
    params["head_b"] = jnp.zeros((1, NUM_CLASSES), jnp.float32)
    return params


# TODO(synk): dropout / drop-path / layer-scale are identity at inference
# defaults (rate 0.0 / init_values=None) and are intentionally omitted.

if __name__ == "__main__":
    key = jax.random.PRNGKey(0)
    k_param, k_x = jax.random.split(key)
    params = init_params(k_param)
    x = jax.random.normal(k_x, (BATCH, IN_CHANS, IMG, IMG), dtype=jnp.float32)

    out = jax.block_until_ready(vit_forward_jit(x, params))
    ref = jax.block_until_ready(vit_reference(x, params))

    assert out.shape == (BATCH, NUM_CLASSES), out.shape
    max_err = float(jnp.max(jnp.abs(out - ref)))
    assert jnp.allclose(out, ref, rtol=2e-3, atol=2e-3), (
        f"mismatch vs. reference: max abs err = {max_err}"
    )
    print("KERNEL_OK")
</pallas_src>

<mosaic_0001>
module attributes {stable_mosaic.version = 11 : i64} {
  func.func @vit_kernel(%arg0: memref<48x48xf32, #tpu.memory_space<vmem>>, %arg1: memref<48x32xf32, #tpu.memory_space<vmem>>, %arg2: memref<48x32xf32, #tpu.memory_space<vmem>>, %arg3: memref<1x32xf32, #tpu.memory_space<vmem>>, %arg4: memref<1x32xf32, #tpu.memory_space<vmem>>, %arg5: memref<32x96xf32, #tpu.memory_space<vmem>>, %arg6: memref<1x96xf32, #tpu.memory_space<vmem>>, %arg7: memref<32x32xf32, #tpu.memory_space<vmem>>, %arg8: memref<1x32xf32, #tpu.memory_space<vmem>>, %arg9: memref<1x32xf32, #tpu.memory_space<vmem>>, %arg10: memref<1x32xf32, #tpu.memory_space<vmem>>, %arg11: memref<32x128xf32, #tpu.memory_space<vmem>>, %arg12: memref<1x128xf32, #tpu.memory_space<vmem>>, %arg13: memref<128x32xf32, #tpu.memory_space<vmem>>, %arg14: memref<1x32xf32, #tpu.memory_space<vmem>>, %arg15: memref<1x32xf32, #tpu.memory_space<vmem>>, %arg16: memref<1x32xf32, #tpu.memory_space<vmem>>, %arg17: memref<32x96xf32, #tpu.memory_space<vmem>>, %arg18: memref<1x96xf32, #tpu.memory_space<vmem>>, %arg19: memref<32x32xf32, #tpu.memory_space<vmem>>, %arg20: memref<1x32xf32, #tpu.memory_space<vmem>>, %arg21: memref<1x32xf32, #tpu.memory_space<vmem>>, %arg22: memref<1x32xf32, #tpu.memory_space<vmem>>, %arg23: memref<32x128xf32, #tpu.memory_space<vmem>>, %arg24: memref<1x128xf32, #tpu.memory_space<vmem>>, %arg25: memref<128x32xf32, #tpu.memory_space<vmem>>, %arg26: memref<1x32xf32, #tpu.memory_space<vmem>>, %arg27: memref<1x32xf32, #tpu.memory_space<vmem>>, %arg28: memref<1x32xf32, #tpu.memory_space<vmem>>, %arg29: memref<32x10xf32, #tpu.memory_space<vmem>>, %arg30: memref<1x10xf32, #tpu.memory_space<vmem>>, %arg31: memref<2x10xf32, #tpu.memory_space<vmem>>) attributes {dimension_semantics = [], scalar_prefetch = 0 : i64, scratch_operands = 0 : i64, tpu.core_type = #tpu.core_type<tc>} {
    %0 = tpu.iota {dimensions = array<i32: 1>} : vector<24x24xi32>
    %c17_i32 = arith.constant 17 : i32
    %1 = vector.broadcast %c17_i32 : i32 to vector<24x24xi32>
    %2 = arith.cmpi slt, %0, %1 : vector<24x24xi32>
    %cst = arith.constant 0.000000e+00 : f32
    %cst_0 = arith.constant -1.000000e+30 : f32
    %3 = vector.broadcast %cst : f32 to vector<24x24xf32>
    %4 = vector.broadcast %cst_0 : f32 to vector<24x24xf32>
    %5 = arith.select %2, %3, %4 : vector<24x24xi1>, vector<24x24xf32>
    %c0 = arith.constant 0 : index
    %c0_1 = arith.constant 0 : index
    %6 = vector.load %arg0[%c0, %c0_1] : memref<48x48xf32, #tpu.memory_space<vmem>>, vector<48x48xf32>
    %c0_2 = arith.constant 0 : index
    %c0_3 = arith.constant 0 : index
    %7 = vector.load %arg1[%c0_2, %c0_3] : memref<48x32xf32, #tpu.memory_space<vmem>>, vector<48x32xf32>
    %8 = arith.truncf %6 : vector<48x48xf32> to vector<48x48xbf16>
    %9 = arith.truncf %7 : vector<48x32xf32> to vector<48x32xbf16>
    %cst_4 = arith.constant dense<0.000000e+00> : vector<48x32xf32>
    %10 = tpu.matmul %8, %9, %cst_4 {dimension_numbers = #tpu.dot_dimension_numbers<[1], [0], [0], [1], [0, 0, 1, 1], [], []>} : vector<48x48xbf16>, vector<48x32xbf16>, vector<48x32xf32> -> vector<48x32xf32>
    %c0_5 = arith.constant 0 : index
    %c0_6 = arith.constant 0 : index
    %11 = vector.load %arg2[%c0_5, %c0_6] : memref<48x32xf32, #tpu.memory_space<vmem>>, vector<48x32xf32>
    %12 = arith.addf %10, %11 : vector<48x32xf32>
    %c0_7 = arith.constant 0 : index
    %c0_8 = arith.constant 0 : index
    %13 = vector.load %arg3[%c0_7, %c0_8] : memref<1x32xf32, #tpu.memory_space<vmem>>, vector<1x32xf32>
    %c0_9 = arith.constant 0 : index
    %c0_10 = arith.constant 0 : index
    %14 = vector.load %arg4[%c0_9, %c0_10] : memref<1x32xf32, #tpu.memory_space<vmem>>, vector<1x32xf32>
    %c0_11 = arith.constant 0 : index
    %c0_12 = arith.constant 0 : index
    %15 = vector.load %arg5[%c0_11, %c0_12] : memref<32x96xf32, #tpu.memory_space<vmem>>, vector<32x96xf32>
    %c0_13 = arith.constant 0 : index
    %c0_14 = arith.constant 0 : index
    %16 = vector.load %arg6[%c0_13, %c0_14] : memref<1x96xf32, #tpu.memory_space<vmem>>, vector<1x96xf32>
    %c0_15 = arith.constant 0 : index
    %c0_16 = arith.constant 0 : index
    %17 = vector.load %arg7[%c0_15, %c0_16] : memref<32x32xf32, #tpu.memory_space<vmem>>, vector<32x32xf32>
    %c0_17 = arith.constant 0 : index
    %c0_18 = arith.constant 0 : index
    %18 = vector.load %arg8[%c0_17, %c0_18] : memref<1x32xf32, #tpu.memory_space<vmem>>, vector<1x32xf32>
    %c0_19 = arith.constant 0 : index
    %c0_20 = arith.constant 0 : index
    %19 = vector.load %arg9[%c0_19, %c0_20] : memref<1x32xf32, #tpu.memory_space<vmem>>, vector<1x32xf32>
    %c0_21 = arith.constant 0 : index
    %c0_22 = arith.constant 0 : index
    %20 = vector.load %arg10[%c0_21, %c0_22] : memref<1x32xf32, #tpu.memory_space<vmem>>, vector<1x32xf32>
    %c0_23 = arith.constant 0 : index
    %c0_24 = arith.constant 0 : index
    %21 = vector.load %arg11[%c0_23, %c0_24] : memref<32x128xf32, #tpu.memory_space<vmem>>, vector<32x128xf32>
    %c0_25 = arith.constant 0 : index
    %c0_26 = arith.constant 0 : index
    %22 = vector.load %arg12[%c0_25, %c0_26] : memref<1x128xf32, #tpu.memory_space<vmem>>, vector<1x128xf32>
    %c0_27 = arith.constant 0 : index
    %c0_28 = arith.constant 0 : index
    %23 = vector.load %arg13[%c0_27, %c0_28] : memref<128x32xf32, #tpu.memory_space<vmem>>, vector<128x32xf32>
    %c0_29 = arith.constant 0 : index
    %c0_30 = arith.constant 0 : index
    %24 = vector.load %arg14[%c0_29, %c0_30] : memref<1x32xf32, #tpu.memory_space<vmem>>, vector<1x32xf32>
    %cst_31 = arith.constant dense<0.000000e+00> : vector<48xf32>
    %25 = vector.multi_reduction <add>, %12, %cst_31 [1] : vector<48x32xf32> to vector<48xf32>
    %26 = vector.shape_cast %25 : vector<48xf32> to vector<48x1xf32>
    %cst_32 = arith.constant 3.200000e+01 : f32
    %27 = vector.broadcast %cst_32 : f32 to vector<48x1xf32>
    %28 = arith.divf %26, %27 : vector<48x1xf32>
    %29 = vector.broadcast %28 : vector<48x1xf32> to vector<48x32xf32>
    %30 = arith.subf %12, %29 : vector<48x32xf32>
    %31 = arith.mulf %30, %30 : vector<48x32xf32>
    %cst_33 = arith.constant dense<0.000000e+00> : vector<48xf32>
    %32 = vector.multi_reduction <add>, %31, %cst_33 [1] : vector<48x32xf32> to vector<48xf32>
    %33 = vector.shape_cast %32 : vector<48xf32> to vector<48x1xf32>
    %cst_34 = arith.constant 3.200000e+01 : f32
    %34 = vector.broadcast %cst_34 : f32 to vector<48x1xf32>
    %35 = arith.divf %33, %34 : vector<48x1xf32>
    %36 = vector.broadcast %28 : vector<48x1xf32> to vector<48x32xf32>
    %37 = arith.subf %12, %36 : vector<48x32xf32>
    %cst_35 = arith.constant 9.99999997E-7 : f32
    %38 = vector.broadcast %cst_35 : f32 to vector<48x1xf32>
    %39 = arith.addf %35, %38 : vector<48x1xf32>
    %40 = math.rsqrt %39 : vector<48x1xf32>
    %41 = vector.broadcast %40 : vector<48x1xf32> to vector<48x32xf32>
    %42 = arith.mulf %37, %41 : vector<48x32xf32>
    %43 = vector.broadcast %13 : vector<1x32xf32> to vector<48x32xf32>
    %44 = arith.mulf %42, %43 : vector<48x32xf32>
    %45 = vector.broadcast %14 : vector<1x32xf32> to vector<48x32xf32>
    %46 = arith.addf %44, %45 : vector<48x32xf32>
    %47 = arith.truncf %46 : vector<48x32xf32> to vector<48x32xbf16>
    %48 = arith.truncf %15 : vector<32x96xf32> to vector<32x96xbf16>
    %cst_36 = arith.constant dense<0.000000e+00> : vector<48x96xf32>
    %49 = tpu.matmul %47, %48, %cst_36 {dimension_numbers = #tpu.dot_dimension_numbers<[1], [0], [0], [1], [0, 0, 1, 1], [], []>} : vector<48x32xbf16>, vector<32x96xbf16>, vector<48x96xf32> -> vector<48x96xf32>
    %50 = vector.broadcast %16 : vector<1x96xf32> to vector<48x96xf32>
    %51 = arith.addf %49, %50 : vector<48x96xf32>
    %cst_37 = arith.constant 0.000000e+00 : f32
    %52 = vector.broadcast %cst_37 : f32 to vector<24x32xf32>
    %53 = vector.extract_strided_slice %51 {offsets = [0, 0], sizes = [24, 8], strides = [1, 1]} : vector<48x96xf32> to vector<24x8xf32>
    %54 = vector.extract_strided_slice %51 {offsets = [0, 32], sizes = [24, 8], strides = [1, 1]} : vector<48x96xf32> to vector<24x8xf32>
    %55 = vector.extract_strided_slice %51 {offsets = [0, 64], sizes = [24, 8], strides = [1, 1]} : vector<48x96xf32> to vector<24x8xf32>
    %56 = tpu.transpose %54, [1, 0] : vector<24x8xf32> -> vector<8x24xf32>
    %57 = arith.truncf %53 : vector<24x8xf32> to vector<24x8xbf16>
    %58 = arith.truncf %56 : vector<8x24xf32> to vector<8x24xbf16>
    %cst_38 = arith.constant dense<0.000000e+00> : vector<24x24xf32>
    %59 = tpu.matmul %57, %58, %cst_38 {dimension_numbers = #tpu.dot_dimension_numbers<[1], [0], [0], [1], [0, 0, 1, 1], [], []>} : vector<24x8xbf16>, vector<8x24xbf16>, vector<24x24xf32> -> vector<24x24xf32>
    %cst_39 = arith.constant 0.353553385 : f32
    %60 = vector.broadcast %cst_39 : f32 to vector<24x24xf32>
    %61 = arith.mulf %59, %60 : vector<24x24xf32>
    %62 = arith.addf %61, %5 : vector<24x24xf32>
    %cst_40 = arith.constant dense<0xFF800000> : vector<24xf32>
    %63 = vector.multi_reduction <maximumf>, %62, %cst_40 [1] : vector<24x24xf32> to vector<24xf32>
    %64 = vector.shape_cast %63 : vector<24xf32> to vector<24x1xf32>
    %65 = vector.broadcast %64 : vector<24x1xf32> to vector<24x24xf32>
    %66 = arith.subf %62, %65 : vector<24x24xf32>
    %67 = math.exp %66 : vector<24x24xf32>
    %cst_41 = arith.constant dense<0.000000e+00> : vector<24xf32>
    %68 = vector.multi_reduction <add>, %67, %cst_41 [1] : vector<24x24xf32> to vector<24xf32>
    %69 = vector.shape_cast %68 : vector<24xf32> to vector<24x1xf32>
    %70 = vector.broadcast %69 : vector<24x1xf32> to vector<24x24xf32>
    %71 = arith.divf %67, %70 : vector<24x24xf32>
    %72 = arith.truncf %71 : vector<24x24xf32> to vector<24x24xbf16>
    %73 = arith.truncf %55 : vector<24x8xf32> to vector<24x8xbf16>
    %cst_42 = arith.constant dense<0.000000e+00> : vector<24x8xf32>
    %74 = tpu.matmul %72, %73, %cst_42 {dimension_numbers = #tpu.dot_dimension_numbers<[1], [0], [0], [1], [0, 0, 1, 1], [], []>} : vector<24x24xbf16>, vector<24x8xbf16>, vector<24x8xf32> -> vector<24x8xf32>
    %75 = vector.extract_strided_slice %17 {offsets = [0, 0], sizes = [8, 32], strides = [1, 1]} : vector<32x32xf32> to vector<8x32xf32>
    %76 = arith.truncf %74 : vector<24x8xf32> to vector<24x8xbf16>
    %77 = arith.truncf %75 : vector<8x32xf32> to vector<8x32xbf16>
    %cst_43 = arith.constant dense<0.000000e+00> : vector<24x32xf32>
    %78 = tpu.matmul %76, %77, %cst_43 {dimension_numbers = #tpu.dot_dimension_numbers<[1], [0], [0], [1], [0, 0, 1, 1], [], []>} : vector<24x8xbf16>, vector<8x32xbf16>, vector<24x32xf32> -> vector<24x32xf32>
    %79 = arith.addf %52, %78 : vector<24x32xf32>
    %80 = vector.extract_strided_slice %51 {offsets = [0, 8], sizes = [24, 8], strides = [1, 1]} : vector<48x96xf32> to vector<24x8xf32>
    %81 = vector.extract_strided_slice %51 {offsets = [0, 40], sizes = [24, 8], strides = [1, 1]} : vector<48x96xf32> to vector<24x8xf32>
    %82 = vector.extract_strided_slice %51 {offsets = [0, 72], sizes = [24, 8], strides = [1, 1]} : vector<48x96xf32> to vector<24x8xf32>
    %83 = tpu.transpose %81, [1, 0] : vector<24x8xf32> -> vector<8x24xf32>
    %84 = arith.truncf %80 : vector<24x8xf32> to vector<24x8xbf16>
    %85 = arith.truncf %83 : vector<8x24xf32> to vector<8x24xbf16>
    %cst_44 = arith.constant dense<0.000000e+00> : vector<24x24xf32>
    %86 = tpu.matmul %84, %85, %cst_44 {dimension_numbers = #tpu.dot_dimension_numbers<[1], [0], [0], [1], [0, 0, 1, 1], [], []>} : vector<24x8xbf16>, vector<8x24xbf16>, vector<24x24xf32> -> vector<24x24xf32>
    %cst_45 = arith.constant 0.353553385 : f32
    %87 = vector.broadcast %cst_45 : f32 to vector<24x24xf32>
    %88 = arith.mulf %86, %87 : vector<24x24xf32>
    %89 = arith.addf %88, %5 : vector<24x24xf32>
    %cst_46 = arith.constant dense<0xFF800000> : vector<24xf32>
    %90 = vector.multi_reduction <maximumf>, %89, %cst_46 [1] : vector<24x24xf32> to vector<24xf32>
    %91 = vector.shape_cast %90 : vector<24xf32> to vector<24x1xf32>
    %92 = vector.broadcast %91 : vector<24x1xf32> to vector<24x24xf32>
    %93 = arith.subf %89, %92 : vector<24x24xf32>
    %94 = math.exp %93 : vector<24x24xf32>
    %cst_47 = arith.constant dense<0.000000e+00> : vector<24xf32>
    %95 = vector.multi_reduction <add>, %94, %cst_47 [1] : vector<24x24xf32> to vector<24xf32>
    %96 = vector.shape_cast %95 : vector<24xf32> to vector<24x1xf32>
    %97 = vector.broadcast %96 : vector<24x1xf32> to vector<24x24xf32>
    %98 = arith.divf %94, %97 : vector<24x24xf32>
    %99 = arith.truncf %98 : vector<24x24xf32> to vector<24x24xbf16>
    %100 = arith.truncf %82 : vector<24x8xf32> to vector<24x8xbf16>
    %cst_48 = arith.constant dense<0.000000e+00> : vector<24x8xf32>
    %101 = tpu.matmul %99, %100, %cst_48 {dimension_numbers = #tpu.dot_dimension_numbers<[1], [0], [0], [1], [0, 0, 1, 1], [], []>} : vector<24x24xbf16>, vector<24x8xbf16>, vector<24x8xf32> -> vector<24x8xf32>
    %102 = vector.extract_strided_slice %17 {offsets = [8, 0], sizes = [8, 32], strides = [1, 1]} : vector<32x32xf32> to vector<8x32xf32>
    %103 = arith.truncf %101 : vector<24x8xf32> to vector<24x8xbf16>
    %104 = arith.truncf %102 : vector<8x32xf32> to vector<8x32xbf16>
    %cst_49 = arith.constant dense<0.000000e+00> : vector<24x32xf32>
    %105 = tpu.matmul %103, %104, %cst_49 {dimension_numbers = #tpu.dot_dimension_numbers<[1], [0], [0], [1], [0, 0, 1, 1], [], []>} : vector<24x8xbf16>, vector<8x32xbf16>, vector<24x32xf32> -> vector<24x32xf32>
    %106 = arith.addf %79, %105 : vector<24x32xf32>
    %107 = vector.extract_strided_slice %51 {offsets = [0, 16], sizes = [24, 8], strides = [1, 1]} : vector<48x96xf32> to vector<24x8xf32>
    %108 = vector.extract_strided_slice %51 {offsets = [0, 48], sizes = [24, 8], strides = [1, 1]} : vector<48x96xf32> to vector<24x8xf32>
    %109 = vector.extract_strided_slice %51 {offsets = [0, 80], sizes = [24, 8], strides = [1, 1]} : vector<48x96xf32> to vector<24x8xf32>
    %110 = tpu.transpose %108, [1, 0] : vector<24x8xf32> -> vector<8x24xf32>
    %111 = arith.truncf %107 : vector<24x8xf32> to vector<24x8xbf16>
    %112 = arith.truncf %110 : vector<8x24xf32> to vector<8x24xbf16>
    %cst_50 = arith.constant dense<0.000000e+00> : vector<24x24xf32>
    %113 = tpu.matmul %111, %112, %cst_50 {dimension_numbers = #tpu.dot_dimension_numbers<[1], [0], [0], [1], [0, 0, 1, 1], [], []>} : vector<24x8xbf16>, vector<8x24xbf16>, vector<24x24xf32> -> vector<24x24xf32>
    %cst_51 = arith.constant 0.353553385 : f32
    %114 = vector.broadcast %cst_51 : f32 to vector<24x24xf32>
    %115 = arith.mulf %113, %114 : vector<24x24xf32>
    %116 = arith.addf %115, %5 : vector<24x24xf32>
    %cst_52 = arith.constant dense<0xFF800000> : vector<24xf32>
    %117 = vector.multi_reduction <maximumf>, %116, %cst_52 [1] : vector<24x24xf32> to vector<24xf32>
    %118 = vector.shape_cast %117 : vector<24xf32> to vector<24x1xf32>
    %119 = vector.broadcast %118 : vector<24x1xf32> to vector<24x24xf32>
    %120 = arith.subf %116, %119 : vector<24x24xf32>
    %121 = math.exp %120 : vector<24x24xf32>
    %cst_53 = arith.constant dense<0.000000e+00> : vector<24xf32>
    %122 = vector.multi_reduction <add>, %121, %cst_53 [1] : vector<24x24xf32> to vector<24xf32>
    %123 = vector.shape_cast %122 : vector<24xf32> to vector<24x1xf32>
    %124 = vector.broadcast %123 : vector<24x1xf32> to vector<24x24xf32>
    %125 = arith.divf %121, %124 : vector<24x24xf32>
    %126 = arith.truncf %125 : vector<24x24xf32> to vector<24x24xbf16>
    %127 = arith.truncf %109 : vector<24x8xf32> to vector<24x8xbf16>
    %cst_54 = arith.constant dense<0.000000e+00> : vector<24x8xf32>
    %128 = tpu.matmul %126, %127, %cst_54 {dimension_numbers = #tpu.dot_dimension_numbers<[1], [0], [0], [1], [0, 0, 1, 1], [], []>} : vector<24x24xbf16>, vector<24x8xbf16>, vector<24x8xf32> -> vector<24x8xf32>
    %129 = vector.extract_strided_slice %17 {offsets = [16, 0], sizes = [8, 32], strides = [1, 1]} : vector<32x32xf32> to vector<8x32xf32>
    %130 = arith.truncf %128 : vector<24x8xf32> to vector<24x8xbf16>
    %131 = arith.truncf %129 : vector<8x32xf32> to vector<8x32xbf16>
    %cst_55 = arith.constant dense<0.000000e+00> : vector<24x32xf32>
    %132 = tpu.matmul %130, %131, %cst_55 {dimension_numbers = #tpu.dot_dimension_numbers<[1], [0], [0], [1], [0, 0, 1, 1], [], []>} : vector<24x8xbf16>, vector<8x32xbf16>, vector<24x32xf32> -> vector<24x32xf32>
    %133 = arith.addf %106, %132 : vector<24x32xf32>
    %134 = vector.extract_strided_slice %51 {offsets = [0, 24], sizes = [24, 8], strides = [1, 1]} : vector<48x96xf32> to vector<24x8xf32>
    %135 = vector.extract_strided_slice %51 {offsets = [0, 56], sizes = [24, 8], strides = [1, 1]} : vector<48x96xf32> to vector<24x8xf32>
    %136 = vector.extract_strided_slice %51 {offsets = [0, 88], sizes = [24, 8], strides = [1, 1]} : vector<48x96xf32> to vector<24x8xf32>
    %137 = tpu.transpose %135, [1, 0] : vector<24x8xf32> -> vector<8x24xf32>
    %138 = arith.truncf %134 : vector<24x8xf32> to vector<24x8xbf16>
    %139 = arith.truncf %137 : vector<8x24xf32> to vector<8x24xbf16>
    %cst_56 = arith.constant dense<0.000000e+00> : vector<24x24xf32>
    %140 = tpu.matmul %138, %139, %cst_56 {dimension_numbers = #tpu.dot_dimension_numbers<[1], [0], [0], [1], [0, 0, 1, 1], [], []>} : vector<24x8xbf16>, vector<8x24xbf16>, vector<24x24xf32> -> vector<24x24xf32>
    %cst_57 = arith.constant 0.353553385 : f32
    %141 = vector.broadcast %cst_57 : f32 to vector<24x24xf32>
    %142 = arith.mulf %140, %141 : vector<24x24xf32>
    %143 = arith.addf %142, %5 : vector<24x24xf32>
    %cst_58 = arith.constant dense<0xFF800000> : vector<24xf32>
    %144 = vector.multi_reduction <maximumf>, %143, %cst_58 [1] : vector<24x24xf32> to vector<24xf32>
    %145 = vector.shape_cast %144 : vector<24xf32> to vector<24x1xf32>
    %146 = vector.broadcast %145 : vector<24x1xf32> to vector<24x24xf32>
    %147 = arith.subf %143, %146 : vector<24x24xf32>
    %148 = math.exp %147 : vector<24x24xf32>
    %cst_59 = arith.constant dense<0.000000e+00> : vector<24xf32>
    %149 = vector.multi_reduction <add>, %148, %cst_59 [1] : vector<24x24xf32> to vector<24xf32>
    %150 = vector.shape_cast %149 : vector<24xf32> to vector<24x1xf32>
    %151 = vector.broadcast %150 : vector<24x1xf32> to vector<24x24xf32>
    %152 = arith.divf %148, %151 : vector<24x24xf32>
    %153 = arith.truncf %152 : vector<24x24xf32> to vector<24x24xbf16>
    %154 = arith.truncf %136 : vector<24x8xf32> to vector<24x8xbf16>
    %cst_60 = arith.constant dense<0.000000e+00> : vector<24x8xf32>
    %155 = tpu.matmul %153, %154, %cst_60 {dimension_numbers = #tpu.dot_dimension_numbers<[1], [0], [0], [1], [0, 0, 1, 1], [], []>} : vector<24x24xbf16>, vector<24x8xbf16>, vector<24x8xf32> -> vector<24x8xf32>
    %156 = vector.extract_strided_slice %17 {offsets = [24, 0], sizes = [8, 32], strides = [1, 1]} : vector<32x32xf32> to vector<8x32xf32>
    %157 = arith.truncf %155 : vector<24x8xf32> to vector<24x8xbf16>
    %158 = arith.truncf %156 : vector<8x32xf32> to vector<8x32xbf16>
    %cst_61 = arith.constant dense<0.000000e+00> : vector<24x32xf32>
    %159 = tpu.matmul %157, %158, %cst_61 {dimension_numbers = #tpu.dot_dimension_numbers<[1], [0], [0], [1], [0, 0, 1, 1], [], []>} : vector<24x8xbf16>, vector<8x32xbf16>, vector<24x32xf32> -> vector<24x32xf32>
    %160 = arith.addf %133, %159 : vector<24x32xf32>
    %cst_62 = arith.constant 0.000000e+00 : f32
    %161 = vector.broadcast %cst_62 : f32 to vector<24x32xf32>
    %162 = vector.extract_strided_slice %51 {offsets = [24, 0], sizes = [24, 8], strides = [1, 1]} : vector<48x96xf32> to vector<24x8xf32>
    %163 = vector.extract_strided_slice %51 {offsets = [24, 32], sizes = [24, 8], strides = [1, 1]} : vector<48x96xf32> to vector<24x8xf32>
    %164 = vector.extract_strided_slice %51 {offsets = [24, 64], sizes = [24, 8], strides = [1, 1]} : vector<48x96xf32> to vector<24x8xf32>
    %165 = tpu.transpose %163, [1, 0] : vector<24x8xf32> -> vector<8x24xf32>
    %166 = arith.truncf %162 : vector<24x8xf32> to vector<24x8xbf16>
    %167 = arith.truncf %165 : vector<8x24xf32> to vector<8x24xbf16>
    %cst_63 = arith.constant dense<0.000000e+00> : vector<24x24xf32>
    %168 = tpu.matmul %166, %167, %cst_63 {dimension_numbers = #tpu.dot_dimension_numbers<[1], [0], [0], [1], [0, 0, 1, 1], [], []>} : vector<24x8xbf16>, vector<8x24xbf16>, vector<24x24xf32> -> vector<24x24xf32>
    %cst_64 = arith.constant 0.353553385 : f32
    %169 = vector.broadcast %cst_64 : f32 to vector<24x24xf32>
    %170 = arith.mulf %168, %169 : vector<24x24xf32>
    %171 = arith.addf %170, %5 : vector<24x24xf32>
    %cst_65 = arith.constant dense<0xFF800000> : vector<24xf32>
    %172 = vector.multi_reduction <maximumf>, %171, %cst_65 [1] : vector<24x24xf32> to vector<24xf32>
    %173 = vector.shape_cast %172 : vector<24xf32> to vector<24x1xf32>
    %174 = vector.broadcast %173 : vector<24x1xf32> to vector<24x24xf32>
    %175 = arith.subf %171, %174 : vector<24x24xf32>
    %176 = math.exp %175 : vector<24x24xf32>
    %cst_66 = arith.constant dense<0.000000e+00> : vector<24xf32>
    %177 = vector.multi_reduction <add>, %176, %cst_66 [1] : vector<24x24xf32> to vector<24xf32>
    %178 = vector.shape_cast %177 : vector<24xf32> to vector<24x1xf32>
    %179 = vector.broadcast %178 : vector<24x1xf32> to vector<24x24xf32>
    %180 = arith.divf %176, %179 : vector<24x24xf32>
    %181 = arith.truncf %180 : vector<24x24xf32> to vector<24x24xbf16>
    %182 = arith.truncf %164 : vector<24x8xf32> to vector<24x8xbf16>
    %cst_67 = arith.constant dense<0.000000e+00> : vector<24x8xf32>
    %183 = tpu.matmul %181, %182, %cst_67 {dimension_numbers = #tpu.dot_dimension_numbers<[1], [0], [0], [1], [0, 0, 1, 1], [], []>} : vector<24x24xbf16>, vector<24x8xbf16>, vector<24x8xf32> -> vector<24x8xf32>
    %184 = vector.extract_strided_slice %17 {offsets = [0, 0], sizes = [8, 32], strides = [1, 1]} : vector<32x32xf32> to vector<8x32xf32>
    %185 = arith.truncf %183 : vector<24x8xf32> to vector<24x8xbf16>
    %186 = arith.truncf %184 : vector<8x32xf32> to vector<8x32xbf16>
    %cst_68 = arith.constant dense<0.000000e+00> : vector<24x32xf32>
    %187 = tpu.matmul %185, %186, %cst_68 {dimension_numbers = #tpu.dot_dimension_numbers<[1], [0], [0], [1], [0, 0, 1, 1], [], []>} : vector<24x8xbf16>, vector<8x32xbf16>, vector<24x32xf32> -> vector<24x32xf32>
    %188 = arith.addf %161, %187 : vector<24x32xf32>
    %189 = vector.extract_strided_slice %51 {offsets = [24, 8], sizes = [24, 8], strides = [1, 1]} : vector<48x96xf32> to vector<24x8xf32>
    %190 = vector.extract_strided_slice %51 {offsets = [24, 40], sizes = [24, 8], strides = [1, 1]} : vector<48x96xf32> to vector<24x8xf32>
    %191 = vector.extract_strided_slice %51 {offsets = [24, 72], sizes = [24, 8], strides = [1, 1]} : vector<48x96xf32> to vector<24x8xf32>
    %192 = tpu.transpose %190, [1, 0] : vector<24x8xf32> -> vector<8x24xf32>
    %193 = arith.truncf %189 : vector<24x8xf32> to vector<24x8xbf16>
    %194 = arith.truncf %192 : vector<8x24xf32> to vector<8x24xbf16>
    %cst_69 = arith.constant dense<0.000000e+00> : vector<24x24xf32>
    %195 = tpu.matmul %193, %194, %cst_69 {dimension_numbers = #tpu.dot_dimension_numbers<[1], [0], [0], [1], [0, 0, 1, 1], [], []>} : vector<24x8xbf16>, vector<8x24xbf16>, vector<24x24xf32> -> vector<24x24xf32>
    %cst_70 = arith.constant 0.353553385 : f32
    %196 = vector.broadcast %cst_70 : f32 to vector<24x24xf32>
    %197 = arith.mulf %195, %196 : vector<24x24xf32>
    %198 = arith.addf %197, %5 : vector<24x24xf32>
    %cst_71 = arith.constant dense<0xFF800000> : vector<24xf32>
    %199 = vector.multi_reduction <maximumf>, %198, %cst_71 [1] : vector<24x24xf32> to vector<24xf32>
    %200 = vector.shape_cast %199 : vector<24xf32> to vector<24x1xf32>
    %201 = vector.broadcast %200 : vector<24x1xf32> to vector<24x24xf32>
    %202 = arith.subf %198, %201 : vector<24x24xf32>
    %203 = math.exp %202 : vector<24x24xf32>
    %cst_72 = arith.constant dense<0.000000e+00> : vector<24xf32>
    %204 = vector.multi_reduction <add>, %203, %cst_72 [1] : vector<24x24xf32> to vector<24xf32>
    %205 = vector.shape_cast %204 : vector<24xf32> to vector<24x1xf32>
    %206 = vector.broadcast %205 : vector<24x1xf32> to vector<24x24xf32>
    %207 = arith.divf %203, %206 : vector<24x24xf32>
    %208 = arith.truncf %207 : vector<24x24xf32> to vector<24x24xbf16>
    %209 = arith.truncf %191 : vector<24x8xf32> to vector<24x8xbf16>
    %cst_73 = arith.constant dense<0.000000e+00> : vector<24x8xf32>
    %210 = tpu.matmul %208, %209, %cst_73 {dimension_numbers = #tpu.dot_dimension_numbers<[1], [0], [0], [1], [0, 0, 1, 1], [], []>} : vector<24x24xbf16>, vector<24x8xbf16>, vector<24x8xf32> -> vector<24x8xf32>
    %211 = vector.extract_strided_slice %17 {offsets = [8, 0], sizes = [8, 32], strides = [1, 1]} : vector<32x32xf32> to vector<8x32xf32>
    %212 = arith.truncf %210 : vector<24x8xf32> to vector<24x8xbf16>
    %213 = arith.truncf %211 : vector<8x32xf32> to vector<8x32xbf16>
    %cst_74 = arith.constant dense<0.000000e+00> : vector<24x32xf32>
    %214 = tpu.matmul %212, %213, %cst_74 {dimension_numbers = #tpu.dot_dimension_numbers<[1], [0], [0], [1], [0, 0, 1, 1], [], []>} : vector<24x8xbf16>, vector<8x32xbf16>, vector<24x32xf32> -> vector<24x32xf32>
    %215 = arith.addf %188, %214 : vector<24x32xf32>
    %216 = vector.extract_strided_slice %51 {offsets = [24, 16], sizes = [24, 8], strides = [1, 1]} : vector<48x96xf32> to vector<24x8xf32>
    %217 = vector.extract_strided_slice %51 {offsets = [24, 48], sizes = [24, 8], strides = [1, 1]} : vector<48x96xf32> to vector<24x8xf32>
    %218 = vector.extract_strided_slice %51 {offsets = [24, 80], sizes = [24, 8], strides = [1, 1]} : vector<48x96xf32> to vector<24x8xf32>
    %219 = tpu.transpose %217, [1, 0] : vector<24x8xf32> -> vector<8x24xf32>
    %220 = arith.truncf %216 : vector<24x8xf32> to vector<24x8xbf16>
    %221 = arith.truncf %219 : vector<8x24xf32> to vector<8x24xbf16>
    %cst_75 = arith.constant dense<0.000000e+00> : vector<24x24xf32>
    %222 = tpu.matmul %220, %221, %cst_75 {dimension_numbers = #tpu.dot_dimension_numbers<[1], [0], [0], [1], [0, 0, 1, 1], [], []>} : vector<24x8xbf16>, vector<8x24xbf16>, vector<24x24xf32> -> vector<24x24xf32>
    %cst_76 = arith.constant 0.353553385 : f32
    %223 = vector.broadcast %cst_76 : f32 to vector<24x24xf32>
    %224 = arith.mulf %222, %223 : vector<24x24xf32>
    %225 = arith.addf %224, %5 : vector<24x24xf32>
    %cst_77 = arith.constant dense<0xFF800000> : vector<24xf32>
    %226 = vector.multi_reduction <maximumf>, %225, %cst_77 [1] : vector<24x24xf32> to vector<24xf32>
    %227 = vector.shape_cast %226 : vector<24xf32> to vector<24x1xf32>
    %228 = vector.broadcast %227 : vector<24x1xf32> to vector<24x24xf32>
    %229 = arith.subf %225, %228 : vector<24x24xf32>
    %230 = math.exp %229 : vector<24x24xf32>
    %cst_78 = arith.constant dense<0.000000e+00> : vector<24xf32>
    %231 = vector.multi_reduction <add>, %230, %cst_78 [1] : vector<24x24xf32> to vector<24xf32>
    %232 = vector.shape_cast %231 : vector<24xf32> to vector<24x1xf32>
    %233 = vector.broadcast %232 : vector<24x1xf32> to vector<24x24xf32>
    %234 = arith.divf %230, %233 : vector<24x24xf32>
    %235 = arith.truncf %234 : vector<24x24xf32> to vector<24x24xbf16>
    %236 = arith.truncf %218 : vector<24x8xf32> to vector<24x8xbf16>
    %cst_79 = arith.constant dense<0.000000e+00> : vector<24x8xf32>
    %237 = tpu.matmul %235, %236, %cst_79 {dimension_numbers = #tpu.dot_dimension_numbers<[1], [0], [0], [1], [0, 0, 1, 1], [], []>} : vector<24x24xbf16>, vector<24x8xbf16>, vector<24x8xf32> -> vector<24x8xf32>
    %238 = vector.extract_strided_slice %17 {offsets = [16, 0], sizes = [8, 32], strides = [1, 1]} : vector<32x32xf32> to vector<8x32xf32>
    %239 = arith.truncf %237 : vector<24x8xf32> to vector<24x8xbf16>
    %240 = arith.truncf %238 : vector<8x32xf32> to vector<8x32xbf16>
    %cst_80 = arith.constant dense<0.000000e+00> : vector<24x32xf32>
    %241 = tpu.matmul %239, %240, %cst_80 {dimension_numbers = #tpu.dot_dimension_numbers<[1], [0], [0], [1], [0, 0, 1, 1], [], []>} : vector<24x8xbf16>, vector<8x32xbf16>, vector<24x32xf32> -> vector<24x32xf32>
    %242 = arith.addf %215, %241 : vector<24x32xf32>
    %243 = vector.extract_strided_slice %51 {offsets = [24, 24], sizes = [24, 8], strides = [1, 1]} : vector<48x96xf32> to vector<24x8xf32>
    %244 = vector.extract_strided_slice %51 {offsets = [24, 56], sizes = [24, 8], strides = [1, 1]} : vector<48x96xf32> to vector<24x8xf32>
    %245 = vector.extract_strided_slice %51 {offsets = [24, 88], sizes = [24, 8], strides = [1, 1]} : vector<48x96xf32> to vector<24x8xf32>
    %246 = tpu.transpose %244, [1, 0] : vector<24x8xf32> -> vector<8x24xf32>
    %247 = arith.truncf %243 : vector<24x8xf32> to vector<24x8xbf16>
    %248 = arith.truncf %246 : vector<8x24xf32> to vector<8x24xbf16>
    %cst_81 = arith.constant dense<0.000000e+00> : vector<24x24xf32>
    %249 = tpu.matmul %247, %248, %cst_81 {dimension_numbers = #tpu.dot_dimension_numbers<[1], [0], [0], [1], [0, 0, 1, 1], [], []>} : vector<24x8xbf16>, vector<8x24xbf16>, vector<24x24xf32> -> vector<24x24xf32>
    %cst_82 = arith.constant 0.353553385 : f32
    %250 = vector.broadcast %cst_82 : f32 to vector<24x24xf32>
    %251 = arith.mulf %249, %250 : vector<24x24xf32>
    %252 = arith.addf %251, %5 : vector<24x24xf32>
    %cst_83 = arith.constant dense<0xFF800000> : vector<24xf32>
    %253 = vector.multi_reduction <maximumf>, %252, %cst_83 [1] : vector<24x24xf32> to vector<24xf32>
    %254 = vector.shape_cast %253 : vector<24xf32> to vector<24x1xf32>
    %255 = vector.broadcast %254 : vector<24x1xf32> to vector<24x24xf32>
    %256 = arith.subf %252, %255 : vector<24x24xf32>
    %257 = math.exp %256 : vector<24x24xf32>
    %cst_84 = arith.constant dense<0.000000e+00> : vector<24xf32>
    %258 = vector.multi_reduction <add>, %257, %cst_84 [1] : vector<24x24xf32> to vector<24xf32>
    %259 = vector.shape_cast %258 : vector<24xf32> to vector<24x1xf32>
    %260 = vector.broadcast %259 : vector<24x1xf32> to vector<24x24xf32>
    %261 = arith.divf %257, %260 : vector<24x24xf32>
    %262 = arith.truncf %261 : vector<24x24xf32> to vector<24x24xbf16>
    %263 = arith.truncf %245 : vector<24x8xf32> to vector<24x8xbf16>
    %cst_85 = arith.constant dense<0.000000e+00> : vector<24x8xf32>
    %264 = tpu.matmul %262, %263, %cst_85 {dimension_numbers = #tpu.dot_dimension_numbers<[1], [0], [0], [1], [0, 0, 1, 1], [], []>} : vector<24x24xbf16>, vector<24x8xbf16>, vector<24x8xf32> -> vector<24x8xf32>
    %265 = vector.extract_strided_slice %17 {offsets = [24, 0], sizes = [8, 32], strides = [1, 1]} : vector<32x32xf32> to vector<8x32xf32>
    %266 = arith.truncf %264 : vector<24x8xf32> to vector<24x8xbf16>
    %267 = arith.truncf %265 : vector<8x32xf32> to vector<8x32xbf16>
    %cst_86 = arith.constant dense<0.000000e+00> : vector<24x32xf32>
    %268 = tpu.matmul %266, %267, %cst_86 {dimension_numbers = #tpu.dot_dimension_numbers<[1], [0], [0], [1], [0, 0, 1, 1], [], []>} : vector<24x8xbf16>, vector<8x32xbf16>, vector<24x32xf32> -> vector<24x32xf32>
    %269 = arith.addf %242, %268 : vector<24x32xf32>
    %270 = tpu.concatenate %160, %269 in 0 : vector<24x32xf32>, vector<24x32xf32> -> vector<48x32xf32>
    %271 = arith.addf %12, %270 : vector<48x32xf32>
    %272 = vector.broadcast %18 : vector<1x32xf32> to vector<48x32xf32>
    %273 = arith.addf %271, %272 : vector<48x32xf32>
    %cst_87 = arith.constant dense<0.000000e+00> : vector<48xf32>
    %274 = vector.multi_reduction <add>, %273, %cst_87 [1] : vector<48x32xf32> to vector<48xf32>
    %275 = vector.shape_cast %274 : vector<48xf32> to vector<48x1xf32>
    %cst_88 = arith.constant 3.200000e+01 : f32
    %276 = vector.broadcast %cst_88 : f32 to vector<48x1xf32>
    %277 = arith.divf %275, %276 : vector<48x1xf32>
    %278 = vector.broadcast %277 : vector<48x1xf32> to vector<48x32xf32>
    %279 = arith.subf %273, %278 : vector<48x32xf32>
    %280 = arith.mulf %279, %279 : vector<48x32xf32>
    %cst_89 = arith.constant dense<0.000000e+00> : vector<48xf32>
    %281 = vector.multi_reduction <add>, %280, %cst_89 [1] : vector<48x32xf32> to vector<48xf32>
    %282 = vector.shape_cast %281 : vector<48xf32> to vector<48x1xf32>
    %cst_90 = arith.constant 3.200000e+01 : f32
    %283 = vector.broadcast %cst_90 : f32 to vector<48x1xf32>
    %284 = arith.divf %282, %283 : vector<48x1xf32>
    %285 = vector.broadcast %277 : vector<48x1xf32> to vector<48x32xf32>
    %286 = arith.subf %273, %285 : vector<48x32xf32>
    %cst_91 = arith.constant 9.99999997E-7 : f32
    %287 = vector.broadcast %cst_91 : f32 to vector<48x1xf32>
    %288 = arith.addf %284, %287 : vector<48x1xf32>
    %289 = math.rsqrt %288 : vector<48x1xf32>
    %290 = vector.broadcast %289 : vector<48x1xf32> to vector<48x32xf32>
    %291 = arith.mulf %286, %290 : vector<48x32xf32>
    %292 = vector.broadcast %19 : vector<1x32xf32> to vector<48x32xf32>
    %293 = arith.mulf %291, %292 : vector<48x32xf32>
    %294 = vector.broadcast %20 : vector<1x32xf32> to vector<48x32xf32>
    %295 = arith.addf %293, %294 : vector<48x32xf32>
    %296 = arith.truncf %295 : vector<48x32xf32> to vector<48x32xbf16>
    %297 = arith.truncf %21 : vector<32x128xf32> to vector<32x128xbf16>
    %cst_92 = arith.constant dense<0.000000e+00> : vector<48x128xf32>
    %298 = tpu.matmul %296, %297, %cst_92 {dimension_numbers = #tpu.dot_dimension_numbers<[1], [0], [0], [1], [0, 0, 1, 1], [], []>} : vector<48x32xbf16>, vector<32x128xbf16>, vector<48x128xf32> -> vector<48x128xf32>
    %299 = vector.broadcast %22 : vector<1x128xf32> to vector<48x128xf32>
    %300 = arith.addf %298, %299 : vector<48x128xf32>
    %cst_93 = arith.constant 5.000000e-01 : f32
    %301 = vector.broadcast %cst_93 : f32 to vector<48x128xf32>
    %302 = arith.mulf %301, %300 : vector<48x128xf32>
    %cst_94 = arith.constant 0.707106769 : f32
    %303 = vector.broadcast %cst_94 : f32 to vector<48x128xf32>
    %304 = arith.mulf %300, %303 : vector<48x128xf32>
    %305 = math.erf %304 : vector<48x128xf32>
    %cst_95 = arith.constant 1.000000e+00 : f32
    %306 = vector.broadcast %cst_95 : f32 to vector<48x128xf32>
    %307 = arith.addf %306, %305 : vector<48x128xf32>
    %308 = arith.mulf %302, %307 : vector<48x128xf32>
    %309 = arith.truncf %308 : vector<48x128xf32> to vector<48x128xbf16>
    %310 = arith.truncf %23 : vector<128x32xf32> to vector<128x32xbf16>
    %cst_96 = arith.constant dense<0.000000e+00> : vector<48x32xf32>
    %311 = tpu.matmul %309, %310, %cst_96 {dimension_numbers = #tpu.dot_dimension_numbers<[1], [0], [0], [1], [0, 0, 1, 1], [], []>} : vector<48x128xbf16>, vector<128x32xbf16>, vector<48x32xf32> -> vector<48x32xf32>
    %312 = arith.addf %273, %311 : vector<48x32xf32>
    %313 = vector.broadcast %24 : vector<1x32xf32> to vector<48x32xf32>
    %314 = arith.addf %312, %313 : vector<48x32xf32>
    %c0_97 = arith.constant 0 : index
    %c0_98 = arith.constant 0 : index
    %315 = vector.load %arg15[%c0_97, %c0_98] : memref<1x32xf32, #tpu.memory_space<vmem>>, vector<1x32xf32>
    %c0_99 = arith.constant 0 : index
    %c0_100 = arith.constant 0 : index
    %316 = vector.load %arg16[%c0_99, %c0_100] : memref<1x32xf32, #tpu.memory_space<vmem>>, vector<1x32xf32>
    %c0_101 = arith.constant 0 : index
    %c0_102 = arith.constant 0 : index
    %317 = vector.load %arg17[%c0_101, %c0_102] : memref<32x96xf32, #tpu.memory_space<vmem>>, vector<32x96xf32>
    %c0_103 = arith.constant 0 : index
    %c0_104 = arith.constant 0 : index
    %318 = vector.load %arg18[%c0_103, %c0_104] : memref<1x96xf32, #tpu.memory_space<vmem>>, vector<1x96xf32>
    %c0_105 = arith.constant 0 : index
    %c0_106 = arith.constant 0 : index
    %319 = vector.load %arg19[%c0_105, %c0_106] : memref<32x32xf32, #tpu.memory_space<vmem>>, vector<32x32xf32>
    %c0_107 = arith.constant 0 : index
    %c0_108 = arith.constant 0 : index
    %320 = vector.load %arg20[%c0_107, %c0_108] : memref<1x32xf32, #tpu.memory_space<vmem>>, vector<1x32xf32>
    %c0_109 = arith.constant 0 : index
    %c0_110 = arith.constant 0 : index
    %321 = vector.load %arg21[%c0_109, %c0_110] : memref<1x32xf32, #tpu.memory_space<vmem>>, vector<1x32xf32>
    %c0_111 = arith.constant 0 : index
    %c0_112 = arith.constant 0 : index
    %322 = vector.load %arg22[%c0_111, %c0_112] : memref<1x32xf32, #tpu.memory_space<vmem>>, vector<1x32xf32>
    %c0_113 = arith.constant 0 : index
    %c0_114 = arith.constant 0 : index
    %323 = vector.load %arg23[%c0_113, %c0_114] : memref<32x128xf32, #tpu.memory_space<vmem>>, vector<32x128xf32>
    %c0_115 = arith.constant 0 : index
    %c0_116 = arith.constant 0 : index
    %324 = vector.load %arg24[%c0_115, %c0_116] : memref<1x128xf32, #tpu.memory_space<vmem>>, vector<1x128xf32>
    %c0_117 = arith.constant 0 : index
    %c0_118 = arith.constant 0 : index
    %325 = vector.load %arg25[%c0_117, %c0_118] : memref<128x32xf32, #tpu.memory_space<vmem>>, vector<128x32xf32>
    %c0_119 = arith.constant 0 : index
    %c0_120 = arith.constant 0 : index
    %326 = vector.load %arg26[%c0_119, %c0_120] : memref<1x32xf32, #tpu.memory_space<vmem>>, vector<1x32xf32>
    %cst_121 = arith.constant dense<0.000000e+00> : vector<48xf32>
    %327 = vector.multi_reduction <add>, %314, %cst_121 [1] : vector<48x32xf32> to vector<48xf32>
    %328 = vector.shape_cast %327 : vector<48xf32> to vector<48x1xf32>
    %cst_122 = arith.constant 3.200000e+01 : f32
    %329 = vector.broadcast %cst_122 : f32 to vector<48x1xf32>
    %330 = arith.divf %328, %329 : vector<48x1xf32>
    %331 = vector.broadcast %330 : vector<48x1xf32> to vector<48x32xf32>
    %332 = arith.subf %314, %331 : vector<48x32xf32>
    %333 = arith.mulf %332, %332 : vector<48x32xf32>
    %cst_123 = arith.constant dense<0.000000e+00> : vector<48xf32>
    %334 = vector.multi_reduction <add>, %333, %cst_123 [1] : vector<48x32xf32> to vector<48xf32>
    %335 = vector.shape_cast %334 : vector<48xf32> to vector<48x1xf32>
    %cst_124 = arith.constant 3.200000e+01 : f32
    %336 = vector.broadcast %cst_124 : f32 to vector<48x1xf32>
    %337 = arith.divf %335, %336 : vector<48x1xf32>
    %338 = vector.broadcast %330 : vector<48x1xf32> to vector<48x32xf32>
    %339 = arith.subf %314, %338 : vector<48x32xf32>
    %cst_125 = arith.constant 9.99999997E-7 : f32
    %340 = vector.broadcast %cst_125 : f32 to vector<48x1xf32>
    %341 = arith.addf %337, %340 : vector<48x1xf32>
    %342 = math.rsqrt %341 : vector<48x1xf32>
    %343 = vector.broadcast %342 : vector<48x1xf32> to vector<48x32xf32>
    %344 = arith.mulf %339, %343 : vector<48x32xf32>
    %345 = vector.broadcast %315 : vector<1x32xf32> to vector<48x32xf32>
    %346 = arith.mulf %344, %345 : vector<48x32xf32>
    %347 = vector.broadcast %316 : vector<1x32xf32> to vector<48x32xf32>
    %348 = arith.addf %346, %347 : vector<48x32xf32>
    %349 = arith.truncf %348 : vector<48x32xf32> to vector<48x32xbf16>
    %350 = arith.truncf %317 : vector<32x96xf32> to vector<32x96xbf16>
    %cst_126 = arith.constant dense<0.000000e+00> : vector<48x96xf32>
    %351 = tpu.matmul %349, %350, %cst_126 {dimension_numbers = #tpu.dot_dimension_numbers<[1], [0], [0], [1], [0, 0, 1, 1], [], []>} : vector<48x32xbf16>, vector<32x96xbf16>, vector<48x96xf32> -> vector<48x96xf32>
    %352 = vector.broadcast %318 : vector<1x96xf32> to vector<48x96xf32>
    %353 = arith.addf %351, %352 : vector<48x96xf32>
    %cst_127 = arith.constant 0.000000e+00 : f32
    %354 = vector.broadcast %cst_127 : f32 to vector<24x32xf32>
    %355 = vector.extract_strided_slice %353 {offsets = [0, 0], sizes = [24, 8], strides = [1, 1]} : vector<48x96xf32> to vector<24x8xf32>
    %356 = vector.extract_strided_slice %353 {offsets = [0, 32], sizes = [24, 8], strides = [1, 1]} : vector<48x96xf32> to vector<24x8xf32>
    %357 = vector.extract_strided_slice %353 {offsets = [0, 64], sizes = [24, 8], strides = [1, 1]} : vector<48x96xf32> to vector<24x8xf32>
    %358 = tpu.transpose %356, [1, 0] : vector<24x8xf32> -> vector<8x24xf32>
    %359 = arith.truncf %355 : vector<24x8xf32> to vector<24x8xbf16>
    %360 = arith.truncf %358 : vector<8x24xf32> to vector<8x24xbf16>
    %cst_128 = arith.constant dense<0.000000e+00> : vector<24x24xf32>
    %361 = tpu.matmul %359, %360, %cst_128 {dimension_numbers = #tpu.dot_dimension_numbers<[1], [0], [0], [1], [0, 0, 1, 1], [], []>} : vector<24x8xbf16>, vector<8x24xbf16>, vector<24x24xf32> -> vector<24x24xf32>
    %cst_129 = arith.constant 0.353553385 : f32
    %362 = vector.broadcast %cst_129 : f32 to vector<24x24xf32>
    %363 = arith.mulf %361, %362 : vector<24x24xf32>
    %364 = arith.addf %363, %5 : vector<24x24xf32>
    %cst_130 = arith.constant dense<0xFF800000> : vector<24xf32>
    %365 = vector.multi_reduction <maximumf>, %364, %cst_130 [1] : vector<24x24xf32> to vector<24xf32>
    %366 = vector.shape_cast %365 : vector<24xf32> to vector<24x1xf32>
    %367 = vector.broadcast %366 : vector<24x1xf32> to vector<24x24xf32>
    %368 = arith.subf %364, %367 : vector<24x24xf32>
    %369 = math.exp %368 : vector<24x24xf32>
    %cst_131 = arith.constant dense<0.000000e+00> : vector<24xf32>
    %370 = vector.multi_reduction <add>, %369, %cst_131 [1] : vector<24x24xf32> to vector<24xf32>
    %371 = vector.shape_cast %370 : vector<24xf32> to vector<24x1xf32>
    %372 = vector.broadcast %371 : vector<24x1xf32> to vector<24x24xf32>
    %373 = arith.divf %369, %372 : vector<24x24xf32>
    %374 = arith.truncf %373 : vector<24x24xf32> to vector<24x24xbf16>
    %375 = arith.truncf %357 : vector<24x8xf32> to vector<24x8xbf16>
    %cst_132 = arith.constant dense<0.000000e+00> : vector<24x8xf32>
    %376 = tpu.matmul %374, %375, %cst_132 {dimension_numbers = #tpu.dot_dimension_numbers<[1], [0], [0], [1], [0, 0, 1, 1], [], []>} : vector<24x24xbf16>, vector<24x8xbf16>, vector<24x8xf32> -> vector<24x8xf32>
    %377 = vector.extract_strided_slice %319 {offsets = [0, 0], sizes = [8, 32], strides = [1, 1]} : vector<32x32xf32> to vector<8x32xf32>
    %378 = arith.truncf %376 : vector<24x8xf32> to vector<24x8xbf16>
    %379 = arith.truncf %377 : vector<8x32xf32> to vector<8x32xbf16>
    %cst_133 = arith.constant dense<0.000000e+00> : vector<24x32xf32>
    %380 = tpu.matmul %378, %379, %cst_133 {dimension_numbers = #tpu.dot_dimension_numbers<[1], [0], [0], [1], [0, 0, 1, 1], [], []>} : vector<24x8xbf16>, vector<8x32xbf16>, vector<24x32xf32> -> vector<24x32xf32>
    %381 = arith.addf %354, %380 : vector<24x32xf32>
    %382 = vector.extract_strided_slice %353 {offsets = [0, 8], sizes = [24, 8], strides = [1, 1]} : vector<48x96xf32> to vector<24x8xf32>
    %383 = vector.extract_strided_slice %353 {offsets = [0, 40], sizes = [24, 8], strides = [1, 1]} : vector<48x96xf32> to vector<24x8xf32>
    %384 = vector.extract_strided_slice %353 {offsets = [0, 72], sizes = [24, 8], strides = [1, 1]} : vector<48x96xf32> to vector<24x8xf32>
    %385 = tpu.transpose %383, [1, 0] : vector<24x8xf32> -> vector<8x24xf32>
    %386 = arith.truncf %382 : vector<24x8xf32> to vector<24x8xbf16>
    %387 = arith.truncf %385 : vector<8x24xf32> to vector<8x24xbf16>
    %cst_134 = arith.constant dense<0.000000e+00> : vector<24x24xf32>
    %388 = tpu.matmul %386, %387, %cst_134 {dimension_numbers = #tpu.dot_dimension_numbers<[1], [0], [0], [1], [0, 0, 1, 1], [], []>} : vector<24x8xbf16>, vector<8x24xbf16>, vector<24x24xf32> -> vector<24x24xf32>
    %cst_135 = arith.constant 0.353553385 : f32
    %389 = vector.broadcast %cst_135 : f32 to vector<24x24xf32>
    %390 = arith.mulf %388, %389 : vector<24x24xf32>
    %391 = arith.addf %390, %5 : vector<24x24xf32>
    %cst_136 = arith.constant dense<0xFF800000> : vector<24xf32>
    %392 = vector.multi_reduction <maximumf>, %391, %cst_136 [1] : vector<24x24xf32> to vector<24xf32>
    %393 = vector.shape_cast %392 : vector<24xf32> to vector<24x1xf32>
    %394 = vector.broadcast %393 : vector<24x1xf32> to vector<24x24xf32>
    %395 = arith.subf %391, %394 : vector<24x24xf32>
    %396 = math.exp %395 : vector<24x24xf32>
    %cst_137 = arith.constant dense<0.000000e+00> : vector<24xf32>
    %397 = vector.multi_reduction <add>, %396, %cst_137 [1] : vector<24x24xf32> to vector<24xf32>
    %398 = vector.shape_cast %397 : vector<24xf32> to vector<24x1xf32>
    %399 = vector.broadcast %398 : vector<24x1xf32> to vector<24x24xf32>
    %400 = arith.divf %396, %399 : vector<24x24xf32>
    %401 = arith.truncf %400 : vector<24x24xf32> to vector<24x24xbf16>
    %402 = arith.truncf %384 : vector<24x8xf32> to vector<24x8xbf16>
    %cst_138 = arith.constant dense<0.000000e+00> : vector<24x8xf32>
    %403 = tpu.matmul %401, %402, %cst_138 {dimension_numbers = #tpu.dot_dimension_numbers<[1], [0], [0], [1], [0, 0, 1, 1], [], []>} : vector<24x24xbf16>, vector<24x8xbf16>, vector<24x8xf32> -> vector<24x8xf32>
    %404 = vector.extract_strided_slice %319 {offsets = [8, 0], sizes = [8, 32], strides = [1, 1]} : vector<32x32xf32> to vector<8x32xf32>
    %405 = arith.truncf %403 : vector<24x8xf32> to vector<24x8xbf16>
    %406 = arith.truncf %404 : vector<8x32xf32> to vector<8x32xbf16>
    %cst_139 = arith.constant dense<0.000000e+00> : vector<24x32xf32>
    %407 = tpu.matmul %405, %406, %cst_139 {dimension_numbers = #tpu.dot_dimension_numbers<[1], [0], [0], [1], [0, 0, 1, 1], [], []>} : vector<24x8xbf16>, vector<8x32xbf16>, vector<24x32xf32> -> vector<24x32xf32>
    %408 = arith.addf %381, %407 : vector<24x32xf32>
    %409 = vector.extract_strided_slice %353 {offsets = [0, 16], sizes = [24, 8], strides = [1, 1]} : vector<48x96xf32> to vector<24x8xf32>
    %410 = vector.extract_strided_slice %353 {offsets = [0, 48], sizes = [24, 8], strides = [1, 1]} : vector<48x96xf32> to vector<24x8xf32>
    %411 = vector.extract_strided_slice %353 {offsets = [0, 80], sizes = [24, 8], strides = [1, 1]} : vector<48x96xf32> to vector<24x8xf32>
    %412 = tpu.transpose %410, [1, 0] : vector<24x8xf32> -> vector<8x24xf32>
    %413 = arith.truncf %409 : vector<24x8xf32> to vector<24x8xbf16>
    %414 = arith.truncf %412 : vector<8x24xf32> to vector<8x24xbf16>
    %cst_140 = arith.constant dense<0.000000e+00> : vector<24x24xf32>
    %415 = tpu.matmul %413, %414, %cst_140 {dimension_numbers = #tpu.dot_dimension_numbers<[1], [0], [0], [1], [0, 0, 1, 1], [], []>} : vector<24x8xbf16>, vector<8x24xbf16>, vector<24x24xf32> -> vector<24x24xf32>
    %cst_141 = arith.constant 0.353553385 : f32
    %416 = vector.broadcast %cst_141 : f32 to vector<24x24xf32>
    %417 = arith.mulf %415, %416 : vector<24x24xf32>
    %418 = arith.addf %417, %5 : vector<24x24xf32>
    %cst_142 = arith.constant dense<0xFF800000> : vector<24xf32>
    %419 = vector.multi_reduction <maximumf>, %418, %cst_142 [1] : vector<24x24xf32> to vector<24xf32>
    %420 = vector.shape_cast %419 : vector<24xf32> to vector<24x1xf32>
    %421 = vector.broadcast %420 : vector<24x1xf32> to vector<24x24xf32>
    %422 = arith.subf %418, %421 : vector<24x24xf32>
    %423 = math.exp %422 : vector<24x24xf32>
    %cst_143 = arith.constant dense<0.000000e+00> : vector<24xf32>
    %424 = vector.multi_reduction <add>, %423, %cst_143 [1] : vector<24x24xf32> to vector<24xf32>
    %425 = vector.shape_cast %424 : vector<24xf32> to vector<24x1xf32>
    %426 = vector.broadcast %425 : vector<24x1xf32> to vector<24x24xf32>
    %427 = arith.divf %423, %426 : vector<24x24xf32>
    %428 = arith.truncf %427 : vector<24x24xf32> to vector<24x24xbf16>
    %429 = arith.truncf %411 : vector<24x8xf32> to vector<24x8xbf16>
    %cst_144 = arith.constant dense<0.000000e+00> : vector<24x8xf32>
    %430 = tpu.matmul %428, %429, %cst_144 {dimension_numbers = #tpu.dot_dimension_numbers<[1], [0], [0], [1], [0, 0, 1, 1], [], []>} : vector<24x24xbf16>, vector<24x8xbf16>, vector<24x8xf32> -> vector<24x8xf32>
    %431 = vector.extract_strided_slice %319 {offsets = [16, 0], sizes = [8, 32], strides = [1, 1]} : vector<32x32xf32> to vector<8x32xf32>
    %432 = arith.truncf %430 : vector<24x8xf32> to vector<24x8xbf16>
    %433 = arith.truncf %431 : vector<8x32xf32> to vector<8x32xbf16>
    %cst_145 = arith.constant dense<0.000000e+00> : vector<24x32xf32>
    %434 = tpu.matmul %432, %433, %cst_145 {dimension_numbers = #tpu.dot_dimension_numbers<[1], [0], [0], [1], [0, 0, 1, 1], [], []>} : vector<24x8xbf16>, vector<8x32xbf16>, vector<24x32xf32> -> vector<24x32xf32>
    %435 = arith.addf %408, %434 : vector<24x32xf32>
    %436 = vector.extract_strided_slice %353 {offsets = [0, 24], sizes = [24, 8], strides = [1, 1]} : vector<48x96xf32> to vector<24x8xf32>
    %437 = vector.extract_strided_slice %353 {offsets = [0, 56], sizes = [24, 8], strides = [1, 1]} : vector<48x96xf32> to vector<24x8xf32>
    %438 = vector.extract_strided_slice %353 {offsets = [0, 88], sizes = [24, 8], strides = [1, 1]} : vector<48x96xf32> to vector<24x8xf32>
    %439 = tpu.transpose %437, [1, 0] : vector<24x8xf32> -> vector<8x24xf32>
    %440 = arith.truncf %436 : vector<24x8xf32> to vector<24x8xbf16>
    %441 = arith.truncf %439 : vector<8x24xf32> to vector<8x24xbf16>
    %cst_146 = arith.constant dense<0.000000e+00> : vector<24x24xf32>
    %442 = tpu.matmul %440, %441, %cst_146 {dimension_numbers = #tpu.dot_dimension_numbers<[1], [0], [0], [1], [0, 0, 1, 1], [], []>} : vector<24x8xbf16>, vector<8x24xbf16>, vector<24x24xf32> -> vector<24x24xf32>
    %cst_147 = arith.constant 0.353553385 : f32
    %443 = vector.broadcast %cst_147 : f32 to vector<24x24xf32>
    %444 = arith.mulf %442, %443 : vector<24x24xf32>
    %445 = arith.addf %444, %5 : vector<24x24xf32>
    %cst_148 = arith.constant dense<0xFF800000> : vector<24xf32>
    %446 = vector.multi_reduction <maximumf>, %445, %cst_148 [1] : vector<24x24xf32> to vector<24xf32>
    %447 = vector.shape_cast %446 : vector<24xf32> to vector<24x1xf32>
    %448 = vector.broadcast %447 : vector<24x1xf32> to vector<24x24xf32>
    %449 = arith.subf %445, %448 : vector<24x24xf32>
    %450 = math.exp %449 : vector<24x24xf32>
    %cst_149 = arith.constant dense<0.000000e+00> : vector<24xf32>
    %451 = vector.multi_reduction <add>, %450, %cst_149 [1] : vector<24x24xf32> to vector<24xf32>
    %452 = vector.shape_cast %451 : vector<24xf32> to vector<24x1xf32>
    %453 = vector.broadcast %452 : vector<24x1xf32> to vector<24x24xf32>
    %454 = arith.divf %450, %453 : vector<24x24xf32>
    %455 = arith.truncf %454 : vector<24x24xf32> to vector<24x24xbf16>
    %456 = arith.truncf %438 : vector<24x8xf32> to vector<24x8xbf16>
    %cst_150 = arith.constant dense<0.000000e+00> : vector<24x8xf32>
    %457 = tpu.matmul %455, %456, %cst_150 {dimension_numbers = #tpu.dot_dimension_numbers<[1], [0], [0], [1], [0, 0, 1, 1], [], []>} : vector<24x24xbf16>, vector<24x8xbf16>, vector<24x8xf32> -> vector<24x8xf32>
    %458 = vector.extract_strided_slice %319 {offsets = [24, 0], sizes = [8, 32], strides = [1, 1]} : vector<32x32xf32> to vector<8x32xf32>
    %459 = arith.truncf %457 : vector<24x8xf32> to vector<24x8xbf16>
    %460 = arith.truncf %458 : vector<8x32xf32> to vector<8x32xbf16>
    %cst_151 = arith.constant dense<0.000000e+00> : vector<24x32xf32>
    %461 = tpu.matmul %459, %460, %cst_151 {dimension_numbers = #tpu.dot_dimension_numbers<[1], [0], [0], [1], [0, 0, 1, 1], [], []>} : vector<24x8xbf16>, vector<8x32xbf16>, vector<24x32xf32> -> vector<24x32xf32>
    %462 = arith.addf %435, %461 : vector<24x32xf32>
    %cst_152 = arith.constant 0.000000e+00 : f32
    %463 = vector.broadcast %cst_152 : f32 to vector<24x32xf32>
    %464 = vector.extract_strided_slice %353 {offsets = [24, 0], sizes = [24, 8], strides = [1, 1]} : vector<48x96xf32> to vector<24x8xf32>
    %465 = vector.extract_strided_slice %353 {offsets = [24, 32], sizes = [24, 8], strides = [1, 1]} : vector<48x96xf32> to vector<24x8xf32>
    %466 = vector.extract_strided_slice %353 {offsets = [24, 64], sizes = [24, 8], strides = [1, 1]} : vector<48x96xf32> to vector<24x8xf32>
    %467 = tpu.transpose %465, [1, 0] : vector<24x8xf32> -> vector<8x24xf32>
    %468 = arith.truncf %464 : vector<24x8xf32> to vector<24x8xbf16>
    %469 = arith.truncf %467 : vector<8x24xf32> to vector<8x24xbf16>
    %cst_153 = arith.constant dense<0.000000e+00> : vector<24x24xf32>
    %470 = tpu.matmul %468, %469, %cst_153 {dimension_numbers = #tpu.dot_dimension_numbers<[1], [0], [0], [1], [0, 0, 1, 1], [], []>} : vector<24x8xbf16>, vector<8x24xbf16>, vector<24x24xf32> -> vector<24x24xf32>
    %cst_154 = arith.constant 0.353553385 : f32
    %471 = vector.broadcast %cst_154 : f32 to vector<24x24xf32>
    %472 = arith.mulf %470, %471 : vector<24x24xf32>
    %473 = arith.addf %472, %5 : vector<24x24xf32>
    %cst_155 = arith.constant dense<0xFF800000> : vector<24xf32>
    %474 = vector.multi_reduction <maximumf>, %473, %cst_155 [1] : vector<24x24xf32> to vector<24xf32>
    %475 = vector.shape_cast %474 : vector<24xf32> to vector<24x1xf32>
    %476 = vector.broadcast %475 : vector<24x1xf32> to vector<24x24xf32>
    %477 = arith.subf %473, %476 : vector<24x24xf32>
    %478 = math.exp %477 : vector<24x24xf32>
    %cst_156 = arith.constant dense<0.000000e+00> : vector<24xf32>
    %479 = vector.multi_reduction <add>, %478, %cst_156 [1] : vector<24x24xf32> to vector<24xf32>
    %480 = vector.shape_cast %479 : vector<24xf32> to vector<24x1xf32>
    %481 = vector.broadcast %480 : vector<24x1xf32> to vector<24x24xf32>
    %482 = arith.divf %478, %481 : vector<24x24xf32>
    %483 = arith.truncf %482 : vector<24x24xf32> to vector<24x24xbf16>
    %484 = arith.truncf %466 : vector<24x8xf32> to vector<24x8xbf16>
    %cst_157 = arith.constant dense<0.000000e+00> : vector<24x8xf32>
    %485 = tpu.matmul %483, %484, %cst_157 {dimension_numbers = #tpu.dot_dimension_numbers<[1], [0], [0], [1], [0, 0, 1, 1], [], []>} : vector<24x24xbf16>, vector<24x8xbf16>, vector<24x8xf32> -> vector<24x8xf32>
    %486 = vector.extract_strided_slice %319 {offsets = [0, 0], sizes = [8, 32], strides = [1, 1]} : vector<32x32xf32> to vector<8x32xf32>
    %487 = arith.truncf %485 : vector<24x8xf32> to vector<24x8xbf16>
    %488 = arith.truncf %486 : vector<8x32xf32> to vector<8x32xbf16>
    %cst_158 = arith.constant dense<0.000000e+00> : vector<24x32xf32>
    %489 = tpu.matmul %487, %488, %cst_158 {dimension_numbers = #tpu.dot_dimension_numbers<[1], [0], [0], [1], [0, 0, 1, 1], [], []>} : vector<24x8xbf16>, vector<8x32xbf16>, vector<24x32xf32> -> vector<24x32xf32>
    %490 = arith.addf %463, %489 : vector<24x32xf32>
    %491 = vector.extract_strided_slice %353 {offsets = [24, 8], sizes = [24, 8], strides = [1, 1]} : vector<48x96xf32> to vector<24x8xf32>
    %492 = vector.extract_strided_slice %353 {offsets = [24, 40], sizes = [24, 8], strides = [1, 1]} : vector<48x96xf32> to vector<24x8xf32>
    %493 = vector.extract_strided_slice %353 {offsets = [24, 72], sizes = [24, 8], strides = [1, 1]} : vector<48x96xf32> to vector<24x8xf32>
    %494 = tpu.transpose %492, [1, 0] : vector<24x8xf32> -> vector<8x24xf32>
    %495 = arith.truncf %491 : vector<24x8xf32> to vector<24x8xbf16>
    %496 = arith.truncf %494 : vector<8x24xf32> to vector<8x24xbf16>
    %cst_159 = arith.constant dense<0.000000e+00> : vector<24x24xf32>
    %497 = tpu.matmul %495, %496, %cst_159 {dimension_numbers = #tpu.dot_dimension_numbers<[1], [0], [0], [1], [0, 0, 1, 1], [], []>} : vector<24x8xbf16>, vector<8x24xbf16>, vector<24x24xf32> -> vector<24x24xf32>
    %cst_160 = arith.constant 0.353553385 : f32
    %498 = vector.broadcast %cst_160 : f32 to vector<24x24xf32>
    %499 = arith.mulf %497, %498 : vector<24x24xf32>
    %500 = arith.addf %499, %5 : vector<24x24xf32>
    %cst_161 = arith.constant dense<0xFF800000> : vector<24xf32>
    %501 = vector.multi_reduction <maximumf>, %500, %cst_161 [1] : vector<24x24xf32> to vector<24xf32>
    %502 = vector.shape_cast %501 : vector<24xf32> to vector<24x1xf32>
    %503 = vector.broadcast %502 : vector<24x1xf32> to vector<24x24xf32>
    %504 = arith.subf %500, %503 : vector<24x24xf32>
    %505 = math.exp %504 : vector<24x24xf32>
    %cst_162 = arith.constant dense<0.000000e+00> : vector<24xf32>
    %506 = vector.multi_reduction <add>, %505, %cst_162 [1] : vector<24x24xf32> to vector<24xf32>
    %507 = vector.shape_cast %506 : vector<24xf32> to vector<24x1xf32>
    %508 = vector.broadcast %507 : vector<24x1xf32> to vector<24x24xf32>
    %509 = arith.divf %505, %508 : vector<24x24xf32>
    %510 = arith.truncf %509 : vector<24x24xf32> to vector<24x24xbf16>
    %511 = arith.truncf %493 : vector<24x8xf32> to vector<24x8xbf16>
    %cst_163 = arith.constant dense<0.000000e+00> : vector<24x8xf32>
    %512 = tpu.matmul %510, %511, %cst_163 {dimension_numbers = #tpu.dot_dimension_numbers<[1], [0], [0], [1], [0, 0, 1, 1], [], []>} : vector<24x24xbf16>, vector<24x8xbf16>, vector<24x8xf32> -> vector<24x8xf32>
    %513 = vector.extract_strided_slice %319 {offsets = [8, 0], sizes = [8, 32], strides = [1, 1]} : vector<32x32xf32> to vector<8x32xf32>
    %514 = arith.truncf %512 : vector<24x8xf32> to vector<24x8xbf16>
    %515 = arith.truncf %513 : vector<8x32xf32> to vector<8x32xbf16>
    %cst_164 = arith.constant dense<0.000000e+00> : vector<24x32xf32>
    %516 = tpu.matmul %514, %515, %cst_164 {dimension_numbers = #tpu.dot_dimension_numbers<[1], [0], [0], [1], [0, 0, 1, 1], [], []>} : vector<24x8xbf16>, vector<8x32xbf16>, vector<24x32xf32> -> vector<24x32xf32>
    %517 = arith.addf %490, %516 : vector<24x32xf32>
    %518 = vector.extract_strided_slice %353 {offsets = [24, 16], sizes = [24, 8], strides = [1, 1]} : vector<48x96xf32> to vector<24x8xf32>
    %519 = vector.extract_strided_slice %353 {offsets = [24, 48], sizes = [24, 8], strides = [1, 1]} : vector<48x96xf32> to vector<24x8xf32>
    %520 = vector.extract_strided_slice %353 {offsets = [24, 80], sizes = [24, 8], strides = [1, 1]} : vector<48x96xf32> to vector<24x8xf32>
    %521 = tpu.transpose %519, [1, 0] : vector<24x8xf32> -> vector<8x24xf32>
    %522 = arith.truncf %518 : vector<24x8xf32> to vector<24x8xbf16>
    %523 = arith.truncf %521 : vector<8x24xf32> to vector<8x24xbf16>
    %cst_165 = arith.constant dense<0.000000e+00> : vector<24x24xf32>
    %524 = tpu.matmul %522, %523, %cst_165 {dimension_numbers = #tpu.dot_dimension_numbers<[1], [0], [0], [1], [0, 0, 1, 1], [], []>} : vector<24x8xbf16>, vector<8x24xbf16>, vector<24x24xf32> -> vector<24x24xf32>
    %cst_166 = arith.constant 0.353553385 : f32
    %525 = vector.broadcast %cst_166 : f32 to vector<24x24xf32>
    %526 = arith.mulf %524, %525 : vector<24x24xf32>
    %527 = arith.addf %526, %5 : vector<24x24xf32>
    %cst_167 = arith.constant dense<0xFF800000> : vector<24xf32>
    %528 = vector.multi_reduction <maximumf>, %527, %cst_167 [1] : vector<24x24xf32> to vector<24xf32>
    %529 = vector.shape_cast %528 : vector<24xf32> to vector<24x1xf32>
    %530 = vector.broadcast %529 : vector<24x1xf32> to vector<24x24xf32>
    %531 = arith.subf %527, %530 : vector<24x24xf32>
    %532 = math.exp %531 : vector<24x24xf32>
    %cst_168 = arith.constant dense<0.000000e+00> : vector<24xf32>
    %533 = vector.multi_reduction <add>, %532, %cst_168 [1] : vector<24x24xf32> to vector<24xf32>
    %534 = vector.shape_cast %533 : vector<24xf32> to vector<24x1xf32>
    %535 = vector.broadcast %534 : vector<24x1xf32> to vector<24x24xf32>
    %536 = arith.divf %532, %535 : vector<24x24xf32>
    %537 = arith.truncf %536 : vector<24x24xf32> to vector<24x24xbf16>
    %538 = arith.truncf %520 : vector<24x8xf32> to vector<24x8xbf16>
    %cst_169 = arith.constant dense<0.000000e+00> : vector<24x8xf32>
    %539 = tpu.matmul %537, %538, %cst_169 {dimension_numbers = #tpu.dot_dimension_numbers<[1], [0], [0], [1], [0, 0, 1, 1], [], []>} : vector<24x24xbf16>, vector<24x8xbf16>, vector<24x8xf32> -> vector<24x8xf32>
    %540 = vector.extract_strided_slice %319 {offsets = [16, 0], sizes = [8, 32], strides = [1, 1]} : vector<32x32xf32> to vector<8x32xf32>
    %541 = arith.truncf %539 : vector<24x8xf32> to vector<24x8xbf16>
    %542 = arith.truncf %540 : vector<8x32xf32> to vector<8x32xbf16>
    %cst_170 = arith.constant dense<0.000000e+00> : vector<24x32xf32>
    %543 = tpu.matmul %541, %542, %cst_170 {dimension_numbers = #tpu.dot_dimension_numbers<[1], [0], [0], [1], [0, 0, 1, 1], [], []>} : vector<24x8xbf16>, vector<8x32xbf16>, vector<24x32xf32> -> vector<24x32xf32>
    %544 = arith.addf %517, %543 : vector<24x32xf32>
    %545 = vector.extract_strided_slice %353 {offsets = [24, 24], sizes = [24, 8], strides = [1, 1]} : vector<48x96xf32> to vector<24x8xf32>
    %546 = vector.extract_strided_slice %353 {offsets = [24, 56], sizes = [24, 8], strides = [1, 1]} : vector<48x96xf32> to vector<24x8xf32>
    %547 = vector.extract_strided_slice %353 {offsets = [24, 88], sizes = [24, 8], strides = [1, 1]} : vector<48x96xf32> to vector<24x8xf32>
    %548 = tpu.transpose %546, [1, 0] : vector<24x8xf32> -> vector<8x24xf32>
    %549 = arith.truncf %545 : vector<24x8xf32> to vector<24x8xbf16>
    %550 = arith.truncf %548 : vector<8x24xf32> to vector<8x24xbf16>
    %cst_171 = arith.constant dense<0.000000e+00> : vector<24x24xf32>
    %551 = tpu.matmul %549, %550, %cst_171 {dimension_numbers = #tpu.dot_dimension_numbers<[1], [0], [0], [1], [0, 0, 1, 1], [], []>} : vector<24x8xbf16>, vector<8x24xbf16>, vector<24x24xf32> -> vector<24x24xf32>
    %cst_172 = arith.constant 0.353553385 : f32
    %552 = vector.broadcast %cst_172 : f32 to vector<24x24xf32>
    %553 = arith.mulf %551, %552 : vector<24x24xf32>
    %554 = arith.addf %553, %5 : vector<24x24xf32>
    %cst_173 = arith.constant dense<0xFF800000> : vector<24xf32>
    %555 = vector.multi_reduction <maximumf>, %554, %cst_173 [1] : vector<24x24xf32> to vector<24xf32>
    %556 = vector.shape_cast %555 : vector<24xf32> to vector<24x1xf32>
    %557 = vector.broadcast %556 : vector<24x1xf32> to vector<24x24xf32>
    %558 = arith.subf %554, %557 : vector<24x24xf32>
    %559 = math.exp %558 : vector<24x24xf32>
    %cst_174 = arith.constant dense<0.000000e+00> : vector<24xf32>
    %560 = vector.multi_reduction <add>, %559, %cst_174 [1] : vector<24x24xf32> to vector<24xf32>
    %561 = vector.shape_cast %560 : vector<24xf32> to vector<24x1xf32>
    %562 = vector.broadcast %561 : vector<24x1xf32> to vector<24x24xf32>
    %563 = arith.divf %559, %562 : vector<24x24xf32>
    %564 = arith.truncf %563 : vector<24x24xf32> to vector<24x24xbf16>
    %565 = arith.truncf %547 : vector<24x8xf32> to vector<24x8xbf16>
    %cst_175 = arith.constant dense<0.000000e+00> : vector<24x8xf32>
    %566 = tpu.matmul %564, %565, %cst_175 {dimension_numbers = #tpu.dot_dimension_numbers<[1], [0], [0], [1], [0, 0, 1, 1], [], []>} : vector<24x24xbf16>, vector<24x8xbf16>, vector<24x8xf32> -> vector<24x8xf32>
    %567 = vector.extract_strided_slice %319 {offsets = [24, 0], sizes = [8, 32], strides = [1, 1]} : vector<32x32xf32> to vector<8x32xf32>
    %568 = arith.truncf %566 : vector<24x8xf32> to vector<24x8xbf16>
    %569 = arith.truncf %567 : vector<8x32xf32> to vector<8x32xbf16>
    %cst_176 = arith.constant dense<0.000000e+00> : vector<24x32xf32>
    %570 = tpu.matmul %568, %569, %cst_176 {dimension_numbers = #tpu.dot_dimension_numbers<[1], [0], [0], [1], [0, 0, 1, 1], [], []>} : vector<24x8xbf16>, vector<8x32xbf16>, vector<24x32xf32> -> vector<24x32xf32>
    %571 = arith.addf %544, %570 : vector<24x32xf32>
    %572 = tpu.concatenate %462, %571 in 0 : vector<24x32xf32>, vector<24x32xf32> -> vector<48x32xf32>
    %573 = arith.addf %314, %572 : vector<48x32xf32>
    %574 = vector.broadcast %320 : vector<1x32xf32> to vector<48x32xf32>
    %575 = arith.addf %573, %574 : vector<48x32xf32>
    %cst_177 = arith.constant dense<0.000000e+00> : vector<48xf32>
    %576 = vector.multi_reduction <add>, %575, %cst_177 [1] : vector<48x32xf32> to vector<48xf32>
    %577 = vector.shape_cast %576 : vector<48xf32> to vector<48x1xf32>
    %cst_178 = arith.constant 3.200000e+01 : f32
    %578 = vector.broadcast %cst_178 : f32 to vector<48x1xf32>
    %579 = arith.divf %577, %578 : vector<48x1xf32>
    %580 = vector.broadcast %579 : vector<48x1xf32> to vector<48x32xf32>
    %581 = arith.subf %575, %580 : vector<48x32xf32>
    %582 = arith.mulf %581, %581 : vector<48x32xf32>
    %cst_179 = arith.constant dense<0.000000e+00> : vector<48xf32>
    %583 = vector.multi_reduction <add>, %582, %cst_179 [1] : vector<48x32xf32> to vector<48xf32>
    %584 = vector.shape_cast %583 : vector<48xf32> to vector<48x1xf32>
    %cst_180 = arith.constant 3.200000e+01 : f32
    %585 = vector.broadcast %cst_180 : f32 to vector<48x1xf32>
    %586 = arith.divf %584, %585 : vector<48x1xf32>
    %587 = vector.broadcast %579 : vector<48x1xf32> to vector<48x32xf32>
    %588 = arith.subf %575, %587 : vector<48x32xf32>
    %cst_181 = arith.constant 9.99999997E-7 : f32
    %589 = vector.broadcast %cst_181 : f32 to vector<48x1xf32>
    %590 = arith.addf %586, %589 : vector<48x1xf32>
    %591 = math.rsqrt %590 : vector<48x1xf32>
    %592 = vector.broadcast %591 : vector<48x1xf32> to vector<48x32xf32>
    %593 = arith.mulf %588, %592 : vector<48x32xf32>
    %594 = vector.broadcast %321 : vector<1x32xf32> to vector<48x32xf32>
    %595 = arith.mulf %593, %594 : vector<48x32xf32>
    %596 = vector.broadcast %322 : vector<1x32xf32> to vector<48x32xf32>
    %597 = arith.addf %595, %596 : vector<48x32xf32>
    %598 = arith.truncf %597 : vector<48x32xf32> to vector<48x32xbf16>
    %599 = arith.truncf %323 : vector<32x128xf32> to vector<32x128xbf16>
    %cst_182 = arith.constant dense<0.000000e+00> : vector<48x128xf32>
    %600 = tpu.matmul %598, %599, %cst_182 {dimension_numbers = #tpu.dot_dimension_numbers<[1], [0], [0], [1], [0, 0, 1, 1], [], []>} : vector<48x32xbf16>, vector<32x128xbf16>, vector<48x128xf32> -> vector<48x128xf32>
    %601 = vector.broadcast %324 : vector<1x128xf32> to vector<48x128xf32>
    %602 = arith.addf %600, %601 : vector<48x128xf32>
    %cst_183 = arith.constant 5.000000e-01 : f32
    %603 = vector.broadcast %cst_183 : f32 to vector<48x128xf32>
    %604 = arith.mulf %603, %602 : vector<48x128xf32>
    %cst_184 = arith.constant 0.707106769 : f32
    %605 = vector.broadcast %cst_184 : f32 to vector<48x128xf32>
    %606 = arith.mulf %602, %605 : vector<48x128xf32>
    %607 = math.erf %606 : vector<48x128xf32>
    %cst_185 = arith.constant 1.000000e+00 : f32
    %608 = vector.broadcast %cst_185 : f32 to vector<48x128xf32>
    %609 = arith.addf %608, %607 : vector<48x128xf32>
    %610 = arith.mulf %604, %609 : vector<48x128xf32>
    %611 = arith.truncf %610 : vector<48x128xf32> to vector<48x128xbf16>
    %612 = arith.truncf %325 : vector<128x32xf32> to vector<128x32xbf16>
    %cst_186 = arith.constant dense<0.000000e+00> : vector<48x32xf32>
    %613 = tpu.matmul %611, %612, %cst_186 {dimension_numbers = #tpu.dot_dimension_numbers<[1], [0], [0], [1], [0, 0, 1, 1], [], []>} : vector<48x128xbf16>, vector<128x32xbf16>, vector<48x32xf32> -> vector<48x32xf32>
    %614 = arith.addf %575, %613 : vector<48x32xf32>
    %615 = vector.broadcast %326 : vector<1x32xf32> to vector<48x32xf32>
    %616 = arith.addf %614, %615 : vector<48x32xf32>
    %617 = vector.extract_strided_slice %616 {offsets = [0, 0], sizes = [1, 32], strides = [1, 1]} : vector<48x32xf32> to vector<1x32xf32>
    %618 = vector.extract_strided_slice %616 {offsets = [24, 0], sizes = [1, 32], strides = [1, 1]} : vector<48x32xf32> to vector<1x32xf32>
    %619 = tpu.concatenate %617, %618 in 0 : vector<1x32xf32>, vector<1x32xf32> -> vector<2x32xf32>
    %c0_187 = arith.constant 0 : index
    %c0_188 = arith.constant 0 : index
    %620 = vector.load %arg27[%c0_187, %c0_188] : memref<1x32xf32, #tpu.memory_space<vmem>>, vector<1x32xf32>
    %c0_189 = arith.constant 0 : index
    %c0_190 = arith.constant 0 : index
    %621 = vector.load %arg28[%c0_189, %c0_190] : memref<1x32xf32, #tpu.memory_space<vmem>>, vector<1x32xf32>
    %cst_191 = arith.constant dense<0.000000e+00> : vector<2xf32>
    %622 = vector.multi_reduction <add>, %619, %cst_191 [1] : vector<2x32xf32> to vector<2xf32>
    %623 = vector.shape_cast %622 : vector<2xf32> to vector<2x1xf32>
    %cst_192 = arith.constant 3.200000e+01 : f32
    %624 = vector.broadcast %cst_192 : f32 to vector<2x1xf32>
    %625 = arith.divf %623, %624 : vector<2x1xf32>
    %626 = vector.broadcast %625 : vector<2x1xf32> to vector<2x32xf32>
    %627 = arith.subf %619, %626 : vector<2x32xf32>
    %628 = arith.mulf %627, %627 : vector<2x32xf32>
    %cst_193 = arith.constant dense<0.000000e+00> : vector<2xf32>
    %629 = vector.multi_reduction <add>, %628, %cst_193 [1] : vector<2x32xf32> to vector<2xf32>
    %630 = vector.shape_cast %629 : vector<2xf32> to vector<2x1xf32>
    %cst_194 = arith.constant 3.200000e+01 : f32
    %631 = vector.broadcast %cst_194 : f32 to vector<2x1xf32>
    %632 = arith.divf %630, %631 : vector<2x1xf32>
    %633 = vector.broadcast %625 : vector<2x1xf32> to vector<2x32xf32>
    %634 = arith.subf %619, %633 : vector<2x32xf32>
    %cst_195 = arith.constant 9.99999997E-7 : f32
    %635 = vector.broadcast %cst_195 : f32 to vector<2x1xf32>
    %636 = arith.addf %632, %635 : vector<2x1xf32>
    %637 = math.rsqrt %636 : vector<2x1xf32>
    %638 = vector.broadcast %637 : vector<2x1xf32> to vector<2x32xf32>
    %639 = arith.mulf %634, %638 : vector<2x32xf32>
    %640 = vector.broadcast %620 : vector<1x32xf32> to vector<2x32xf32>
    %641 = arith.mulf %639, %640 : vector<2x32xf32>
    %642 = vector.broadcast %621 : vector<1x32xf32> to vector<2x32xf32>
    %643 = arith.addf %641, %642 : vector<2x32xf32>
    %c0_196 = arith.constant 0 : index
    %c0_197 = arith.constant 0 : index
    %644 = vector.load %arg29[%c0_196, %c0_197] : memref<32x10xf32, #tpu.memory_space<vmem>>, vector<32x10xf32>
    %645 = arith.truncf %643 : vector<2x32xf32> to vector<2x32xbf16>
    %646 = arith.truncf %644 : vector<32x10xf32> to vector<32x10xbf16>
    %cst_198 = arith.constant dense<0.000000e+00> : vector<2x10xf32>
    %647 = tpu.matmul %645, %646, %cst_198 {dimension_numbers = #tpu.dot_dimension_numbers<[1], [0], [0], [1], [0, 0, 1, 1], [], []>} : vector<2x32xbf16>, vector<32x10xbf16>, vector<2x10xf32> -> vector<2x10xf32>
    %c0_199 = arith.constant 0 : index
    %c0_200 = arith.constant 0 : index
    %648 = vector.load %arg30[%c0_199, %c0_200] : memref<1x10xf32, #tpu.memory_space<vmem>>, vector<1x10xf32>
    %649 = vector.broadcast %648 : vector<1x10xf32> to vector<2x10xf32>
    %650 = arith.addf %647, %649 : vector<2x10xf32>
    %c0_201 = arith.constant 0 : index
    %c0_202 = arith.constant 0 : index
    %651 = vector.load %arg31[%c0_201, %c0_202] : memref<2x10xf32, #tpu.memory_space<vmem>>, vector<2x10xf32>
    tpu.vector_store %arg31[%c0_201, %c0_202], %650 {strides = array<i32>} : memref<2x10xf32, #tpu.memory_space<vmem>>, vector<2x10xf32>,
    return
  }
}

</mosaic_0001>

<llo_original>
// kernel: vit_forward.1
$region0: #{vit_forward.1}
  #allocation0 [shape = 'u32[]', space=smem, size = 0x4, offset = 0x4, fixed_abs, tag = 'smem constant byte address 0x4 - core index']
  #allocation1 [shape = 'u32[72,128]{1,0:T(1,128)}', space=vmem, size = 0x9000, scoped, tag = 'internal scratch']
  %s0 = inlined_call_operand.smem [shape: u32[32], index: -1, kind: input, shape index: {}]
  %s1 = sld [smem:[%s0]]
  %s2 = scalar_lea.smem %s0, 1
  %s3 = sld [smem:[%s2]]
  %s4 = scalar_lea.smem %s0, 2
  %s5 = sld [smem:[%s4]]
  %s6 = scalar_lea.smem %s0, 3
  %s7 = sld [smem:[%s6]]
  %s8 = scalar_lea.smem %s0, 4
  %s9 = sld [smem:[%s8]]
  %s10 = scalar_lea.smem %s0, 5
  %s11 = sld [smem:[%s10]]
  %s12 = scalar_lea.smem %s0, 6
  %s13 = sld [smem:[%s12]]
  %s14 = scalar_lea.smem %s0, 7
  %s15 = sld [smem:[%s14]]
  %s16 = scalar_lea.smem %s0, 8
  %s17 = sld [smem:[%s16]]
  %s18 = scalar_lea.smem %s0, 9
  %s19 = sld [smem:[%s18]]
  %s20 = scalar_lea.smem %s0, 10
  %s21 = sld [smem:[%s20]]
  %s22 = scalar_lea.smem %s0, 11
  %s23 = sld [smem:[%s22]]
  %s24 = scalar_lea.smem %s0, 12
  %s25 = sld [smem:[%s24]]
  %s26 = scalar_lea.smem %s0, 13
  %s27 = sld [smem:[%s26]]
  %s28 = scalar_lea.smem %s0, 14
  %s29 = sld [smem:[%s28]]
  %s30 = scalar_lea.smem %s0, 15
  %s31 = sld [smem:[%s30]]
  %s32 = scalar_lea.smem %s0, 16
  %s33 = sld [smem:[%s32]]
  %s34 = scalar_lea.smem %s0, 17
  %s35 = sld [smem:[%s34]]
  %s36 = scalar_lea.smem %s0, 18
  %s37 = sld [smem:[%s36]]
  %s38 = scalar_lea.smem %s0, 19
  %s39 = sld [smem:[%s38]]
  %s40 = scalar_lea.smem %s0, 20
  %s41 = sld [smem:[%s40]]
  %s42 = scalar_lea.smem %s0, 21
  %s43 = sld [smem:[%s42]]
  %s44 = scalar_lea.smem %s0, 22
  %s45 = sld [smem:[%s44]]
  %s46 = scalar_lea.smem %s0, 23
  %s47 = sld [smem:[%s46]]
  %s48 = scalar_lea.smem %s0, 24
  %s49 = sld [smem:[%s48]]
  %s50 = scalar_lea.smem %s0, 25
  %s51 = sld [smem:[%s50]]
  %s52 = scalar_lea.smem %s0, 26
  %s53 = sld [smem:[%s52]]
  %s54 = scalar_lea.smem %s0, 27
  %s55 = sld [smem:[%s54]]
  %s56 = scalar_lea.smem %s0, 28
  %s57 = sld [smem:[%s56]]
  %s58 = scalar_lea.smem %s0, 29
  %s59 = sld [smem:[%s58]]
  %s60 = scalar_lea.smem %s0, 30
  %s61 = sld [smem:[%s60]]
  %s62 = scalar_lea.smem %s0, 31
  %s63 = sld [smem:[%s62]]
  %s64 = sld [smem:[#allocation0]]
  $region134: #{vit_forward.1} parent=0
    _
  %s66 = ssub.s32 1, %s64
  %s67 = scalar_select 0, %s66, %s64
  $region1: #{vit_forward.1} parent=0
    #allocation2 [shape = 'u8[1024]{0}', space=vmem, size = 0x400, scoped, tag = 'output window, operand 0, single buffered']
    #allocation3 [shape = 's32[1]{0}', space=sflag, size = 0x4, scoped, tag = 'scoped memory for vit_forward.1']
    %68 = vsyncpa [#allocation3], 0
    // Predicated region
    $region2: #{vit_forward.1} parent=1 // pred_check
      _
    $region3: #{vit_forward.1} parent=1 // pred_check_branch
      %70 = sbr.rel (0) target = $region5
    $region4: #{vit_forward.1} parent=1 // pred_region
      _
    $region5: #{vit_forward.1} parent=1 // pred_fallthru
      _
    // Predicated region
    $region6: #{vit_forward.1} parent=1 // pred_check
      _
    $region7: #{vit_forward.1} parent=1 // pred_check_branch
      %72 = sbr.rel (0) target = $region9
    $region8: #{vit_forward.1} parent=1 // pred_region
      _
    $region9: #{vit_forward.1} parent=1 // pred_fallthru
      _
    // Predicated region
    $region10: #{vit_forward.1} parent=1 // pred_check
      _
    $region11: #{vit_forward.1} parent=1 // pred_check_branch
      %74 = sbr.rel (0) target = $region13
    $region12: #{vit_forward.1} parent=1 // pred_region
      _
    $region13: #{vit_forward.1} parent=1 // pred_fallthru
      _
    // Predicated region
    $region14: #{vit_forward.1} parent=1 // pred_check
      _
    $region15: #{vit_forward.1} parent=1 // pred_check_branch
      %76 = sbr.rel (0) target = $region17
    $region16: #{vit_forward.1} parent=1 // pred_region
      _
    $region17: #{vit_forward.1} parent=1 // pred_fallthru
      _
    // Predicated region
    $region18: #{vit_forward.1} parent=1 // pred_check
      _
    $region19: #{vit_forward.1} parent=1 // pred_check_branch
      %78 = sbr.rel (0) target = $region21
    $region20: #{vit_forward.1} parent=1 // pred_region
      _
    $region21: #{vit_forward.1} parent=1 // pred_fallthru
      _
    // Predicated region
    $region22: #{vit_forward.1} parent=1 // pred_check
      _
    $region23: #{vit_forward.1} parent=1 // pred_check_branch
      %80 = sbr.rel (0) target = $region25
    $region24: #{vit_forward.1} parent=1 // pred_region
      _
    $region25: #{vit_forward.1} parent=1 // pred_fallthru
      _
    // Predicated region
    $region26: #{vit_forward.1} parent=1 // pred_check
      _
    $region27: #{vit_forward.1} parent=1 // pred_check_branch
      %82 = sbr.rel (0) target = $region29
    $region28: #{vit_forward.1} parent=1 // pred_region
      _
    $region29: #{vit_forward.1} parent=1 // pred_fallthru
      _
    // Predicated region
    $region30: #{vit_forward.1} parent=1 // pred_check
      _
    $region31: #{vit_forward.1} parent=1 // pred_check_branch
      %84 = sbr.rel (0) target = $region33
    $region32: #{vit_forward.1} parent=1 // pred_region
      _
    $region33: #{vit_forward.1} parent=1 // pred_fallthru
      _
    // Predicated region
    $region34: #{vit_forward.1} parent=1 // pred_check
      _
    $region35: #{vit_forward.1} parent=1 // pred_check_branch
      %86 = sbr.rel (0) target = $region37
    $region36: #{vit_forward.1} parent=1 // pred_region
      _
    $region37: #{vit_forward.1} parent=1 // pred_fallthru
      _
    // Predicated region
    $region38: #{vit_forward.1} parent=1 // pred_check
      _
    $region39: #{vit_forward.1} parent=1 // pred_check_branch
      %88 = sbr.rel (0) target = $region41
    $region40: #{vit_forward.1} parent=1 // pred_region
      _
    $region41: #{vit_forward.1} parent=1 // pred_fallthru
      _
    // Predicated region
    $region42: #{vit_forward.1} parent=1 // pred_check
      _
    $region43: #{vit_forward.1} parent=1 // pred_check_branch
      %90 = sbr.rel (0) target = $region45
    $region44: #{vit_forward.1} parent=1 // pred_region
      _
    $region45: #{vit_forward.1} parent=1 // pred_fallthru
      _
    // Predicated region
    $region46: #{vit_forward.1} parent=1 // pred_check
      _
    $region47: #{vit_forward.1} parent=1 // pred_check_branch
      %92 = sbr.rel (0) target = $region49
    $region48: #{vit_forward.1} parent=1 // pred_region
      _
    $region49: #{vit_forward.1} parent=1 // pred_fallthru
      _
    // Predicated region
    $region50: #{vit_forward.1} parent=1 // pred_check
      _
    $region51: #{vit_forward.1} parent=1 // pred_check_branch
      %94 = sbr.rel (0) target = $region53
    $region52: #{vit_forward.1} parent=1 // pred_region
      _
    $region53: #{vit_forward.1} parent=1 // pred_fallthru
      _
    // Predicated region
    $region54: #{vit_forward.1} parent=1 // pred_check
      _
    $region55: #{vit_forward.1} parent=1 // pred_check_branch
      %96 = sbr.rel (0) target = $region57
    $region56: #{vit_forward.1} parent=1 // pred_region
      _
    $region57: #{vit_forward.1} parent=1 // pred_fallthru
      _
    // Predicated region
    $region58: #{vit_forward.1} parent=1 // pred_check
      _
    $region59: #{vit_forward.1} parent=1 // pred_check_branch
      %98 = sbr.rel (0) target = $region61
    $region60: #{vit_forward.1} parent=1 // pred_region
      _
    $region61: #{vit_forward.1} parent=1 // pred_fallthru
      _
    // Predicated region
    $region62: #{vit_forward.1} parent=1 // pred_check
      _
    $region63: #{vit_forward.1} parent=1 // pred_check_branch
      %100 = sbr.rel (0) target = $region65
    $region64: #{vit_forward.1} parent=1 // pred_region
      _
    $region65: #{vit_forward.1} parent=1 // pred_fallthru
      _
    // Predicated region
    $region66: #{vit_forward.1} parent=1 // pred_check
      _
    $region67: #{vit_forward.1} parent=1 // pred_check_branch
      %102 = sbr.rel (0) target = $region69
    $region68: #{vit_forward.1} parent=1 // pred_region
      _
    $region69: #{vit_forward.1} parent=1 // pred_fallthru
      _
    // Predicated region
    $region70: #{vit_forward.1} parent=1 // pred_check
      _
    $region71: #{vit_forward.1} parent=1 // pred_check_branch
      %104 = sbr.rel (0) target = $region73
    $region72: #{vit_forward.1} parent=1 // pred_region
      _
    $region73: #{vit_forward.1} parent=1 // pred_fallthru
      _
    // Predicated region
    $region74: #{vit_forward.1} parent=1 // pred_check
      _
    $region75: #{vit_forward.1} parent=1 // pred_check_branch
      %106 = sbr.rel (0) target = $region77
    $region76: #{vit_forward.1} parent=1 // pred_region
      _
    $region77: #{vit_forward.1} parent=1 // pred_fallthru
      _
    // Predicated region
    $region78: #{vit_forward.1} parent=1 // pred_check
      _
    $region79: #{vit_forward.1} parent=1 // pred_check_branch
      %108 = sbr.rel (0) target = $region81
    $region80: #{vit_forward.1} parent=1 // pred_region
      _
    $region81: #{vit_forward.1} parent=1 // pred_fallthru
      _
    // Predicated region
    $region82: #{vit_forward.1} parent=1 // pred_check
      _
    $region83: #{vit_forward.1} parent=1 // pred_check_branch
      %110 = sbr.rel (0) target = $region85
    $region84: #{vit_forward.1} parent=1 // pred_region
      _
    $region85: #{vit_forward.1} parent=1 // pred_fallthru
      _
    // Predicated region
    $region86: #{vit_forward.1} parent=1 // pred_check
      _
    $region87: #{vit_forward.1} parent=1 // pred_check_branch
      %112 = sbr.rel (0) target = $region89
    $region88: #{vit_forward.1} parent=1 // pred_region
      _
    $region89: #{vit_forward.1} parent=1 // pred_fallthru
      _
    // Predicated region
    $region90: #{vit_forward.1} parent=1 // pred_check
      _
    $region91: #{vit_forward.1} parent=1 // pred_check_branch
      %114 = sbr.rel (0) target = $region93
    $region92: #{vit_forward.1} parent=1 // pred_region
      _
    $region93: #{vit_forward.1} parent=1 // pred_fallthru
      _
    // Predicated region
    $region94: #{vit_forward.1} parent=1 // pred_check
      _
    $region95: #{vit_forward.1} parent=1 // pred_check_branch
      %116 = sbr.rel (0) target = $region97
    $region96: #{vit_forward.1} parent=1 // pred_region
      _
    $region97: #{vit_forward.1} parent=1 // pred_fallthru
      _
    // Predicated region
    $region98: #{vit_forward.1} parent=1 // pred_check
      _
    $region99: #{vit_forward.1} parent=1 // pred_check_branch
      %118 = sbr.rel (0) target = $region101
    $region100: #{vit_forward.1} parent=1 // pred_region
      _
    $region101: #{vit_forward.1} parent=1 // pred_fallthru
      _
    // Predicated region
    $region102: #{vit_forward.1} parent=1 // pred_check
      _
    $region103: #{vit_forward.1} parent=1 // pred_check_branch
      %120 = sbr.rel (0) target = $region105
    $region104: #{vit_forward.1} parent=1 // pred_region
      _
    $region105: #{vit_forward.1} parent=1 // pred_fallthru
      _
    // Predicated region
    $region106: #{vit_forward.1} parent=1 // pred_check
      _
    $region107: #{vit_forward.1} parent=1 // pred_check_branch
      %122 = sbr.rel (0) target = $region109
    $region108: #{vit_forward.1} parent=1 // pred_region
      _
    $region109: #{vit_forward.1} parent=1 // pred_fallthru
      _
    // Predicated region
    $region110: #{vit_forward.1} parent=1 // pred_check
      _
    $region111: #{vit_forward.1} parent=1 // pred_check_branch
      %124 = sbr.rel (0) target = $region113
    $region112: #{vit_forward.1} parent=1 // pred_region
      _
    $region113: #{vit_forward.1} parent=1 // pred_fallthru
      _
    // Predicated region
    $region114: #{vit_forward.1} parent=1 // pred_check
      _
    $region115: #{vit_forward.1} parent=1 // pred_check_branch
      %126 = sbr.rel (0) target = $region117
    $region116: #{vit_forward.1} parent=1 // pred_region
      _
    $region117: #{vit_forward.1} parent=1 // pred_fallthru
      _
    // Predicated region
    $region118: #{vit_forward.1} parent=1 // pred_check
      _
    $region119: #{vit_forward.1} parent=1 // pred_check_branch
      %128 = sbr.rel (0) target = $region121
    $region120: #{vit_forward.1} parent=1 // pred_region
      _
    $region121: #{vit_forward.1} parent=1 // pred_fallthru
      _
    // Predicated region
    $region122: #{vit_forward.1} parent=1 // pred_check
      _
    $region123: #{vit_forward.1} parent=1 // pred_check_branch
      %130 = sbr.rel (0) target = $region125
    $region124: #{vit_forward.1} parent=1 // pred_region
      _
    $region125: #{vit_forward.1} parent=1 // pred_fallthru
      _
    %v132 = vlaneseq
    %v133 = vand.u32 %v132, 127
    %vm134 = vcmp.lt.s32.totalorder %v133, 17
    %v135 = vsel %vm134, 0.0, -1e+30
    %v136 = vld [vmem:[%s1] sm:$0xff]
    %v137 = vld [vmem:[%s1 + $0x8] sm:$0xff]
    %v138 = vld [vmem:[%s1 + $0x10] sm:$0xff]
    %v139 = vld [vmem:[%s1 + $0x18] sm:$0xff]
    %v140 = vld [vmem:[%s1 + $0x20] sm:$0xff]
    %v141 = vld [vmem:[%s1 + $0x28] sm:$0xff]
    %v142 = vld [vmem:[%s3] sm:$0xff]
    %v143 = vld [vmem:[%s3 + $0x8] sm:$0xff]
    %v144 = vld [vmem:[%s3 + $0x10] sm:$0xff]
    %v145 = vld [vmem:[%s3 + $0x18] sm:$0xff]
    %v146 = vld [vmem:[%s3 + $0x20] sm:$0xff]
    %v147 = vld [vmem:[%s3 + $0x28] sm:$0xff]
    %v148 = vpack.c.bf16 %v137, %v136
    %v149 = vpack.c.bf16 %v139, %v138
    %v150 = vpack.c.bf16 %v141, %v140
    %v151 = vpack.c.bf16 %v143, %v142
    %v152 = vpack.c.bf16 %v145, %v144
    %v153 = vpack.c.bf16 %v147, %v146
    %v154 = vld [vmem:[%s5] sm:$0xff]
    %v155 = vld [vmem:[%s5 + $0x8] sm:$0xff]
    %v156 = vld [vmem:[%s5 + $0x10] sm:$0xff]
    %v157 = vld [vmem:[%s5 + $0x18] sm:$0xff]
    %v158 = vld [vmem:[%s5 + $0x20] sm:$0xff]
    %v159 = vld [vmem:[%s5 + $0x28] sm:$0xff]
    %vm160 = vcmask 392192
    %v162 = vsel %vm160, %v148, 0
    %v165 = vsel %vm160, %v149, 0
    %v168 = vsel %vm160, %v150, 0
    %170 = vmatpush.bf16.msra.mxu0 0
    %171 = vmatpush.bf16.msra.mxu0 0
    %172 = vmatpush.bf16.msra.mxu0 0
    %173 = vmatpush.bf16.msra.mxu0 0
    %174 = vmatpush.bf16.msra.mxu0 0
    %175 = vmatpush.bf16.msra.mxu0 %v153
    %176 = vmatpush.bf16.msra.mxu0 %v152
    %177 = vmatpush.bf16.msra.mxu0 %v151
    %178 = vmatmul.bf16.gmra.mxu0 %v162
    %v179 = vpop.f32.mrf.mxu0
    %v180 = vadd.f32 %v154, %v179
    %v181 = vpop.f32.mrf.mxu0
    %v182 = vadd.f32 %v155, %v181
    %183 = vmatmul.bf16.gmra.mxu0 %v165
    %v184 = vpop.f32.mrf.mxu0
    %v185 = vadd.f32 %v156, %v184
    %v186 = vpop.f32.mrf.mxu0
    %v187 = vadd.f32 %v157, %v186
    %188 = vmatmul.bf16.gmra.mxu0 %v168
    %v189 = vpop.f32.mrf.mxu0
    %v190 = vadd.f32 %v158, %v189
    %v191 = vpop.f32.mrf.mxu0
    %v192 = vadd.f32 %v159, %v191
    %193 = vdwg.mxu0
    %v194 = vld [vmem:[%s7] sm:$0x1]
    %v195 = vld [vmem:[%s9] sm:$0x1]
    %v196 = vld [vmem:[%s11] sm:$0xff]
    %v197 = vld [vmem:[%s11 + $0x8] sm:$0xff]
    %v198 = vld [vmem:[%s11 + $0x10] sm:$0xff]
    %v199 = vld [vmem:[%s11 + $0x18] sm:$0xff]
    %v200 = vld [vmem:[%s13] sm:$0x1]
    %v201 = vld [vmem:[%s15] sm:$0xff]
    %v202 = vld [vmem:[%s15 + $0x8] sm:$0xff]
    %v203 = vld [vmem:[%s15 + $0x10] sm:$0xff]
    %v204 = vld [vmem:[%s15 + $0x18] sm:$0xff]
    %v205 = vld [vmem:[%s17] sm:$0x1]
    %v206 = vld [vmem:[%s19] sm:$0x1]
    %v207 = vld [vmem:[%s21] sm:$0x1]
    %v208 = vld [vmem:[%s23] sm:$0xff]
    %v209 = vld [vmem:[%s23 + $0x8] sm:$0xff]
    %v210 = vld [vmem:[%s23 + $0x10] sm:$0xff]
    %v211 = vld [vmem:[%s23 + $0x18] sm:$0xff]
    %v212 = vld [vmem:[%s25] sm:$0x1]
    %v213 = vld [vmem:[%s27] sm:$0xff]
    %v214 = vld [vmem:[%s27 + $0x8] sm:$0xff]
    %v215 = vld [vmem:[%s27 + $0x10] sm:$0xff]
    %v216 = vld [vmem:[%s27 + $0x18] sm:$0xff]
    %v217 = vld [vmem:[%s27 + $0x20] sm:$0xff]
    %v218 = vld [vmem:[%s27 + $0x28] sm:$0xff]
    %v219 = vld [vmem:[%s27 + $0x30] sm:$0xff]
    %v220 = vld [vmem:[%s27 + $0x38] sm:$0xff]
    %v221 = vld [vmem:[%s27 + $0x40] sm:$0xff]
    %v222 = vld [vmem:[%s27 + $0x48] sm:$0xff]
    %v223 = vld [vmem:[%s27 + $0x50] sm:$0xff]
    %v224 = vld [vmem:[%s27 + $0x58] sm:$0xff]
    %v225 = vld [vmem:[%s27 + $0x60] sm:$0xff]
    %v226 = vld [vmem:[%s27 + $0x68] sm:$0xff]
    %v227 = vld [vmem:[%s27 + $0x70] sm:$0xff]
    %v228 = vld [vmem:[%s27 + $0x78] sm:$0xff]
    %v229 = vld [vmem:[%s29] sm:$0x1]
    %vm230 = vcmask 261120
    %v231 = vsel %vm230, %v180, 0.0
    %232 = vadd.xlane.f32.xlu0 %v231
    %v233 = vpop.xlane.xlu0 %232
    %v234 = vsel %vm230, %v182, 0.0
    %235 = vadd.xlane.f32.xlu0 %v234
    %v236 = vpop.xlane.xlu0 %235
    %v237 = vsel %vm230, %v185, 0.0
    %238 = vadd.xlane.f32.xlu0 %v237
    %v239 = vpop.xlane.xlu0 %238
    %v240 = vsel %vm230, %v187, 0.0
    %241 = vadd.xlane.f32.xlu0 %v240
    %v242 = vpop.xlane.xlu0 %241
    %v243 = vsel %vm230, %v190, 0.0
    %244 = vadd.xlane.f32.xlu0 %v243
    %v245 = vpop.xlane.xlu0 %244
    %v246 = vsel %vm230, %v192, 0.0
    %247 = vadd.xlane.f32.xlu0 %v246
    %v248 = vpop.xlane.xlu0 %247
    %v249 = vrcp.pop 32.0
    %v250 = vmul.f32 32.0, %v249
    %v251 = vsub.f32 1.0, %v250
    %v252 = vmul.f32 %v249, %v251
    %v253 = vadd.f32 %v249, %v252
    %vm254 = vweird.f32 %v249
    %v255 = vsel %vm254, %v249, %v253
    %v256 = vmul.f32 %v233, %v255
    %v257 = vmul.f32 %v236, %v255
    %v258 = vmul.f32 %v239, %v255
    %v259 = vmul.f32 %v242, %v255
    %v260 = vmul.f32 %v245, %v255
    %v261 = vmul.f32 %v248, %v255
    %v262 = vsub.f32 %v180, %v256
    %v263 = vsub.f32 %v182, %v257
    %v264 = vsub.f32 %v185, %v258
    %v265 = vsub.f32 %v187, %v259
    %v266 = vsub.f32 %v190, %v260
    %v267 = vsub.f32 %v192, %v261
    %v268 = vmul.f32 %v262, %v262
    %v269 = vmul.f32 %v263, %v263
    %v270 = vmul.f32 %v264, %v264
    %v271 = vmul.f32 %v265, %v265
    %v272 = vmul.f32 %v266, %v266
    %v273 = vmul.f32 %v267, %v267
    %v274 = vsel %vm230, %v268, 0.0
    %275 = vadd.xlane.f32.xlu0 %v274
    %v276 = vpop.xlane.xlu0 %275
    %v277 = vsel %vm230, %v269, 0.0
    %278 = vadd.xlane.f32.xlu0 %v277
    %v279 = vpop.xlane.xlu0 %278
    %v280 = vsel %vm230, %v270, 0.0
    %281 = vadd.xlane.f32.xlu0 %v280
    %v282 = vpop.xlane.xlu0 %281
    %v283 = vsel %vm230, %v271, 0.0
    %284 = vadd.xlane.f32.xlu0 %v283
    %v285 = vpop.xlane.xlu0 %284
    %v286 = vsel %vm230, %v272, 0.0
    %287 = vadd.xlane.f32.xlu0 %v286
    %v288 = vpop.xlane.xlu0 %287
    %v289 = vsel %vm230, %v273, 0.0
    %290 = vadd.xlane.f32.xlu0 %v289
    %v291 = vpop.xlane.xlu0 %290
    %v292 = vmul.f32 %v276, %v255
    %v293 = vmul.f32 %v279, %v255
    %v294 = vmul.f32 %v282, %v255
    %v295 = vmul.f32 %v285, %v255
    %v296 = vmul.f32 %v288, %v255
    %v297 = vmul.f32 %v291, %v255
    %v298 = vadd.f32 %v292, 1e-06
    %v299 = vadd.f32 %v293, 1e-06
    %v300 = vadd.f32 %v294, 1e-06
    %v301 = vadd.f32 %v295, 1e-06
    %v302 = vadd.f32 %v296, 1e-06
    %v303 = vadd.f32 %v297, 1e-06
    %v304 = vrsqrt.pop %v298
    %v305 = vmul.f32 %v304, %v298
    %v306 = vmul.f32 %v305, %v304
    %v307 = vmul.f32 0.5, %v306
    %v308 = vsub.f32 1.5, %v307
    %v309 = vmul.f32 %v304, %v308
    %vm310 = vweird.f32 %v298
    %vm311 = vweird.f32 %v304
    %vm312 = vmor %vm310, %vm311
    %v313 = vsel %vm312, %v304, %v309
    %v314 = vrsqrt.pop %v299
    %v315 = vmul.f32 %v314, %v299
    %v316 = vmul.f32 %v315, %v314
    %v317 = vmul.f32 0.5, %v316
    %v318 = vsub.f32 1.5, %v317
    %v319 = vmul.f32 %v314, %v318
    %vm320 = vweird.f32 %v299
    %vm321 = vweird.f32 %v314
    %vm322 = vmor %vm320, %vm321
    %v323 = vsel %vm322, %v314, %v319
    %v324 = vrsqrt.pop %v300
    %v325 = vmul.f32 %v324, %v300
    %v326 = vmul.f32 %v325, %v324
    %v327 = vmul.f32 0.5, %v326
    %v328 = vsub.f32 1.5, %v327
    %v329 = vmul.f32 %v324, %v328
    %vm330 = vweird.f32 %v300
    %vm331 = vweird.f32 %v324
    %vm332 = vmor %vm330, %vm331
    %v333 = vsel %vm332, %v324, %v329
    %v334 = vrsqrt.pop %v301
    %v335 = vmul.f32 %v334, %v301
    %v336 = vmul.f32 %v335, %v334
    %v337 = vmul.f32 0.5, %v336
    %v338 = vsub.f32 1.5, %v337
    %v339 = vmul.f32 %v334, %v338
    %vm340 = vweird.f32 %v301
    %vm341 = vweird.f32 %v334
    %vm342 = vmor %vm340, %vm341
    %v343 = vsel %vm342, %v334, %v339
    %v344 = vrsqrt.pop %v302
    %v345 = vmul.f32 %v344, %v302
    %v346 = vmul.f32 %v345, %v344
    %v347 = vmul.f32 0.5, %v346
    %v348 = vsub.f32 1.5, %v347
    %v349 = vmul.f32 %v344, %v348
    %vm350 = vweird.f32 %v302
    %vm351 = vweird.f32 %v344
    %vm352 = vmor %vm350, %vm351
    %v353 = vsel %vm352, %v344, %v349
    %v354 = vrsqrt.pop %v303
    %v355 = vmul.f32 %v354, %v303
    %v356 = vmul.f32 %v355, %v354
    %v357 = vmul.f32 0.5, %v356
    %v358 = vsub.f32 1.5, %v357
    %v359 = vmul.f32 %v354, %v358
    %vm360 = vweird.f32 %v303
    %vm361 = vweird.f32 %v354
    %vm362 = vmor %vm360, %vm361
    %v363 = vsel %vm362, %v354, %v359
    %v364 = vmul.f32 %v262, %v313
    %v365 = vmul.f32 %v263, %v323
    %v366 = vmul.f32 %v264, %v333
    %v367 = vmul.f32 %v265, %v343
    %v368 = vmul.f32 %v266, %v353
    %v369 = vmul.f32 %v267, %v363
    %v371 = vperm.slane %v194, 0
    %v373 = vmul.f32 %v364, %v371
    %v374 = vmul.f32 %v365, %v371
    %v375 = vmul.f32 %v366, %v371
    %v376 = vmul.f32 %v367, %v371
    %v377 = vmul.f32 %v368, %v371
    %v378 = vmul.f32 %v369, %v371
    %v380 = vperm.slane %v195, 0
    %v382 = vadd.f32 %v373, %v380
    %v383 = vadd.f32 %v374, %v380
    %v384 = vadd.f32 %v375, %v380
    %v385 = vadd.f32 %v376, %v380
    %v386 = vadd.f32 %v377, %v380
    %v387 = vadd.f32 %v378, %v380
    %v388 = vpack.c.bf16 %v383, %v382
    %v389 = vpack.c.bf16 %v385, %v384
    %v390 = vpack.c.bf16 %v387, %v386
    %v391 = vpack.c.bf16 %v197, %v196
    %v392 = vpack.c.bf16 %v199, %v198
    %v394 = vperm.slane %v200, 0
    %v397 = vsel %vm230, %v388, 0
    %v400 = vsel %vm230, %v389, 0
    %v403 = vsel %vm230, %v390, 0
    %405 = vmatpush.bf16.msra.mxu0 0
    %406 = vmatpush.bf16.msra.mxu0 0
    %407 = vmatpush.bf16.msra.mxu0 0
    %408 = vmatpush.bf16.msra.mxu0 0
    %409 = vmatpush.bf16.msra.mxu0 0
    %410 = vmatpush.bf16.msra.mxu0 0
    %411 = vmatpush.bf16.msra.mxu0 %v392
    %412 = vmatpush.bf16.msra.mxu0 %v391
    %413 = vmatmul.bf16.gmra.mxu0 %v397
    %v414 = vpop.f32.mrf.mxu0
    %v415 = vadd.f32 %v394, %v414
    %v416 = vpop.f32.mrf.mxu0
    %v417 = vadd.f32 %v394, %v416
    %418 = vmatmul.bf16.gmra.mxu0 %v400
    %v419 = vpop.f32.mrf.mxu0
    %v420 = vadd.f32 %v394, %v419
    %v421 = vpop.f32.mrf.mxu0
    %v422 = vadd.f32 %v394, %v421
    %423 = vmatmul.bf16.gmra.mxu0 %v403
    %v424 = vpop.f32.mrf.mxu0
    %v425 = vadd.f32 %v394, %v424
    %v426 = vpop.f32.mrf.mxu0
    %v427 = vadd.f32 %v394, %v426
    %428 = vdwg.mxu0
    %432 = vrot.lane.b32.xlu0 %v415, 96
    %v433 = vpop.permute.xlu0 %432
    %434 = vrot.lane.b32.xlu0 %v417, 96
    %v435 = vpop.permute.xlu0 %434
    %436 = vrot.lane.b32.xlu0 %v420, 96
    %v437 = vpop.permute.xlu0 %436
    %441 = vxpose.xlu0.b32.start [1/16] %v433, 128
    %442 = vxpose.xlu0.b32.cont [2/16] %v435, 128
    %443 = vxpose.xlu0.b32.cont [3/16] %v437, 128
    %444 = vxpose.xlu0.b32.cont [4/16] 0.0, 128
    %445 = vxpose.xlu0.b32.cont [5/16] 0.0, 128
    %446 = vxpose.xlu0.b32.cont [6/16] 0.0, 128
    %447 = vxpose.xlu0.b32.cont [7/16] 0.0, 128
    %448 = vxpose.xlu0.b32.cont [8/16] 0.0, 128
    %449 = vxpose.xlu0.b32.cont [9/16] 0.0, 128
    %450 = vxpose.xlu0.b32.cont [10/16] 0.0, 128
    %451 = vxpose.xlu0.b32.cont [11/16] 0.0, 128
    %452 = vxpose.xlu0.b32.cont [12/16] 0.0, 128
    %453 = vxpose.xlu0.b32.cont [13/16] 0.0, 128
    %454 = vxpose.xlu0.b32.cont [14/16] 0.0, 128
    %455 = vxpose.xlu0.b32.cont [15/16] 0.0, 128
    %456 = vxpose.xlu0.b32.end [16/16] 0.0, 128
    %v457 = vpop.trf.xlu0
    %v458 = vpop.trf.xlu0
    %v459 = vpop.trf.xlu0
    %v460 = vpop.trf.xlu0
    %v461 = vpop.trf.xlu0
    %v462 = vpop.trf.xlu0
    %v463 = vpop.trf.xlu0
    %v464 = vpop.trf.xlu0
    %v465 = vpop.trf.xlu0
    %v466 = vpop.trf.xlu0
    %v467 = vpop.trf.xlu0
    %v468 = vpop.trf.xlu0
    %v469 = vpop.trf.xlu0
    %v470 = vpop.trf.xlu0
    %v471 = vpop.trf.xlu0
    %v472 = vpop.trf.xlu0
    %v473 = vpack.c.bf16 %v417, %v415
    %v474 = vpack.c.bf16 %v420, %v420
    %v475 = vpack.c.bf16 %v457, %v457
    %vm476 = vcmask 64512
    %v478 = vsel %vm476, %v473, 0
    %v481 = vsel %vm476, %v474, 0
    %vm483 = vcmask 1043456
    %v485 = vsel %vm483, %v475, 0
    %487 = vmatpush.bf16.msra.mxu0 0
    %488 = vmatpush.bf16.msra.mxu0 0
    %489 = vmatpush.bf16.msra.mxu0 0
    %490 = vmatpush.bf16.msra.mxu0 0
    %491 = vmatpush.bf16.msra.mxu0 0
    %492 = vmatpush.bf16.msra.mxu0 0
    %493 = vmatpush.bf16.msra.mxu0 0
    %494 = vmatpush.bf16.msra.mxu0 %v485
    %495 = vmatmul.bf16.gmra.mxu0 %v478
    %v496 = vpop.f32.mrf.mxu0
    %v497 = vadd.f32 0.0, %v496
    %v498 = vpop.f32.mrf.mxu0
    %v499 = vadd.f32 0.0, %v498
    %500 = vmatmul.bf16.gmra.mxu0 %v481
    %v501 = vpop.f32.mrf.mxu0
    %v502 = vadd.f32 0.0, %v501
    %v503 = vpop.f32.mrf.mxu0
    %504 = vdwg.mxu0
    %v505 = vmul.f32 %v497, 0.35355338
    %v506 = vmul.f32 %v499, 0.35355338
    %v507 = vmul.f32 %v502, 0.35355338
    %v508 = vadd.f32 %v505, %v135
    %v509 = vadd.f32 %v506, %v135
    %v510 = vadd.f32 %v507, %v135
    %vm511 = vcmask 195584
    %v512 = vsel %vm511, %v508, -inf
    %513 = vmax.xlane.f32.xlu0 %v512
    %v514 = vpop.xlane.xlu0 %513
    %v515 = vsel %vm511, %v509, -inf
    %516 = vmax.xlane.f32.xlu0 %v515
    %v517 = vpop.xlane.xlu0 %516
    %v518 = vsel %vm511, %v510, -inf
    %519 = vmax.xlane.f32.xlu0 %v518
    %v520 = vpop.xlane.xlu0 %519
    %v521 = vsub.f32 %v508, %v514
    %v522 = vsub.f32 %v509, %v517
    %v523 = vsub.f32 %v510, %v520
    %v524 = vmul.f32 %v521, 1.442695
    %v525 = vpow.pop %v524
    %v526 = vmul.f32 %v522, 1.442695
    %v527 = vpow.pop %v526
    %v528 = vmul.f32 %v523, 1.442695
    %v529 = vpow.pop %v528
    %v530 = vsel %vm511, %v525, 0.0
    %531 = vadd.xlane.f32.xlu0 %v530
    %v532 = vpop.xlane.xlu0 %531
    %v533 = vsel %vm511, %v527, 0.0
    %534 = vadd.xlane.f32.xlu0 %v533
    %v535 = vpop.xlane.xlu0 %534
    %v536 = vsel %vm511, %v529, 0.0
    %537 = vadd.xlane.f32.xlu0 %v536
    %v538 = vpop.xlane.xlu0 %537
    %v539 = vrcp.pop %v532
    %v540 = vmul.f32 %v532, %v539
    %v541 = vsub.f32 1.0, %v540
    %v542 = vmul.f32 %v539, %v541
    %v543 = vadd.f32 %v539, %v542
    %vm544 = vweird.f32 %v532
    %vm545 = vweird.f32 %v539
    %vm546 = vmor %vm544, %vm545
    %v547 = vsel %vm546, %v539, %v543
    %v548 = vand.u32 2147483647, %v532
    %vm549 = vcmp.eq.f32.partialorder %v548, 8.507059e+37
    %v550 = vand.u32 %v532, 2147483648
    %v551 = vor.u32 1.1754944e-38, %v550
    %v552 = vsel %vm549, %v551, %v547
    %v553 = vmul.f32 %v525, %v552
    %v554 = vrcp.pop %v535
    %v555 = vmul.f32 %v535, %v554
    %v556 = vsub.f32 1.0, %v555
    %v557 = vmul.f32 %v554, %v556
    %v558 = vadd.f32 %v554, %v557
    %vm559 = vweird.f32 %v535
    %vm560 = vweird.f32 %v554
    %vm561 = vmor %vm559, %vm560
    %v562 = vsel %vm561, %v554, %v558
    %v563 = vand.u32 2147483647, %v535
    %vm564 = vcmp.eq.f32.partialorder %v563, 8.507059e+37
    %v565 = vand.u32 %v535, 2147483648
    %v566 = vor.u32 1.1754944e-38, %v565
    %v567 = vsel %vm564, %v566, %v562
    %v568 = vmul.f32 %v527, %v567
    %v569 = vrcp.pop %v538
    %v570 = vmul.f32 %v538, %v569
    %v571 = vsub.f32 1.0, %v570
    %v572 = vmul.f32 %v569, %v571
    %v573 = vadd.f32 %v569, %v572
    %vm574 = vweird.f32 %v538
    %vm575 = vweird.f32 %v569
    %vm576 = vmor %vm574, %vm575
    %v577 = vsel %vm576, %v569, %v573
    %v578 = vand.u32 2147483647, %v538
    %vm579 = vcmp.eq.f32.partialorder %v578, 8.507059e+37
    %v580 = vand.u32 %v538, 2147483648
    %v581 = vor.u32 1.1754944e-38, %v580
    %v582 = vsel %vm579, %v581, %v577
    %v583 = vmul.f32 %v529, %v582
    %v584 = vpack.c.bf16 %v568, %v553
    %v585 = vpack.c.bf16 %v583, %v583
    %588 = vrot.lane.b32.xlu0 %v473, 64
    %v589 = vpop.permute.xlu0 %588
    %590 = vrot.lane.b32.xlu0 %v474, 64
    %v591 = vpop.permute.xlu0 %590
    %v594 = vsel %vm511, %v584, 0
    %v597 = vsel %vm511, %v585, 0
    %v600 = vsel %vm483, %v591, 0
    %602 = vmatpush.bf16.msra.mxu0 0
    %603 = vmatpush.bf16.msra.mxu0 0
    %604 = vmatpush.bf16.msra.mxu0 0
    %605 = vmatpush.bf16.msra.mxu0 0
    %606 = vmatpush.bf16.msra.mxu0 0
    %607 = vmatpush.bf16.msra.mxu0 0
    %608 = vmatpush.bf16.msra.mxu0 %v600
    %609 = vmatpush.bf16.msra.mxu0 %v589
    %610 = vmatmul.bf16.gmra.mxu0 %v594
    %v611 = vpop.f32.mrf.mxu0
    %v612 = vadd.f32 0.0, %v611
    %v613 = vpop.f32.mrf.mxu0
    %v614 = vadd.f32 0.0, %v613
    %615 = vmatmul.bf16.gmra.mxu0 %v597
    %v616 = vpop.f32.mrf.mxu0
    %v617 = vadd.f32 0.0, %v616
    %v618 = vpop.f32.mrf.mxu0
    %619 = vdwg.mxu0
    %v620 = vpack.c.bf16 %v614, %v612
    %v621 = vpack.c.bf16 %v617, %v617
    %v622 = vpack.c.bf16 %v201, %v201
    %623 = vrot.lane.b32.xlu0 %v415, 88
    %v624 = vpop.permute.xlu0 %623
    %625 = vrot.lane.b32.xlu0 %v417, 88
    %v626 = vpop.permute.xlu0 %625
    %627 = vrot.lane.b32.xlu0 %v420, 88
    %v628 = vpop.permute.xlu0 %627
    %632 = vxpose.xlu0.b32.start [1/16] %v624, 128
    %633 = vxpose.xlu0.b32.cont [2/16] %v626, 128
    %634 = vxpose.xlu0.b32.cont [3/16] %v628, 128
    %635 = vxpose.xlu0.b32.cont [4/16] 0.0, 128
    %636 = vxpose.xlu0.b32.cont [5/16] 0.0, 128
    %637 = vxpose.xlu0.b32.cont [6/16] 0.0, 128
    %638 = vxpose.xlu0.b32.cont [7/16] 0.0, 128
    %639 = vxpose.xlu0.b32.cont [8/16] 0.0, 128
    %640 = vxpose.xlu0.b32.cont [9/16] 0.0, 128
    %641 = vxpose.xlu0.b32.cont [10/16] 0.0, 128
    %642 = vxpose.xlu0.b32.cont [11/16] 0.0, 128
    %643 = vxpose.xlu0.b32.cont [12/16] 0.0, 128
    %644 = vxpose.xlu0.b32.cont [13/16] 0.0, 128
    %645 = vxpose.xlu0.b32.cont [14/16] 0.0, 128
    %646 = vxpose.xlu0.b32.cont [15/16] 0.0, 128
    %647 = vxpose.xlu0.b32.end [16/16] 0.0, 128
    %v648 = vpop.trf.xlu0
    %v649 = vpop.trf.xlu0
    %v650 = vpop.trf.xlu0
    %v651 = vpop.trf.xlu0
    %v652 = vpop.trf.xlu0
    %v653 = vpop.trf.xlu0
    %v654 = vpop.trf.xlu0
    %v655 = vpop.trf.xlu0
    %v656 = vpop.trf.xlu0
    %v657 = vpop.trf.xlu0
    %v658 = vpop.trf.xlu0
    %v659 = vpop.trf.xlu0
    %v660 = vpop.trf.xlu0
    %v661 = vpop.trf.xlu0
    %v662 = vpop.trf.xlu0
    %v663 = vpop.trf.xlu0
    %v664 = vpack.c.bf16 %v648, %v648
    %665 = vrot.lane.b32.xlu0 %v473, 120
    %v666 = vpop.permute.xlu0 %665
    %667 = vrot.lane.b32.xlu0 %v474, 120
    %v668 = vpop.permute.xlu0 %667
    %v670 = vsel %vm476, %v666, 0
    %v673 = vsel %vm476, %v668, 0
    %v676 = vsel %vm483, %v664, 0
    %678 = vmatpush.bf16.msra.mxu0 0
    %679 = vmatpush.bf16.msra.mxu0 0
    %680 = vmatpush.bf16.msra.mxu0 0
    %681 = vmatpush.bf16.msra.mxu0 0
    %682 = vmatpush.bf16.msra.mxu0 0
    %683 = vmatpush.bf16.msra.mxu0 0
    %684 = vmatpush.bf16.msra.mxu0 0
    %685 = vmatpush.bf16.msra.mxu0 %v676
    %686 = vmatmul.bf16.gmra.mxu0 %v670
    %v687 = vpop.f32.mrf.mxu0
    %v688 = vadd.f32 0.0, %v687
    %v689 = vpop.f32.mrf.mxu0
    %v690 = vadd.f32 0.0, %v689
    %691 = vmatmul.bf16.gmra.mxu0 %v673
    %v692 = vpop.f32.mrf.mxu0
    %v693 = vadd.f32 0.0, %v692
    %v694 = vpop.f32.mrf.mxu0
    %695 = vdwg.mxu0
    %v696 = vmul.f32 %v688, 0.35355338
    %v697 = vmul.f32 %v690, 0.35355338
    %v698 = vmul.f32 %v693, 0.35355338
    %v699 = vadd.f32 %v696, %v135
    %v700 = vadd.f32 %v697, %v135
    %v701 = vadd.f32 %v698, %v135
    %v702 = vsel %vm511, %v699, -inf
    %703 = vmax.xlane.f32.xlu0 %v702
    %v704 = vpop.xlane.xlu0 %703
    %v705 = vsel %vm511, %v700, -inf
    %706 = vmax.xlane.f32.xlu0 %v705
    %v707 = vpop.xlane.xlu0 %706
    %v708 = vsel %vm511, %v701, -inf
    %709 = vmax.xlane.f32.xlu0 %v708
    %v710 = vpop.xlane.xlu0 %709
    %v711 = vsub.f32 %v699, %v704
    %v712 = vsub.f32 %v700, %v707
    %v713 = vsub.f32 %v701, %v710
    %v714 = vmul.f32 %v711, 1.442695
    %v715 = vpow.pop %v714
    %v716 = vmul.f32 %v712, 1.442695
    %v717 = vpow.pop %v716
    %v718 = vmul.f32 %v713, 1.442695
    %v719 = vpow.pop %v718
    %v720 = vsel %vm511, %v715, 0.0
    %721 = vadd.xlane.f32.xlu0 %v720
    %v722 = vpop.xlane.xlu0 %721
    %v723 = vsel %vm511, %v717, 0.0
    %724 = vadd.xlane.f32.xlu0 %v723
    %v725 = vpop.xlane.xlu0 %724
    %v726 = vsel %vm511, %v719, 0.0
    %727 = vadd.xlane.f32.xlu0 %v726
    %v728 = vpop.xlane.xlu0 %727
    %v729 = vrcp.pop %v722
    %v730 = vmul.f32 %v722, %v729
    %v731 = vsub.f32 1.0, %v730
    %v732 = vmul.f32 %v729, %v731
    %v733 = vadd.f32 %v729, %v732
    %vm734 = vweird.f32 %v722
    %vm735 = vweird.f32 %v729
    %vm736 = vmor %vm734, %vm735
    %v737 = vsel %vm736, %v729, %v733
    %v738 = vand.u32 2147483647, %v722
    %vm739 = vcmp.eq.f32.partialorder %v738, 8.507059e+37
    %v740 = vand.u32 %v722, 2147483648
    %v741 = vor.u32 1.1754944e-38, %v740
    %v742 = vsel %vm739, %v741, %v737
    %v743 = vmul.f32 %v715, %v742
    %v744 = vrcp.pop %v725
    %v745 = vmul.f32 %v725, %v744
    %v746 = vsub.f32 1.0, %v745
    %v747 = vmul.f32 %v744, %v746
    %v748 = vadd.f32 %v744, %v747
    %vm749 = vweird.f32 %v725
    %vm750 = vweird.f32 %v744
    %vm751 = vmor %vm749, %vm750
    %v752 = vsel %vm751, %v744, %v748
    %v753 = vand.u32 2147483647, %v725
    %vm754 = vcmp.eq.f32.partialorder %v753, 8.507059e+37
    %v755 = vand.u32 %v725, 2147483648
    %v756 = vor.u32 1.1754944e-38, %v755
    %v757 = vsel %vm754, %v756, %v752
    %v758 = vmul.f32 %v717, %v757
    %v759 = vrcp.pop %v728
    %v760 = vmul.f32 %v728, %v759
    %v761 = vsub.f32 1.0, %v760
    %v762 = vmul.f32 %v759, %v761
    %v763 = vadd.f32 %v759, %v762
    %vm764 = vweird.f32 %v728
    %vm765 = vweird.f32 %v759
    %vm766 = vmor %vm764, %vm765
    %v767 = vsel %vm766, %v759, %v763
    %v768 = vand.u32 2147483647, %v728
    %vm769 = vcmp.eq.f32.partialorder %v768, 8.507059e+37
    %v770 = vand.u32 %v728, 2147483648
    %v771 = vor.u32 1.1754944e-38, %v770
    %v772 = vsel %vm769, %v771, %v767
    %v773 = vmul.f32 %v719, %v772
    %v774 = vpack.c.bf16 %v758, %v743
    %v775 = vpack.c.bf16 %v773, %v773
    %776 = vrot.lane.b32.xlu0 %v473, 56
    %v777 = vpop.permute.xlu0 %776
    %778 = vrot.lane.b32.xlu0 %v474, 56
    %v779 = vpop.permute.xlu0 %778
    %v782 = vsel %vm511, %v774, 0
    %v785 = vsel %vm511, %v775, 0
    %v788 = vsel %vm483, %v779, 0
    %790 = vmatpush.bf16.msra.mxu0 0
    %791 = vmatpush.bf16.msra.mxu0 0
    %792 = vmatpush.bf16.msra.mxu0 0
    %793 = vmatpush.bf16.msra.mxu0 0
    %794 = vmatpush.bf16.msra.mxu0 0
    %795 = vmatpush.bf16.msra.mxu0 0
    %796 = vmatpush.bf16.msra.mxu0 %v788
    %797 = vmatpush.bf16.msra.mxu0 %v777
    %798 = vmatmul.bf16.gmra.mxu0 %v782
    %v799 = vpop.f32.mrf.mxu0
    %v800 = vadd.f32 0.0, %v799
    %v801 = vpop.f32.mrf.mxu0
    %v802 = vadd.f32 0.0, %v801
    %803 = vmatmul.bf16.gmra.mxu0 %v785
    %v804 = vpop.f32.mrf.mxu0
    %v805 = vadd.f32 0.0, %v804
    %v806 = vpop.f32.mrf.mxu0
    %807 = vdwg.mxu0
    %v808 = vpack.c.bf16 %v802, %v800
    %v809 = vpack.c.bf16 %v805, %v805
    %v810 = vpack.c.bf16 %v202, %v202
    %v812 = vsel %vm476, %v808, 0
    %v815 = vsel %vm476, %v809, 0
    %v818 = vsel %vm483, %v810, 0
    %820 = vmatpush.bf16.msra.mxu0 0
    %821 = vmatpush.bf16.msra.mxu0 0
    %822 = vmatpush.bf16.msra.mxu0 0
    %823 = vmatpush.bf16.msra.mxu0 0
    %824 = vmatpush.bf16.msra.mxu0 0
    %825 = vmatpush.bf16.msra.mxu0 0
    %826 = vmatpush.bf16.msra.mxu0 0
    %827 = vmatpush.bf16.msra.mxu0 %v818
    %828 = vmatmul.bf16.gmra.mxu0 %v812
    %v829 = vpop.f32.mrf.mxu0
    %v830 = vadd.f32 0.0, %v829
    %v831 = vpop.f32.mrf.mxu0
    %v832 = vadd.f32 0.0, %v831
    %833 = vmatmul.bf16.gmra.mxu0 %v815
    %v834 = vpop.f32.mrf.mxu0
    %v835 = vadd.f32 0.0, %v834
    %v836 = vpop.f32.mrf.mxu0
    %837 = vdwg.mxu0
    %v839 = vsel %vm476, %v620, 0
    %v842 = vsel %vm476, %v621, 0
    %v845 = vsel %vm483, %v622, 0
    %847 = vmatpush.bf16.msra.mxu0 0
    %848 = vmatpush.bf16.msra.mxu0 0
    %849 = vmatpush.bf16.msra.mxu0 0
    %850 = vmatpush.bf16.msra.mxu0 0
    %851 = vmatpush.bf16.msra.mxu0 0
    %852 = vmatpush.bf16.msra.mxu0 0
    %853 = vmatpush.bf16.msra.mxu0 0
    %854 = vmatpush.bf16.msra.mxu0 %v845
    %855 = vmatmul.bf16.gmra.mxu0 %v839
    %v856 = vpop.f32.mrf.mxu0
    %v857 = vadd.f32 %v830, %v856
    %v858 = vpop.f32.mrf.mxu0
    %v859 = vadd.f32 %v832, %v858
    %860 = vmatmul.bf16.gmra.mxu0 %v842
    %v861 = vpop.f32.mrf.mxu0
    %v862 = vadd.f32 %v835, %v861
    %v863 = vpop.f32.mrf.mxu0
    %864 = vdwg.mxu0
    %865 = vrot.lane.b32.xlu0 %v415, 80
    %v866 = vpop.permute.xlu0 %865
    %867 = vrot.lane.b32.xlu0 %v417, 80
    %v868 = vpop.permute.xlu0 %867
    %869 = vrot.lane.b32.xlu0 %v420, 80
    %v870 = vpop.permute.xlu0 %869
    %874 = vxpose.xlu0.b32.start [1/16] %v866, 128
    %875 = vxpose.xlu0.b32.cont [2/16] %v868, 128
    %876 = vxpose.xlu0.b32.cont [3/16] %v870, 128
    %877 = vxpose.xlu0.b32.cont [4/16] 0.0, 128
    %878 = vxpose.xlu0.b32.cont [5/16] 0.0, 128
    %879 = vxpose.xlu0.b32.cont [6/16] 0.0, 128
    %880 = vxpose.xlu0.b32.cont [7/16] 0.0, 128
    %881 = vxpose.xlu0.b32.cont [8/16] 0.0, 128
    %882 = vxpose.xlu0.b32.cont [9/16] 0.0, 128
    %883 = vxpose.xlu0.b32.cont [10/16] 0.0, 128
    %884 = vxpose.xlu0.b32.cont [11/16] 0.0, 128
    %885 = vxpose.xlu0.b32.cont [12/16] 0.0, 128
    %886 = vxpose.xlu0.b32.cont [13/16] 0.0, 128
    %887 = vxpose.xlu0.b32.cont [14/16] 0.0, 128
    %888 = vxpose.xlu0.b32.cont [15/16] 0.0, 128
    %889 = vxpose.xlu0.b32.end [16/16] 0.0, 128
    %v890 = vpop.trf.xlu0
    %v891 = vpop.trf.xlu0
    %v892 = vpop.trf.xlu0
    %v893 = vpop.trf.xlu0
    %v894 = vpop.trf.xlu0
    %v895 = vpop.trf.xlu0
    %v896 = vpop.trf.xlu0
    %v897 = vpop.trf.xlu0
    %v898 = vpop.trf.xlu0
    %v899 = vpop.trf.xlu0
    %v900 = vpop.trf.xlu0
    %v901 = vpop.trf.xlu0
    %v902 = vpop.trf.xlu0
    %v903 = vpop.trf.xlu0
    %v904 = vpop.trf.xlu0
    %v905 = vpop.trf.xlu0
    %v906 = vpack.c.bf16 %v890, %v890
    %907 = vrot.lane.b32.xlu0 %v473, 112
    %v908 = vpop.permute.xlu0 %907
    %909 = vrot.lane.b32.xlu0 %v474, 112
    %v910 = vpop.permute.xlu0 %909
    %v912 = vsel %vm476, %v908, 0
    %v915 = vsel %vm476, %v910, 0
    %v918 = vsel %vm483, %v906, 0
    %920 = vmatpush.bf16.msra.mxu0 0
    %921 = vmatpush.bf16.msra.mxu0 0
    %922 = vmatpush.bf16.msra.mxu0 0
    %923 = vmatpush.bf16.msra.mxu0 0
    %924 = vmatpush.bf16.msra.mxu0 0
    %925 = vmatpush.bf16.msra.mxu0 0
    %926 = vmatpush.bf16.msra.mxu0 0
    %927 = vmatpush.bf16.msra.mxu0 %v918
    %928 = vmatmul.bf16.gmra.mxu0 %v912
    %v929 = vpop.f32.mrf.mxu0
    %v930 = vadd.f32 0.0, %v929
    %v931 = vpop.f32.mrf.mxu0
    %v932 = vadd.f32 0.0, %v931
    %933 = vmatmul.bf16.gmra.mxu0 %v915
    %v934 = vpop.f32.mrf.mxu0
    %v935 = vadd.f32 0.0, %v934
    %v936 = vpop.f32.mrf.mxu0
    %937 = vdwg.mxu0
    %v938 = vmul.f32 %v930, 0.35355338
    %v939 = vmul.f32 %v932, 0.35355338
    %v940 = vmul.f32 %v935, 0.35355338
    %v941 = vadd.f32 %v938, %v135
    %v942 = vadd.f32 %v939, %v135
    %v943 = vadd.f32 %v940, %v135
    %v944 = vsel %vm511, %v941, -inf
    %945 = vmax.xlane.f32.xlu0 %v944
    %v946 = vpop.xlane.xlu0 %945
    %v947 = vsel %vm511, %v942, -inf
    %948 = vmax.xlane.f32.xlu0 %v947
    %v949 = vpop.xlane.xlu0 %948
    %v950 = vsel %vm511, %v943, -inf
    %951 = vmax.xlane.f32.xlu0 %v950
    %v952 = vpop.xlane.xlu0 %951
    %v953 = vsub.f32 %v941, %v946
    %v954 = vsub.f32 %v942, %v949
    %v955 = vsub.f32 %v943, %v952
    %v956 = vmul.f32 %v953, 1.442695
    %v957 = vpow.pop %v956
    %v958 = vmul.f32 %v954, 1.442695
    %v959 = vpow.pop %v958
    %v960 = vmul.f32 %v955, 1.442695
    %v961 = vpow.pop %v960
    %v962 = vsel %vm511, %v957, 0.0
    %963 = vadd.xlane.f32.xlu0 %v962
    %v964 = vpop.xlane.xlu0 %963
    %v965 = vsel %vm511, %v959, 0.0
    %966 = vadd.xlane.f32.xlu0 %v965
    %v967 = vpop.xlane.xlu0 %966
    %v968 = vsel %vm511, %v961, 0.0
    %969 = vadd.xlane.f32.xlu0 %v968
    %v970 = vpop.xlane.xlu0 %969
    %v971 = vrcp.pop %v964
    %v972 = vmul.f32 %v964, %v971
    %v973 = vsub.f32 1.0, %v972
    %v974 = vmul.f32 %v971, %v973
    %v975 = vadd.f32 %v971, %v974
    %vm976 = vweird.f32 %v964
    %vm977 = vweird.f32 %v971
    %vm978 = vmor %vm976, %vm977
    %v979 = vsel %vm978, %v971, %v975
    %v980 = vand.u32 2147483647, %v964
    %vm981 = vcmp.eq.f32.partialorder %v980, 8.507059e+37
    %v982 = vand.u32 %v964, 2147483648
    %v983 = vor.u32 1.1754944e-38, %v982
    %v984 = vsel %vm981, %v983, %v979
    %v985 = vmul.f32 %v957, %v984
    %v986 = vrcp.pop %v967
    %v987 = vmul.f32 %v967, %v986
    %v988 = vsub.f32 1.0, %v987
    %v989 = vmul.f32 %v986, %v988
    %v990 = vadd.f32 %v986, %v989
    %vm991 = vweird.f32 %v967
    %vm992 = vweird.f32 %v986
    %vm993 = vmor %vm991, %vm992
    %v994 = vsel %vm993, %v986, %v990
    %v995 = vand.u32 2147483647, %v967
    %vm996 = vcmp.eq.f32.partialorder %v995, 8.507059e+37
    %v997 = vand.u32 %v967, 2147483648
    %v998 = vor.u32 1.1754944e-38, %v997
    %v999 = vsel %vm996, %v998, %v994
    %v1000 = vmul.f32 %v959, %v999
    %v1001 = vrcp.pop %v970
    %v1002 = vmul.f32 %v970, %v1001
    %v1003 = vsub.f32 1.0, %v1002
    %v1004 = vmul.f32 %v1001, %v1003
    %v1005 = vadd.f32 %v1001, %v1004
    %vm1006 = vweird.f32 %v970
    %vm1007 = vweird.f32 %v1001
    %vm1008 = vmor %vm1006, %vm1007
    %v1009 = vsel %vm1008, %v1001, %v1005
    %v1010 = vand.u32 2147483647, %v970
    %vm1011 = vcmp.eq.f32.partialorder %v1010, 8.507059e+37
    %v1012 = vand.u32 %v970, 2147483648
    %v1013 = vor.u32 1.1754944e-38, %v1012
    %v1014 = vsel %vm1011, %v1013, %v1009
    %v1015 = vmul.f32 %v961, %v1014
    %v1016 = vpack.c.bf16 %v1000, %v985
    %v1017 = vpack.c.bf16 %v1015, %v1015
    %1018 = vrot.lane.b32.xlu0 %v473, 48
    %v1019 = vpop.permute.xlu0 %1018
    %1020 = vrot.lane.b32.xlu0 %v474, 48
    %v1021 = vpop.permute.xlu0 %1020
    %v1024 = vsel %vm511, %v1016, 0
    %v1027 = vsel %vm511, %v1017, 0
    %v1030 = vsel %vm483, %v1021, 0
    %1032 = vmatpush.bf16.msra.mxu0 0
    %1033 = vmatpush.bf16.msra.mxu0 0
    %1034 = vmatpush.bf16.msra.mxu0 0
    %1035 = vmatpush.bf16.msra.mxu0 0
    %1036 = vmatpush.bf16.msra.mxu0 0
    %1037 = vmatpush.bf16.msra.mxu0 0
    %1038 = vmatpush.bf16.msra.mxu0 %v1030
    %1039 = vmatpush.bf16.msra.mxu0 %v1019
    %1040 = vmatmul.bf16.gmra.mxu0 %v1024
    %v1041 = vpop.f32.mrf.mxu0
    %v1042 = vadd.f32 0.0, %v1041
    %v1043 = vpop.f32.mrf.mxu0
    %v1044 = vadd.f32 0.0, %v1043
    %1045 = vmatmul.bf16.gmra.mxu0 %v1027
    %v1046 = vpop.f32.mrf.mxu0
    %v1047 = vadd.f32 0.0, %v1046
    %v1048 = vpop.f32.mrf.mxu0
    %1049 = vdwg.mxu0
    %v1050 = vpack.c.bf16 %v1044, %v1042
    %v1051 = vpack.c.bf16 %v1047, %v1047
    %v1052 = vpack.c.bf16 %v203, %v203
    %v1054 = vsel %vm476, %v1050, 0
    %v1057 = vsel %vm476, %v1051, 0
    %v1060 = vsel %vm483, %v1052, 0
    %1062 = vmatpush.bf16.msra.mxu0 0
    %1063 = vmatpush.bf16.msra.mxu0 0
    %1064 = vmatpush.bf16.msra.mxu0 0
    %1065 = vmatpush.bf16.msra.mxu0 0
    %1066 = vmatpush.bf16.msra.mxu0 0
    %1067 = vmatpush.bf16.msra.mxu0 0
    %1068 = vmatpush.bf16.msra.mxu0 0
    %1069 = vmatpush.bf16.msra.mxu0 %v1060
    %1070 = vmatmul.bf16.gmra.mxu0 %v1054
    %v1071 = vpop.f32.mrf.mxu0
    %v1072 = vadd.f32 0.0, %v1071
    %v1073 = vpop.f32.mrf.mxu0
    %v1074 = vadd.f32 0.0, %v1073
    %1075 = vmatmul.bf16.gmra.mxu0 %v1057
    %v1076 = vpop.f32.mrf.mxu0
    %v1077 = vadd.f32 0.0, %v1076
    %v1078 = vpop.f32.mrf.mxu0
    %1079 = vdwg.mxu0
    %v1080 = vadd.f32 %v857, %v1072
    %v1081 = vadd.f32 %v859, %v1074
    %v1082 = vadd.f32 %v862, %v1077
    %1083 = vrot.lane.b32.xlu0 %v415, 72
    %v1084 = vpop.permute.xlu0 %1083
    %1085 = vrot.lane.b32.xlu0 %v417, 72
    %v1086 = vpop.permute.xlu0 %1085
    %1087 = vrot.lane.b32.xlu0 %v420, 72
    %v1088 = vpop.permute.xlu0 %1087
    %1092 = vxpose.xlu0.b32.start [1/16] %v1084, 128
    %1093 = vxpose.xlu0.b32.cont [2/16] %v1086, 128
    %1094 = vxpose.xlu0.b32.cont [3/16] %v1088, 128
    %1095 = vxpose.xlu0.b32.cont [4/16] 0.0, 128
    %1096 = vxpose.xlu0.b32.cont [5/16] 0.0, 128
    %1097 = vxpose.xlu0.b32.cont [6/16] 0.0, 128
    %1098 = vxpose.xlu0.b32.cont [7/16] 0.0, 128
    %1099 = vxpose.xlu0.b32.cont [8/16] 0.0, 128
    %1100 = vxpose.xlu0.b32.cont [9/16] 0.0, 128
    %1101 = vxpose.xlu0.b32.cont [10/16] 0.0, 128
    %1102 = vxpose.xlu0.b32.cont [11/16] 0.0, 128
    %1103 = vxpose.xlu0.b32.cont [12/16] 0.0, 128
    %1104 = vxpose.xlu0.b32.cont [13/16] 0.0, 128
    %1105 = vxpose.xlu0.b32.cont [14/16] 0.0, 128
    %1106 = vxpose.xlu0.b32.cont [15/16] 0.0, 128
    %1107 = vxpose.xlu0.b32.end [16/16] 0.0, 128
    %v1108 = vpop.trf.xlu0
    %v1109 = vpop.trf.xlu0
    %v1110 = vpop.trf.xlu0
    %v1111 = vpop.trf.xlu0
    %v1112 = vpop.trf.xlu0
    %v1113 = vpop.trf.xlu0
    %v1114 = vpop.trf.xlu0
    %v1115 = vpop.trf.xlu0
    %v1116 = vpop.trf.xlu0
    %v1117 = vpop.trf.xlu0
    %v1118 = vpop.trf.xlu0
    %v1119 = vpop.trf.xlu0
    %v1120 = vpop.trf.xlu0
    %v1121 = vpop.trf.xlu0
    %v1122 = vpop.trf.xlu0
    %v1123 = vpop.trf.xlu0
    %v1124 = vpack.c.bf16 %v1108, %v1108
    %1125 = vrot.lane.b32.xlu0 %v473, 104
    %v1126 = vpop.permute.xlu0 %1125
    %1127 = vrot.lane.b32.xlu0 %v474, 104
    %v1128 = vpop.permute.xlu0 %1127
    %v1130 = vsel %vm476, %v1126, 0
    %v1133 = vsel %vm476, %v1128, 0
    %v1136 = vsel %vm483, %v1124, 0
    %1138 = vmatpush.bf16.msra.mxu0 0
    %1139 = vmatpush.bf16.msra.mxu0 0
    %1140 = vmatpush.bf16.msra.mxu0 0
    %1141 = vmatpush.bf16.msra.mxu0 0
    %1142 = vmatpush.bf16.msra.mxu0 0
    %1143 = vmatpush.bf16.msra.mxu0 0
    %1144 = vmatpush.bf16.msra.mxu0 0
    %1145 = vmatpush.bf16.msra.mxu0 %v1136
    %1146 = vmatmul.bf16.gmra.mxu0 %v1130
    %v1147 = vpop.f32.mrf.mxu0
    %v1148 = vadd.f32 0.0, %v1147
    %v1149 = vpop.f32.mrf.mxu0
    %v1150 = vadd.f32 0.0, %v1149
    %1151 = vmatmul.bf16.gmra.mxu0 %v1133
    %v1152 = vpop.f32.mrf.mxu0
    %v1153 = vadd.f32 0.0, %v1152
    %v1154 = vpop.f32.mrf.mxu0
    %1155 = vdwg.mxu0
    %v1156 = vmul.f32 %v1148, 0.35355338
    %v1157 = vmul.f32 %v1150, 0.35355338
    %v1158 = vmul.f32 %v1153, 0.35355338
    %v1159 = vadd.f32 %v1156, %v135
    %v1160 = vadd.f32 %v1157, %v135
    %v1161 = vadd.f32 %v1158, %v135
    %v1162 = vsel %vm511, %v1159, -inf
    %1163 = vmax.xlane.f32.xlu0 %v1162
    %v1164 = vpop.xlane.xlu0 %1163
    %v1165 = vsel %vm511, %v1160, -inf
    %1166 = vmax.xlane.f32.xlu0 %v1165
    %v1167 = vpop.xlane.xlu0 %1166
    %v1168 = vsel %vm511, %v1161, -inf
    %1169 = vmax.xlane.f32.xlu0 %v1168
    %v1170 = vpop.xlane.xlu0 %1169
    %v1171 = vsub.f32 %v1159, %v1164
    %v1172 = vsub.f32 %v1160, %v1167
    %v1173 = vsub.f32 %v1161, %v1170
    %v1174 = vmul.f32 %v1171, 1.442695
    %v1175 = vpow.pop %v1174
    %v1176 = vmul.f32 %v1172, 1.442695
    %v1177 = vpow.pop %v1176
    %v1178 = vmul.f32 %v1173, 1.442695
    %v1179 = vpow.pop %v1178
    %v1180 = vsel %vm511, %v1175, 0.0
    %1181 = vadd.xlane.f32.xlu0 %v1180
    %v1182 = vpop.xlane.xlu0 %1181
    %v1183 = vsel %vm511, %v1177, 0.0
    %1184 = vadd.xlane.f32.xlu0 %v1183
    %v1185 = vpop.xlane.xlu0 %1184
    %v1186 = vsel %vm511, %v1179, 0.0
    %1187 = vadd.xlane.f32.xlu0 %v1186
    %v1188 = vpop.xlane.xlu0 %1187
    %v1189 = vrcp.pop %v1182
    %v1190 = vmul.f32 %v1182, %v1189
    %v1191 = vsub.f32 1.0, %v1190
    %v1192 = vmul.f32 %v1189, %v1191
    %v1193 = vadd.f32 %v1189, %v1192
    %vm1194 = vweird.f32 %v1182
    %vm1195 = vweird.f32 %v1189
    %vm1196 = vmor %vm1194, %vm1195
    %v1197 = vsel %vm1196, %v1189, %v1193
    %v1198 = vand.u32 2147483647, %v1182
    %vm1199 = vcmp.eq.f32.partialorder %v1198, 8.507059e+37
    %v1200 = vand.u32 %v1182, 2147483648
    %v1201 = vor.u32 1.1754944e-38, %v1200
    %v1202 = vsel %vm1199, %v1201, %v1197
    %v1203 = vmul.f32 %v1175, %v1202
    %v1204 = vrcp.pop %v1185
    %v1205 = vmul.f32 %v1185, %v1204
    %v1206 = vsub.f32 1.0, %v1205
    %v1207 = vmul.f32 %v1204, %v1206
    %v1208 = vadd.f32 %v1204, %v1207
    %vm1209 = vweird.f32 %v1185
    %vm1210 = vweird.f32 %v1204
    %vm1211 = vmor %vm1209, %vm1210
    %v1212 = vsel %vm1211, %v1204, %v1208
    %v1213 = vand.u32 2147483647, %v1185
    %vm1214 = vcmp.eq.f32.partialorder %v1213, 8.507059e+37
    %v1215 = vand.u32 %v1185, 2147483648
    %v1216 = vor.u32 1.1754944e-38, %v1215
    %v1217 = vsel %vm1214, %v1216, %v1212
    %v1218 = vmul.f32 %v1177, %v1217
    %v1219 = vrcp.pop %v1188
    %v1220 = vmul.f32 %v1188, %v1219
    %v1221 = vsub.f32 1.0, %v1220
    %v1222 = vmul.f32 %v1219, %v1221
    %v1223 = vadd.f32 %v1219, %v1222
    %vm1224 = vweird.f32 %v1188
    %vm1225 = vweird.f32 %v1219
    %vm1226 = vmor %vm1224, %vm1225
    %v1227 = vsel %vm1226, %v1219, %v1223
    %v1228 = vand.u32 2147483647, %v1188
    %vm1229 = vcmp.eq.f32.partialorder %v1228, 8.507059e+37
    %v1230 = vand.u32 %v1188, 2147483648
    %v1231 = vor.u32 1.1754944e-38, %v1230
    %v1232 = vsel %vm1229, %v1231, %v1227
    %v1233 = vmul.f32 %v1179, %v1232
    %v1234 = vpack.c.bf16 %v1218, %v1203
    %v1235 = vpack.c.bf16 %v1233, %v1233
    %1236 = vrot.lane.b32.xlu0 %v473, 40
    %v1237 = vpop.permute.xlu0 %1236
    %1238 = vrot.lane.b32.xlu0 %v474, 40
    %v1239 = vpop.permute.xlu0 %1238
    %v1242 = vsel %vm511, %v1234, 0
    %v1245 = vsel %vm511, %v1235, 0
    %v1248 = vsel %vm483, %v1239, 0
    %1250 = vmatpush.bf16.msra.mxu0 0
    %1251 = vmatpush.bf16.msra.mxu0 0
    %1252 = vmatpush.bf16.msra.mxu0 0
    %1253 = vmatpush.bf16.msra.mxu0 0
    %1254 = vmatpush.bf16.msra.mxu0 0
    %1255 = vmatpush.bf16.msra.mxu0 0
    %1256 = vmatpush.bf16.msra.mxu0 %v1248
    %1257 = vmatpush.bf16.msra.mxu0 %v1237
    %1258 = vmatmul.bf16.gmra.mxu0 %v1242
    %v1259 = vpop.f32.mrf.mxu0
    %v1260 = vadd.f32 0.0, %v1259
    %v1261 = vpop.f32.mrf.mxu0
    %v1262 = vadd.f32 0.0, %v1261
    %1263 = vmatmul.bf16.gmra.mxu0 %v1245
    %v1264 = vpop.f32.mrf.mxu0
    %v1265 = vadd.f32 0.0, %v1264
    %v1266 = vpop.f32.mrf.mxu0
    %1267 = vdwg.mxu0
    %v1268 = vpack.c.bf16 %v1262, %v1260
    %v1269 = vpack.c.bf16 %v1265, %v1265
    %v1270 = vpack.c.bf16 %v204, %v204
    %v1272 = vsel %vm476, %v1268, 0
    %v1275 = vsel %vm476, %v1269, 0
    %v1278 = vsel %vm483, %v1270, 0
    %1280 = vmatpush.bf16.msra.mxu0 0
    %1281 = vmatpush.bf16.msra.mxu0 0
    %1282 = vmatpush.bf16.msra.mxu0 0
    %1283 = vmatpush.bf16.msra.mxu0 0
    %1284 = vmatpush.bf16.msra.mxu0 0
    %1285 = vmatpush.bf16.msra.mxu0 0
    %1286 = vmatpush.bf16.msra.mxu0 0
    %1287 = vmatpush.bf16.msra.mxu0 %v1278
    %1288 = vmatmul.bf16.gmra.mxu0 %v1272
    %v1289 = vpop.f32.mrf.mxu0
    %v1290 = vadd.f32 0.0, %v1289
    %v1291 = vpop.f32.mrf.mxu0
    %v1292 = vadd.f32 0.0, %v1291
    %1293 = vmatmul.bf16.gmra.mxu0 %v1275
    %v1294 = vpop.f32.mrf.mxu0
    %v1295 = vadd.f32 0.0, %v1294
    %v1296 = vpop.f32.mrf.mxu0
    %1297 = vdwg.mxu0
    %v1298 = vadd.f32 %v1080, %v1290
    %v1299 = vadd.f32 %v1081, %v1292
    %v1300 = vadd.f32 %v1082, %v1295
    %1304 = vrot.lane.b32.xlu0 %v422, 96
    %v1305 = vpop.permute.xlu0 %1304
    %1306 = vrot.lane.b32.xlu0 %v425, 96
    %v1307 = vpop.permute.xlu0 %1306
    %1308 = vrot.lane.b32.xlu0 %v427, 96
    %v1309 = vpop.permute.xlu0 %1308
    %1313 = vxpose.xlu0.b32.start [1/16] %v1305, 128
    %1314 = vxpose.xlu0.b32.cont [2/16] %v1307, 128
    %1315 = vxpose.xlu0.b32.cont [3/16] %v1309, 128
    %1316 = vxpose.xlu0.b32.cont [4/16] 0.0, 128
    %1317 = vxpose.xlu0.b32.cont [5/16] 0.0, 128
    %1318 = vxpose.xlu0.b32.cont [6/16] 0.0, 128
    %1319 = vxpose.xlu0.b32.cont [7/16] 0.0, 128
    %1320 = vxpose.xlu0.b32.cont [8/16] 0.0, 128
    %1321 = vxpose.xlu0.b32.cont [9/16] 0.0, 128
    %1322 = vxpose.xlu0.b32.cont [10/16] 0.0, 128
    %1323 = vxpose.xlu0.b32.cont [11/16] 0.0, 128
    %1324 = vxpose.xlu0.b32.cont [12/16] 0.0, 128
    %1325 = vxpose.xlu0.b32.cont [13/16] 0.0, 128
    %1326 = vxpose.xlu0.b32.cont [14/16] 0.0, 128
    %1327 = vxpose.xlu0.b32.cont [15/16] 0.0, 128
    %1328 = vxpose.xlu0.b32.end [16/16] 0.0, 128
    %v1329 = vpop.trf.xlu0
    %v1330 = vpop.trf.xlu0
    %v1331 = vpop.trf.xlu0
    %v1332 = vpop.trf.xlu0
    %v1333 = vpop.trf.xlu0
    %v1334 = vpop.trf.xlu0
    %v1335 = vpop.trf.xlu0
    %v1336 = vpop.trf.xlu0
    %v1337 = vpop.trf.xlu0
    %v1338 = vpop.trf.xlu0
    %v1339 = vpop.trf.xlu0
    %v1340 = vpop.trf.xlu0
    %v1341 = vpop.trf.xlu0
    %v1342 = vpop.trf.xlu0
    %v1343 = vpop.trf.xlu0
    %v1344 = vpop.trf.xlu0
    %v1345 = vpack.c.bf16 %v425, %v422
    %v1346 = vpack.c.bf16 %v427, %v427
    %v1347 = vpack.c.bf16 %v1329, %v1329
    %v1349 = vsel %vm476, %v1345, 0
    %v1352 = vsel %vm476, %v1346, 0
    %v1355 = vsel %vm483, %v1347, 0
    %1357 = vmatpush.bf16.msra.mxu0 0
    %1358 = vmatpush.bf16.msra.mxu0 0
    %1359 = vmatpush.bf16.msra.mxu0 0
    %1360 = vmatpush.bf16.msra.mxu0 0
    %1361 = vmatpush.bf16.msra.mxu0 0
    %1362 = vmatpush.bf16.msra.mxu0 0
    %1363 = vmatpush.bf16.msra.mxu0 0
    %1364 = vmatpush.bf16.msra.mxu0 %v1355
    %1365 = vmatmul.bf16.gmra.mxu0 %v1349
    %v1366 = vpop.f32.mrf.mxu0
    %v1367 = vadd.f32 0.0, %v1366
    %v1368 = vpop.f32.mrf.mxu0
    %v1369 = vadd.f32 0.0, %v1368
    %1370 = vmatmul.bf16.gmra.mxu0 %v1352
    %v1371 = vpop.f32.mrf.mxu0
    %v1372 = vadd.f32 0.0, %v1371
    %v1373 = vpop.f32.mrf.mxu0
    %1374 = vdwg.mxu0
    %v1375 = vmul.f32 %v1367, 0.35355338
    %v1376 = vmul.f32 %v1369, 0.35355338
    %v1377 = vmul.f32 %v1372, 0.35355338
    %v1378 = vadd.f32 %v1375, %v135
    %v1379 = vadd.f32 %v1376, %v135
    %v1380 = vadd.f32 %v1377, %v135
    %v1381 = vsel %vm511, %v1378, -inf
    %1382 = vmax.xlane.f32.xlu0 %v1381
    %v1383 = vpop.xlane.xlu0 %1382
    %v1384 = vsel %vm511, %v1379, -inf
    %1385 = vmax.xlane.f32.xlu0 %v1384
    %v1386 = vpop.xlane.xlu0 %1385
    %v1387 = vsel %vm511, %v1380, -inf
    %1388 = vmax.xlane.f32.xlu0 %v1387
    %v1389 = vpop.xlane.xlu0 %1388
    %v1390 = vsub.f32 %v1378, %v1383
    %v1391 = vsub.f32 %v1379, %v1386
    %v1392 = vsub.f32 %v1380, %v1389
    %v1393 = vmul.f32 %v1390, 1.442695
    %v1394 = vpow.pop %v1393
    %v1395 = vmul.f32 %v1391, 1.442695
    %v1396 = vpow.pop %v1395
    %v1397 = vmul.f32 %v1392, 1.442695
    %v1398 = vpow.pop %v1397
    %v1399 = vsel %vm511, %v1394, 0.0
    %1400 = vadd.xlane.f32.xlu0 %v1399
    %v1401 = vpop.xlane.xlu0 %1400
    %v1402 = vsel %vm511, %v1396, 0.0
    %1403 = vadd.xlane.f32.xlu0 %v1402
    %v1404 = vpop.xlane.xlu0 %1403
    %v1405 = vsel %vm511, %v1398, 0.0
    %1406 = vadd.xlane.f32.xlu0 %v1405
    %v1407 = vpop.xlane.xlu0 %1406
    %v1408 = vrcp.pop %v1401
    %v1409 = vmul.f32 %v1401, %v1408
    %v1410 = vsub.f32 1.0, %v1409
    %v1411 = vmul.f32 %v1408, %v1410
    %v1412 = vadd.f32 %v1408, %v1411
    %vm1413 = vweird.f32 %v1401
    %vm1414 = vweird.f32 %v1408
    %vm1415 = vmor %vm1413, %vm1414
    %v1416 = vsel %vm1415, %v1408, %v1412
    %v1417 = vand.u32 2147483647, %v1401
    %vm1418 = vcmp.eq.f32.partialorder %v1417, 8.507059e+37
    %v1419 = vand.u32 %v1401, 2147483648
    %v1420 = vor.u32 1.1754944e-38, %v1419
    %v1421 = vsel %vm1418, %v1420, %v1416
    %v1422 = vmul.f32 %v1394, %v1421
    %v1423 = vrcp.pop %v1404
    %v1424 = vmul.f32 %v1404, %v1423
    %v1425 = vsub.f32 1.0, %v1424
    %v1426 = vmul.f32 %v1423, %v1425
    %v1427 = vadd.f32 %v1423, %v1426
    %vm1428 = vweird.f32 %v1404
    %vm1429 = vweird.f32 %v1423
    %vm1430 = vmor %vm1428, %vm1429
    %v1431 = vsel %vm1430, %v1423, %v1427
    %v1432 = vand.u32 2147483647, %v1404
    %vm1433 = vcmp.eq.f32.partialorder %v1432, 8.507059e+37
    %v1434 = vand.u32 %v1404, 2147483648
    %v1435 = vor.u32 1.1754944e-38, %v1434
    %v1436 = vsel %vm1433, %v1435, %v1431
    %v1437 = vmul.f32 %v1396, %v1436
    %v1438 = vrcp.pop %v1407
    %v1439 = vmul.f32 %v1407, %v1438
    %v1440 = vsub.f32 1.0, %v1439
    %v1441 = vmul.f32 %v1438, %v1440
    %v1442 = vadd.f32 %v1438, %v1441
    %vm1443 = vweird.f32 %v1407
    %vm1444 = vweird.f32 %v1438
    %vm1445 = vmor %vm1443, %vm1444
    %v1446 = vsel %vm1445, %v1438, %v1442
    %v1447 = vand.u32 2147483647, %v1407
    %vm1448 = vcmp.eq.f32.partialorder %v1447, 8.507059e+37
    %v1449 = vand.u32 %v1407, 2147483648
    %v1450 = vor.u32 1.1754944e-38, %v1449
    %v1451 = vsel %vm1448, %v1450, %v1446
    %v1452 = vmul.f32 %v1398, %v1451
    %v1453 = vpack.c.bf16 %v1437, %v1422
    %v1454 = vpack.c.bf16 %v1452, %v1452
    %1457 = vrot.lane.b32.xlu0 %v1345, 64
    %v1458 = vpop.permute.xlu0 %1457
    %1459 = vrot.lane.b32.xlu0 %v1346, 64
    %v1460 = vpop.permute.xlu0 %1459
    %v1463 = vsel %vm511, %v1453, 0
    %v1466 = vsel %vm511, %v1454, 0
    %v1469 = vsel %vm483, %v1460, 0
    %1471 = vmatpush.bf16.msra.mxu0 0
    %1472 = vmatpush.bf16.msra.mxu0 0
    %1473 = vmatpush.bf16.msra.mxu0 0
    %1474 = vmatpush.bf16.msra.mxu0 0
    %1475 = vmatpush.bf16.msra.mxu0 0
    %1476 = vmatpush.bf16.msra.mxu0 0
    %1477 = vmatpush.bf16.msra.mxu0 %v1469
    %1478 = vmatpush.bf16.msra.mxu0 %v1458
    %1479 = vmatmul.bf16.gmra.mxu0 %v1463
    %v1480 = vpop.f32.mrf.mxu0
    %v1481 = vadd.f32 0.0, %v1480
    %v1482 = vpop.f32.mrf.mxu0
    %v1483 = vadd.f32 0.0, %v1482
    %1484 = vmatmul.bf16.gmra.mxu0 %v1466
    %v1485 = vpop.f32.mrf.mxu0
    %v1486 = vadd.f32 0.0, %v1485
    %v1487 = vpop.f32.mrf.mxu0
    %1488 = vdwg.mxu0
    %v1489 = vpack.c.bf16 %v1483, %v1481
    %v1490 = vpack.c.bf16 %v1486, %v1486
    %1491 = vrot.lane.b32.xlu0 %v422, 88
    %v1492 = vpop.permute.xlu0 %1491
    %1493 = vrot.lane.b32.xlu0 %v425, 88
    %v1494 = vpop.permute.xlu0 %1493
    %1495 = vrot.lane.b32.xlu0 %v427, 88
    %v1496 = vpop.permute.xlu0 %1495
    %1500 = vxpose.xlu0.b32.start [1/16] %v1492, 128
    %1501 = vxpose.xlu0.b32.cont [2/16] %v1494, 128
    %1502 = vxpose.xlu0.b32.cont [3/16] %v1496, 128
    %1503 = vxpose.xlu0.b32.cont [4/16] 0.0, 128
    %1504 = vxpose.xlu0.b32.cont [5/16] 0.0, 128
    %1505 = vxpose.xlu0.b32.cont [6/16] 0.0, 128
    %1506 = vxpose.xlu0.b32.cont [7/16] 0.0, 128
    %1507 = vxpose.xlu0.b32.cont [8/16] 0.0, 128
    %1508 = vxpose.xlu0.b32.cont [9/16] 0.0, 128
    %1509 = vxpose.xlu0.b32.cont [10/16] 0.0, 128
    %1510 = vxpose.xlu0.b32.cont [11/16] 0.0, 128
    %1511 = vxpose.xlu0.b32.cont [12/16] 0.0, 128
    %1512 = vxpose.xlu0.b32.cont [13/16] 0.0, 128
    %1513 = vxpose.xlu0.b32.cont [14/16] 0.0, 128
    %1514 = vxpose.xlu0.b32.cont [15/16] 0.0, 128
    %1515 = vxpose.xlu0.b32.end [16/16] 0.0, 128
    %v1516 = vpop.trf.xlu0
    %v1517 = vpop.trf.xlu0
    %v1518 = vpop.trf.xlu0
    %v1519 = vpop.trf.xlu0
    %v1520 = vpop.trf.xlu0
    %v1521 = vpop.trf.xlu0
    %v1522 = vpop.trf.xlu0
    %v1523 = vpop.trf.xlu0
    %v1524 = vpop.trf.xlu0
    %v1525 = vpop.trf.xlu0
    %v1526 = vpop.trf.xlu0
    %v1527 = vpop.trf.xlu0
    %v1528 = vpop.trf.xlu0
    %v1529 = vpop.trf.xlu0
    %v1530 = vpop.trf.xlu0
    %v1531 = vpop.trf.xlu0
    %v1532 = vpack.c.bf16 %v1516, %v1516
    %1533 = vrot.lane.b32.xlu0 %v1345, 120
    %v1534 = vpop.permute.xlu0 %1533
    %1535 = vrot.lane.b32.xlu0 %v1346, 120
    %v1536 = vpop.permute.xlu0 %1535
    %v1538 = vsel %vm476, %v1534, 0
    %v1541 = vsel %vm476, %v1536, 0
    %v1544 = vsel %vm483, %v1532, 0
    %1546 = vmatpush.bf16.msra.mxu0 0
    %1547 = vmatpush.bf16.msra.mxu0 0
    %1548 = vmatpush.bf16.msra.mxu0 0
    %1549 = vmatpush.bf16.msra.mxu0 0
    %1550 = vmatpush.bf16.msra.mxu0 0
    %1551 = vmatpush.bf16.msra.mxu0 0
    %1552 = vmatpush.bf16.msra.mxu0 0
    %1553 = vmatpush.bf16.msra.mxu0 %v1544
    %1554 = vmatmul.bf16.gmra.mxu0 %v1538
    %v1555 = vpop.f32.mrf.mxu0
    %v1556 = vadd.f32 0.0, %v1555
    %v1557 = vpop.f32.mrf.mxu0
    %v1558 = vadd.f32 0.0, %v1557
    %1559 = vmatmul.bf16.gmra.mxu0 %v1541
    %v1560 = vpop.f32.mrf.mxu0
    %v1561 = vadd.f32 0.0, %v1560
    %v1562 = vpop.f32.mrf.mxu0
    %1563 = vdwg.mxu0
    %v1564 = vmul.f32 %v1556, 0.35355338
    %v1565 = vmul.f32 %v1558, 0.35355338
    %v1566 = vmul.f32 %v1561, 0.35355338
    %v1567 = vadd.f32 %v1564, %v135
    %v1568 = vadd.f32 %v1565, %v135
    %v1569 = vadd.f32 %v1566, %v135
    %v1570 = vsel %vm511, %v1567, -inf
    %1571 = vmax.xlane.f32.xlu0 %v1570
    %v1572 = vpop.xlane.xlu0 %1571
    %v1573 = vsel %vm511, %v1568, -inf
    %1574 = vmax.xlane.f32.xlu0 %v1573
    %v1575 = vpop.xlane.xlu0 %1574
    %v1576 = vsel %vm511, %v1569, -inf
    %1577 = vmax.xlane.f32.xlu0 %v1576
    %v1578 = vpop.xlane.xlu0 %1577
    %v1579 = vsub.f32 %v1567, %v1572
    %v1580 = vsub.f32 %v1568, %v1575
    %v1581 = vsub.f32 %v1569, %v1578
    %v1582 = vmul.f32 %v1579, 1.442695
    %v1583 = vpow.pop %v1582
    %v1584 = vmul.f32 %v1580, 1.442695
    %v1585 = vpow.pop %v1584
    %v1586 = vmul.f32 %v1581, 1.442695
    %v1587 = vpow.pop %v1586
    %v1588 = vsel %vm511, %v1583, 0.0
    %1589 = vadd.xlane.f32.xlu0 %v1588
    %v1590 = vpop.xlane.xlu0 %1589
    %v1591 = vsel %vm511, %v1585, 0.0
    %1592 = vadd.xlane.f32.xlu0 %v1591
    %v1593 = vpop.xlane.xlu0 %1592
    %v1594 = vsel %vm511, %v1587, 0.0
    %1595 = vadd.xlane.f32.xlu0 %v1594
    %v1596 = vpop.xlane.xlu0 %1595
    %v1597 = vrcp.pop %v1590
    %v1598 = vmul.f32 %v1590, %v1597
    %v1599 = vsub.f32 1.0, %v1598
    %v1600 = vmul.f32 %v1597, %v1599
    %v1601 = vadd.f32 %v1597, %v1600
    %vm1602 = vweird.f32 %v1590
    %vm1603 = vweird.f32 %v1597
    %vm1604 = vmor %vm1602, %vm1603
    %v1605 = vsel %vm1604, %v1597, %v1601
    %v1606 = vand.u32 2147483647, %v1590
    %vm1607 = vcmp.eq.f32.partialorder %v1606, 8.507059e+37
    %v1608 = vand.u32 %v1590, 2147483648
    %v1609 = vor.u32 1.1754944e-38, %v1608
    %v1610 = vsel %vm1607, %v1609, %v1605
    %v1611 = vmul.f32 %v1583, %v1610
    %v1612 = vrcp.pop %v1593
    %v1613 = vmul.f32 %v1593, %v1612
    %v1614 = vsub.f32 1.0, %v1613
    %v1615 = vmul.f32 %v1612, %v1614
    %v1616 = vadd.f32 %v1612, %v1615
    %vm1617 = vweird.f32 %v1593
    %vm1618 = vweird.f32 %v1612
    %vm1619 = vmor %vm1617, %vm1618
    %v1620 = vsel %vm1619, %v1612, %v1616
    %v1621 = vand.u32 2147483647, %v1593
    %vm1622 = vcmp.eq.f32.partialorder %v1621, 8.507059e+37
    %v1623 = vand.u32 %v1593, 2147483648
    %v1624 = vor.u32 1.1754944e-38, %v1623
    %v1625 = vsel %vm1622, %v1624, %v1620
    %v1626 = vmul.f32 %v1585, %v1625
    %v1627 = vrcp.pop %v1596
    %v1628 = vmul.f32 %v1596, %v1627
    %v1629 = vsub.f32 1.0, %v1628
    %v1630 = vmul.f32 %v1627, %v1629
    %v1631 = vadd.f32 %v1627, %v1630
    %vm1632 = vweird.f32 %v1596
    %vm1633 = vweird.f32 %v1627
    %vm1634 = vmor %vm1632, %vm1633
    %v1635 = vsel %vm1634, %v1627, %v1631
    %v1636 = vand.u32 2147483647, %v1596
    %vm1637 = vcmp.eq.f32.partialorder %v1636, 8.507059e+37
    %v1638 = vand.u32 %v1596, 2147483648
    %v1639 = vor.u32 1.1754944e-38, %v1638
    %v1640 = vsel %vm1637, %v1639, %v1635
    %v1641 = vmul.f32 %v1587, %v1640
    %v1642 = vpack.c.bf16 %v1626, %v1611
    %v1643 = vpack.c.bf16 %v1641, %v1641
    %1644 = vrot.lane.b32.xlu0 %v1345, 56
    %v1645 = vpop.permute.xlu0 %1644
    %1646 = vrot.lane.b32.xlu0 %v1346, 56
    %v1647 = vpop.permute.xlu0 %1646
    %v1650 = vsel %vm511, %v1642, 0
    %v1653 = vsel %vm511, %v1643, 0
    %v1656 = vsel %vm483, %v1647, 0
    %1658 = vmatpush.bf16.msra.mxu0 0
    %1659 = vmatpush.bf16.msra.mxu0 0
    %1660 = vmatpush.bf16.msra.mxu0 0
    %1661 = vmatpush.bf16.msra.mxu0 0
    %1662 = vmatpush.bf16.msra.mxu0 0
    %1663 = vmatpush.bf16.msra.mxu0 0
    %1664 = vmatpush.bf16.msra.mxu0 %v1656
    %1665 = vmatpush.bf16.msra.mxu0 %v1645
    %1666 = vmatmul.bf16.gmra.mxu0 %v1650
    %v1667 = vpop.f32.mrf.mxu0
    %v1668 = vadd.f32 0.0, %v1667
    %v1669 = vpop.f32.mrf.mxu0
    %v1670 = vadd.f32 0.0, %v1669
    %1671 = vmatmul.bf16.gmra.mxu0 %v1653
    %v1672 = vpop.f32.mrf.mxu0
    %v1673 = vadd.f32 0.0, %v1672
    %v1674 = vpop.f32.mrf.mxu0
    %1675 = vdwg.mxu0
    %v1676 = vpack.c.bf16 %v1670, %v1668
    %v1677 = vpack.c.bf16 %v1673, %v1673
    %v1679 = vsel %vm476, %v1676, 0
    %v1682 = vsel %vm476, %v1677, 0
    %1684 = vmatpush.bf16.msra.mxu0 0
    %1685 = vmatpush.bf16.msra.mxu0 0
    %1686 = vmatpush.bf16.msra.mxu0 0
    %1687 = vmatpush.bf16.msra.mxu0 0
    %1688 = vmatpush.bf16.msra.mxu0 0
    %1689 = vmatpush.bf16.msra.mxu0 0
    %1690 = vmatpush.bf16.msra.mxu0 0
    %1691 = vmatpush.bf16.msra.mxu0 %v818
    %1692 = vmatmul.bf16.gmra.mxu0 %v1679
    %v1693 = vpop.f32.mrf.mxu0
    %v1694 = vadd.f32 0.0, %v1693
    %v1695 = vpop.f32.mrf.mxu0
    %v1696 = vadd.f32 0.0, %v1695
    %1697 = vmatmul.bf16.gmra.mxu0 %v1682
    %v1698 = vpop.f32.mrf.mxu0
    %v1699 = vadd.f32 0.0, %v1698
    %v1700 = vpop.f32.mrf.mxu0
    %1701 = vdwg.mxu0
    %v1703 = vsel %vm476, %v1489, 0
    %v1706 = vsel %vm476, %v1490, 0
    %1708 = vmatpush.bf16.msra.mxu0 0
    %1709 = vmatpush.bf16.msra.mxu0 0
    %1710 = vmatpush.bf16.msra.mxu0 0
    %1711 = vmatpush.bf16.msra.mxu0 0
    %1712 = vmatpush.bf16.msra.mxu0 0
    %1713 = vmatpush.bf16.msra.mxu0 0
    %1714 = vmatpush.bf16.msra.mxu0 0
    %1715 = vmatpush.bf16.msra.mxu0 %v845
    %1716 = vmatmul.bf16.gmra.mxu0 %v1703
    %v1717 = vpop.f32.mrf.mxu0
    %v1718 = vadd.f32 %v1694, %v1717
    %v1719 = vpop.f32.mrf.mxu0
    %v1720 = vadd.f32 %v1696, %v1719
    %1721 = vmatmul.bf16.gmra.mxu0 %v1706
    %v1722 = vpop.f32.mrf.mxu0
    %v1723 = vadd.f32 %v1699, %v1722
    %v1724 = vpop.f32.mrf.mxu0
    %1725 = vdwg.mxu0
    %1726 = vrot.lane.b32.xlu0 %v422, 80
    %v1727 = vpop.permute.xlu0 %1726
    %1728 = vrot.lane.b32.xlu0 %v425, 80
    %v1729 = vpop.permute.xlu0 %1728
    %1730 = vrot.lane.b32.xlu0 %v427, 80
    %v1731 = vpop.permute.xlu0 %1730
    %1735 = vxpose.xlu0.b32.start [1/16] %v1727, 128
    %1736 = vxpose.xlu0.b32.cont [2/16] %v1729, 128
    %1737 = vxpose.xlu0.b32.cont [3/16] %v1731, 128
    %1738 = vxpose.xlu0.b32.cont [4/16] 0.0, 128
    %1739 = vxpose.xlu0.b32.cont [5/16] 0.0, 128
    %1740 = vxpose.xlu0.b32.cont [6/16] 0.0, 128
    %1741 = vxpose.xlu0.b32.cont [7/16] 0.0, 128
    %1742 = vxpose.xlu0.b32.cont [8/16] 0.0, 128
    %1743 = vxpose.xlu0.b32.cont [9/16] 0.0, 128
    %1744 = vxpose.xlu0.b32.cont [10/16] 0.0, 128
    %1745 = vxpose.xlu0.b32.cont [11/16] 0.0, 128
    %1746 = vxpose.xlu0.b32.cont [12/16] 0.0, 128
    %1747 = vxpose.xlu0.b32.cont [13/16] 0.0, 128
    %1748 = vxpose.xlu0.b32.cont [14/16] 0.0, 128
    %1749 = vxpose.xlu0.b32.cont [15/16] 0.0, 128
    %1750 = vxpose.xlu0.b32.end [16/16] 0.0, 128
    %v1751 = vpop.trf.xlu0
    %v1752 = vpop.trf.xlu0
    %v1753 = vpop.trf.xlu0
    %v1754 = vpop.trf.xlu0
    %v1755 = vpop.trf.xlu0
    %v1756 = vpop.trf.xlu0
    %v1757 = vpop.trf.xlu0
    %v1758 = vpop.trf.xlu0
    %v1759 = vpop.trf.xlu0
    %v1760 = vpop.trf.xlu0
    %v1761 = vpop.trf.xlu0
    %v1762 = vpop.trf.xlu0
    %v1763 = vpop.trf.xlu0
    %v1764 = vpop.trf.xlu0
    %v1765 = vpop.trf.xlu0
    %v1766 = vpop.trf.xlu0
    %v1767 = vpack.c.bf16 %v1751, %v1751
    %1768 = vrot.lane.b32.xlu0 %v1345, 112
    %v1769 = vpop.permute.xlu0 %1768
    %1770 = vrot.lane.b32.xlu0 %v1346, 112
    %v1771 = vpop.permute.xlu0 %1770
    %v1773 = vsel %vm476, %v1769, 0
    %v1776 = vsel %vm476, %v1771, 0
    %v1779 = vsel %vm483, %v1767, 0
    %1781 = vmatpush.bf16.msra.mxu0 0
    %1782 = vmatpush.bf16.msra.mxu0 0
    %1783 = vmatpush.bf16.msra.mxu0 0
    %1784 = vmatpush.bf16.msra.mxu0 0
    %1785 = vmatpush.bf16.msra.mxu0 0
    %1786 = vmatpush.bf16.msra.mxu0 0
    %1787 = vmatpush.bf16.msra.mxu0 0
    %1788 = vmatpush.bf16.msra.mxu0 %v1779
    %1789 = vmatmul.bf16.gmra.mxu0 %v1773
    %v1790 = vpop.f32.mrf.mxu0
    %v1791 = vadd.f32 0.0, %v1790
    %v1792 = vpop.f32.mrf.mxu0
    %v1793 = vadd.f32 0.0, %v1792
    %1794 = vmatmul.bf16.gmra.mxu0 %v1776
    %v1795 = vpop.f32.mrf.mxu0
    %v1796 = vadd.f32 0.0, %v1795
    %v1797 = vpop.f32.mrf.mxu0
    %1798 = vdwg.mxu0
    %v1799 = vmul.f32 %v1791, 0.35355338
    %v1800 = vmul.f32 %v1793, 0.35355338
    %v1801 = vmul.f32 %v1796, 0.35355338
    %v1802 = vadd.f32 %v1799, %v135
    %v1803 = vadd.f32 %v1800, %v135
    %v1804 = vadd.f32 %v1801, %v135
    %v1805 = vsel %vm511, %v1802, -inf
    %1806 = vmax.xlane.f32.xlu0 %v1805
    %v1807 = vpop.xlane.xlu0 %1806
    %v1808 = vsel %vm511, %v1803, -inf
    %1809 = vmax.xlane.f32.xlu0 %v1808
    %v1810 = vpop.xlane.xlu0 %1809
    %v1811 = vsel %vm511, %v1804, -inf
    %1812 = vmax.xlane.f32.xlu0 %v1811
    %v1813 = vpop.xlane.xlu0 %1812
    %v1814 = vsub.f32 %v1802, %v1807
    %v1815 = vsub.f32 %v1803, %v1810
    %v1816 = vsub.f32 %v1804, %v1813
    %v1817 = vmul.f32 %v1814, 1.442695
    %v1818 = vpow.pop %v1817
    %v1819 = vmul.f32 %v1815, 1.442695
    %v1820 = vpow.pop %v1819
    %v1821 = vmul.f32 %v1816, 1.442695
    %v1822 = vpow.pop %v1821
    %v1823 = vsel %vm511, %v1818, 0.0
    %1824 = vadd.xlane.f32.xlu0 %v1823
    %v1825 = vpop.xlane.xlu0 %1824
    %v1826 = vsel %vm511, %v1820, 0.0
    %1827 = vadd.xlane.f32.xlu0 %v1826
    %v1828 = vpop.xlane.xlu0 %1827
    %v1829 = vsel %vm511, %v1822, 0.0
    %1830 = vadd.xlane.f32.xlu0 %v1829
    %v1831 = vpop.xlane.xlu0 %1830
    %v1832 = vrcp.pop %v1825
    %v1833 = vmul.f32 %v1825, %v1832
    %v1834 = vsub.f32 1.0, %v1833
    %v1835 = vmul.f32 %v1832, %v1834
    %v1836 = vadd.f32 %v1832, %v1835
    %vm1837 = vweird.f32 %v1825
    %vm1838 = vweird.f32 %v1832
    %vm1839 = vmor %vm1837, %vm1838
    %v1840 = vsel %vm1839, %v1832, %v1836
    %v1841 = vand.u32 2147483647, %v1825
    %vm1842 = vcmp.eq.f32.partialorder %v1841, 8.507059e+37
    %v1843 = vand.u32 %v1825, 2147483648
    %v1844 = vor.u32 1.1754944e-38, %v1843
    %v1845 = vsel %vm1842, %v1844, %v1840
    %v1846 = vmul.f32 %v1818, %v1845
    %v1847 = vrcp.pop %v1828
    %v1848 = vmul.f32 %v1828, %v1847
    %v1849 = vsub.f32 1.0, %v1848
    %v1850 = vmul.f32 %v1847, %v1849
    %v1851 = vadd.f32 %v1847, %v1850
    %vm1852 = vweird.f32 %v1828
    %vm1853 = vweird.f32 %v1847
    %vm1854 = vmor %vm1852, %vm1853
    %v1855 = vsel %vm1854, %v1847, %v1851
    %v1856 = vand.u32 2147483647, %v1828
    %vm1857 = vcmp.eq.f32.partialorder %v1856, 8.507059e+37
    %v1858 = vand.u32 %v1828, 2147483648
    %v1859 = vor.u32 1.1754944e-38, %v1858
    %v1860 = vsel %vm1857, %v1859, %v1855
    %v1861 = vmul.f32 %v1820, %v1860
    %v1862 = vrcp.pop %v1831
    %v1863 = vmul.f32 %v1831, %v1862
    %v1864 = vsub.f32 1.0, %v1863
    %v1865 = vmul.f32 %v1862, %v1864
    %v1866 = vadd.f32 %v1862, %v1865
    %vm1867 = vweird.f32 %v1831
    %vm1868 = vweird.f32 %v1862
    %vm1869 = vmor %vm1867, %vm1868
    %v1870 = vsel %vm1869, %v1862, %v1866
    %v1871 = vand.u32 2147483647, %v1831
    %vm1872 = vcmp.eq.f32.partialorder %v1871, 8.507059e+37
    %v1873 = vand.u32 %v1831, 2147483648
    %v1874 = vor.u32 1.1754944e-38, %v1873
    %v1875 = vsel %vm1872, %v1874, %v1870
    %v1876 = vmul.f32 %v1822, %v1875
    %v1877 = vpack.c.bf16 %v1861, %v1846
    %v1878 = vpack.c.bf16 %v1876, %v1876
    %1879 = vrot.lane.b32.xlu0 %v1345, 48
    %v1880 = vpop.permute.xlu0 %1879
    %1881 = vrot.lane.b32.xlu0 %v1346, 48
    %v1882 = vpop.permute.xlu0 %1881
    %v1885 = vsel %vm511, %v1877, 0
    %v1888 = vsel %vm511, %v1878, 0
    %v1891 = vsel %vm483, %v1882, 0
    %1893 = vmatpush.bf16.msra.mxu0 0
    %1894 = vmatpush.bf16.msra.mxu0 0
    %1895 = vmatpush.bf16.msra.mxu0 0
    %1896 = vmatpush.bf16.msra.mxu0 0
    %1897 = vmatpush.bf16.msra.mxu0 0
    %1898 = vmatpush.bf16.msra.mxu0 0
    %1899 = vmatpush.bf16.msra.mxu0 %v1891
    %1900 = vmatpush.bf16.msra.mxu0 %v1880
    %1901 = vmatmul.bf16.gmra.mxu0 %v1885
    %v1902 = vpop.f32.mrf.mxu0
    %v1903 = vadd.f32 0.0, %v1902
    %v1904 = vpop.f32.mrf.mxu0
    %v1905 = vadd.f32 0.0, %v1904
    %1906 = vmatmul.bf16.gmra.mxu0 %v1888
    %v1907 = vpop.f32.mrf.mxu0
    %v1908 = vadd.f32 0.0, %v1907
    %v1909 = vpop.f32.mrf.mxu0
    %1910 = vdwg.mxu0
    %v1911 = vpack.c.bf16 %v1905, %v1903
    %v1912 = vpack.c.bf16 %v1908, %v1908
    %v1914 = vsel %vm476, %v1911, 0
    %v1917 = vsel %vm476, %v1912, 0
    %1919 = vmatpush.bf16.msra.mxu0 0
    %1920 = vmatpush.bf16.msra.mxu0 0
    %1921 = vmatpush.bf16.msra.mxu0 0
    %1922 = vmatpush.bf16.msra.mxu0 0
    %1923 = vmatpush.bf16.msra.mxu0 0
    %1924 = vmatpush.bf16.msra.mxu0 0
    %1925 = vmatpush.bf16.msra.mxu0 0
    %1926 = vmatpush.bf16.msra.mxu0 %v1060
    %1927 = vmatmul.bf16.gmra.mxu0 %v1914
    %v1928 = vpop.f32.mrf.mxu0
    %v1929 = vadd.f32 0.0, %v1928
    %v1930 = vpop.f32.mrf.mxu0
    %v1931 = vadd.f32 0.0, %v1930
    %1932 = vmatmul.bf16.gmra.mxu0 %v1917
    %v1933 = vpop.f32.mrf.mxu0
    %v1934 = vadd.f32 0.0, %v1933
    %v1935 = vpop.f32.mrf.mxu0
    %1936 = vdwg.mxu0
    %v1937 = vadd.f32 %v1718, %v1929
    %v1938 = vadd.f32 %v1720, %v1931
    %v1939 = vadd.f32 %v1723, %v1934
    %1940 = vrot.lane.b32.xlu0 %v422, 72
    %v1941 = vpop.permute.xlu0 %1940
    %1942 = vrot.lane.b32.xlu0 %v425, 72
    %v1943 = vpop.permute.xlu0 %1942
    %1944 = vrot.lane.b32.xlu0 %v427, 72
    %v1945 = vpop.permute.xlu0 %1944
    %1949 = vxpose.xlu0.b32.start [1/16] %v1941, 128
    %1950 = vxpose.xlu0.b32.cont [2/16] %v1943, 128
    %1951 = vxpose.xlu0.b32.cont [3/16] %v1945, 128
    %1952 = vxpose.xlu0.b32.cont [4/16] 0.0, 128
    %1953 = vxpose.xlu0.b32.cont [5/16] 0.0, 128
    %1954 = vxpose.xlu0.b32.cont [6/16] 0.0, 128
    %1955 = vxpose.xlu0.b32.cont [7/16] 0.0, 128
    %1956 = vxpose.xlu0.b32.cont [8/16] 0.0, 128
    %1957 = vxpose.xlu0.b32.cont [9/16] 0.0, 128
    %1958 = vxpose.xlu0.b32.cont [10/16] 0.0, 128
    %1959 = vxpose.xlu0.b32.cont [11/16] 0.0, 128
    %1960 = vxpose.xlu0.b32.cont [12/16] 0.0, 128
    %1961 = vxpose.xlu0.b32.cont [13/16] 0.0, 128
    %1962 = vxpose.xlu0.b32.cont [14/16] 0.0, 128
    %1963 = vxpose.xlu0.b32.cont [15/16] 0.0, 128
    %1964 = vxpose.xlu0.b32.end [16/16] 0.0, 128
    %v1965 = vpop.trf.xlu0
    %v1966 = vpop.trf.xlu0
    %v1967 = vpop.trf.xlu0
    %v1968 = vpop.trf.xlu0
    %v1969 = vpop.trf.xlu0
    %v1970 = vpop.trf.xlu0
    %v1971 = vpop.trf.xlu0
    %v1972 = vpop.trf.xlu0
    %v1973 = vpop.trf.xlu0
    %v1974 = vpop.trf.xlu0
    %v1975 = vpop.trf.xlu0
    %v1976 = vpop.trf.xlu0
    %v1977 = vpop.trf.xlu0
    %v1978 = vpop.trf.xlu0
    %v1979 = vpop.trf.xlu0
    %v1980 = vpop.trf.xlu0
    %v1981 = vpack.c.bf16 %v1965, %v1965
    %1982 = vrot.lane.b32.xlu0 %v1345, 104
    %v1983 = vpop.permute.xlu0 %1982
    %1984 = vrot.lane.b32.xlu0 %v1346, 104
    %v1985 = vpop.permute.xlu0 %1984
    %v1987 = vsel %vm476, %v1983, 0
    %v1990 = vsel %vm476, %v1985, 0
    %v1993 = vsel %vm483, %v1981, 0
    %1995 = vmatpush.bf16.msra.mxu0 0
    %1996 = vmatpush.bf16.msra.mxu0 0
    %1997 = vmatpush.bf16.msra.mxu0 0
    %1998 = vmatpush.bf16.msra.mxu0 0
    %1999 = vmatpush.bf16.msra.mxu0 0
    %2000 = vmatpush.bf16.msra.mxu0 0
    %2001 = vmatpush.bf16.msra.mxu0 0
    %2002 = vmatpush.bf16.msra.mxu0 %v1993
    %2003 = vmatmul.bf16.gmra.mxu0 %v1987
    %v2004 = vpop.f32.mrf.mxu0
    %v2005 = vadd.f32 0.0, %v2004
    %v2006 = vpop.f32.mrf.mxu0
    %v2007 = vadd.f32 0.0, %v2006
    %2008 = vmatmul.bf16.gmra.mxu0 %v1990
    %v2009 = vpop.f32.mrf.mxu0
    %v2010 = vadd.f32 0.0, %v2009
    %v2011 = vpop.f32.mrf.mxu0
    %2012 = vdwg.mxu0
    %v2013 = vmul.f32 %v2005, 0.35355338
    %v2014 = vmul.f32 %v2007, 0.35355338
    %v2015 = vmul.f32 %v2010, 0.35355338
    %v2016 = vadd.f32 %v2013, %v135
    %v2017 = vadd.f32 %v2014, %v135
    %v2018 = vadd.f32 %v2015, %v135
    %v2019 = vsel %vm511, %v2016, -inf
    %2020 = vmax.xlane.f32.xlu0 %v2019
    %v2021 = vpop.xlane.xlu0 %2020
    %v2022 = vsel %vm511, %v2017, -inf
    %2023 = vmax.xlane.f32.xlu0 %v2022
    %v2024 = vpop.xlane.xlu0 %2023
    %v2025 = vsel %vm511, %v2018, -inf
    %2026 = vmax.xlane.f32.xlu0 %v2025
    %v2027 = vpop.xlane.xlu0 %2026
    %v2028 = vsub.f32 %v2016, %v2021
    %v2029 = vsub.f32 %v2017, %v2024
    %v2030 = vsub.f32 %v2018, %v2027
    %v2031 = vmul.f32 %v2028, 1.442695
    %v2032 = vpow.pop %v2031
    %v2033 = vmul.f32 %v2029, 1.442695
    %v2034 = vpow.pop %v2033
    %v2035 = vmul.f32 %v2030, 1.442695
    %v2036 = vpow.pop %v2035
    %v2037 = vsel %vm511, %v2032, 0.0
    %2038 = vadd.xlane.f32.xlu0 %v2037
    %v2039 = vpop.xlane.xlu0 %2038
    %v2040 = vsel %vm511, %v2034, 0.0
    %2041 = vadd.xlane.f32.xlu0 %v2040
    %v2042 = vpop.xlane.xlu0 %2041
    %v2043 = vsel %vm511, %v2036, 0.0
    %2044 = vadd.xlane.f32.xlu0 %v2043
    %v2045 = vpop.xlane.xlu0 %2044
    %v2046 = vrcp.pop %v2039
    %v2047 = vmul.f32 %v2039, %v2046
    %v2048 = vsub.f32 1.0, %v2047
    %v2049 = vmul.f32 %v2046, %v2048
    %v2050 = vadd.f32 %v2046, %v2049
    %vm2051 = vweird.f32 %v2039
    %vm2052 = vweird.f32 %v2046
    %vm2053 = vmor %vm2051, %vm2052
    %v2054 = vsel %vm2053, %v2046, %v2050
    %v2055 = vand.u32 2147483647, %v2039
    %vm2056 = vcmp.eq.f32.partialorder %v2055, 8.507059e+37
    %v2057 = vand.u32 %v2039, 2147483648
    %v2058 = vor.u32 1.1754944e-38, %v2057
    %v2059 = vsel %vm2056, %v2058, %v2054
    %v2060 = vmul.f32 %v2032, %v2059
    %v2061 = vrcp.pop %v2042
    %v2062 = vmul.f32 %v2042, %v2061
    %v2063 = vsub.f32 1.0, %v2062
    %v2064 = vmul.f32 %v2061, %v2063
    %v2065 = vadd.f32 %v2061, %v2064
    %vm2066 = vweird.f32 %v2042
    %vm2067 = vweird.f32 %v2061
    %vm2068 = vmor %vm2066, %vm2067
    %v2069 = vsel %vm2068, %v2061, %v2065
    %v2070 = vand.u32 2147483647, %v2042
    %vm2071 = vcmp.eq.f32.partialorder %v2070, 8.507059e+37
    %v2072 = vand.u32 %v2042, 2147483648
    %v2073 = vor.u32 1.1754944e-38, %v2072
    %v2074 = vsel %vm2071, %v2073, %v2069
    %v2075 = vmul.f32 %v2034, %v2074
    %v2076 = vrcp.pop %v2045
    %v2077 = vmul.f32 %v2045, %v2076
    %v2078 = vsub.f32 1.0, %v2077
    %v2079 = vmul.f32 %v2076, %v2078
    %v2080 = vadd.f32 %v2076, %v2079
    %vm2081 = vweird.f32 %v2045
    %vm2082 = vweird.f32 %v2076
    %vm2083 = vmor %vm2081, %vm2082
    %v2084 = vsel %vm2083, %v2076, %v2080
    %v2085 = vand.u32 2147483647, %v2045
    %vm2086 = vcmp.eq.f32.partialorder %v2085, 8.507059e+37
    %v2087 = vand.u32 %v2045, 2147483648
    %v2088 = vor.u32 1.1754944e-38, %v2087
    %v2089 = vsel %vm2086, %v2088, %v2084
    %v2090 = vmul.f32 %v2036, %v2089
    %v2091 = vpack.c.bf16 %v2075, %v2060
    %v2092 = vpack.c.bf16 %v2090, %v2090
    %2093 = vrot.lane.b32.xlu0 %v1345, 40
    %v2094 = vpop.permute.xlu0 %2093
    %2095 = vrot.lane.b32.xlu0 %v1346, 40
    %v2096 = vpop.permute.xlu0 %2095
    %v2099 = vsel %vm511, %v2091, 0
    %v2102 = vsel %vm511, %v2092, 0
    %v2105 = vsel %vm483, %v2096, 0
    %2107 = vmatpush.bf16.msra.mxu0 0
    %2108 = vmatpush.bf16.msra.mxu0 0
    %2109 = vmatpush.bf16.msra.mxu0 0
    %2110 = vmatpush.bf16.msra.mxu0 0
    %2111 = vmatpush.bf16.msra.mxu0 0
    %2112 = vmatpush.bf16.msra.mxu0 0
    %2113 = vmatpush.bf16.msra.mxu0 %v2105
    %2114 = vmatpush.bf16.msra.mxu0 %v2094
    %2115 = vmatmul.bf16.gmra.mxu0 %v2099
    %v2116 = vpop.f32.mrf.mxu0
    %v2117 = vadd.f32 0.0, %v2116
    %v2118 = vpop.f32.mrf.mxu0
    %v2119 = vadd.f32 0.0, %v2118
    %2120 = vmatmul.bf16.gmra.mxu0 %v2102
    %v2121 = vpop.f32.mrf.mxu0
    %v2122 = vadd.f32 0.0, %v2121
    %v2123 = vpop.f32.mrf.mxu0
    %2124 = vdwg.mxu0
    %v2125 = vpack.c.bf16 %v2119, %v2117
    %v2126 = vpack.c.bf16 %v2122, %v2122
    %v2128 = vsel %vm476, %v2125, 0
    %v2131 = vsel %vm476, %v2126, 0
    %2133 = vmatpush.bf16.msra.mxu0 0
    %2134 = vmatpush.bf16.msra.mxu0 0
    %2135 = vmatpush.bf16.msra.mxu0 0
    %2136 = vmatpush.bf16.msra.mxu0 0
    %2137 = vmatpush.bf16.msra.mxu0 0
    %2138 = vmatpush.bf16.msra.mxu0 0
    %2139 = vmatpush.bf16.msra.mxu0 0
    %2140 = vmatpush.bf16.msra.mxu0 %v1278
    %2141 = vmatmul.bf16.gmra.mxu0 %v2128
    %v2142 = vpop.f32.mrf.mxu0
    %v2143 = vadd.f32 0.0, %v2142
    %v2144 = vpop.f32.mrf.mxu0
    %v2145 = vadd.f32 0.0, %v2144
    %2146 = vmatmul.bf16.gmra.mxu0 %v2131
    %v2147 = vpop.f32.mrf.mxu0
    %v2148 = vadd.f32 0.0, %v2147
    %v2149 = vpop.f32.mrf.mxu0
    %2150 = vdwg.mxu0
    %v2151 = vadd.f32 %v1937, %v2143
    %v2152 = vadd.f32 %v1938, %v2145
    %v2153 = vadd.f32 %v1939, %v2148
    %v2154 = vadd.f32 %v180, %v1298
    %v2155 = vadd.f32 %v182, %v1299
    %v2156 = vadd.f32 %v185, %v1300
    %v2157 = vadd.f32 %v187, %v2151
    %v2158 = vadd.f32 %v190, %v2152
    %v2159 = vadd.f32 %v192, %v2153
    %v2161 = vperm.slane %v205, 0
    %v2163 = vadd.f32 %v2154, %v2161
    %v2164 = vadd.f32 %v2155, %v2161
    %v2165 = vadd.f32 %v2156, %v2161
    %v2166 = vadd.f32 %v2157, %v2161
    %v2167 = vadd.f32 %v2158, %v2161
    %v2168 = vadd.f32 %v2159, %v2161
    %v2169 = vsel %vm230, %v2163, 0.0
    %2170 = vadd.xlane.f32.xlu0 %v2169
    %v2171 = vpop.xlane.xlu0 %2170
    %v2172 = vsel %vm230, %v2164, 0.0
    %2173 = vadd.xlane.f32.xlu0 %v2172
    %v2174 = vpop.xlane.xlu0 %2173
    %v2175 = vsel %vm230, %v2165, 0.0
    %2176 = vadd.xlane.f32.xlu0 %v2175
    %v2177 = vpop.xlane.xlu0 %2176
    %v2178 = vsel %vm230, %v2166, 0.0
    %2179 = vadd.xlane.f32.xlu0 %v2178
    %v2180 = vpop.xlane.xlu0 %2179
    %v2181 = vsel %vm230, %v2167, 0.0
    %2182 = vadd.xlane.f32.xlu0 %v2181
    %v2183 = vpop.xlane.xlu0 %2182
    %v2184 = vsel %vm230, %v2168, 0.0
    %2185 = vadd.xlane.f32.xlu0 %v2184
    %v2186 = vpop.xlane.xlu0 %2185
    %v2187 = vmul.f32 %v2171, %v255
    %v2188 = vmul.f32 %v2174, %v255
    %v2189 = vmul.f32 %v2177, %v255
    %v2190 = vmul.f32 %v2180, %v255
    %v2191 = vmul.f32 %v2183, %v255
    %v2192 = vmul.f32 %v2186, %v255
    %v2193 = vsub.f32 %v2163, %v2187
    %v2194 = vsub.f32 %v2164, %v2188
    %v2195 = vsub.f32 %v2165, %v2189
    %v2196 = vsub.f32 %v2166, %v2190
    %v2197 = vsub.f32 %v2167, %v2191
    %v2198 = vsub.f32 %v2168, %v2192
    %v2199 = vmul.f32 %v2193, %v2193
    %v2200 = vmul.f32 %v2194, %v2194
    %v2201 = vmul.f32 %v2195, %v2195
    %v2202 = vmul.f32 %v2196, %v2196
    %v2203 = vmul.f32 %v2197, %v2197
    %v2204 = vmul.f32 %v2198, %v2198
    %v2205 = vsel %vm230, %v2199, 0.0
    %2206 = vadd.xlane.f32.xlu0 %v2205
    %v2207 = vpop.xlane.xlu0 %2206
    %v2208 = vsel %vm230, %v2200, 0.0
    %2209 = vadd.xlane.f32.xlu0 %v2208
    %v2210 = vpop.xlane.xlu0 %2209
    %v2211 = vsel %vm230, %v2201, 0.0
    %2212 = vadd.xlane.f32.xlu0 %v2211
    %v2213 = vpop.xlane.xlu0 %2212
    %v2214 = vsel %vm230, %v2202, 0.0
    %2215 = vadd.xlane.f32.xlu0 %v2214
    %v2216 = vpop.xlane.xlu0 %2215
    %v2217 = vsel %vm230, %v2203, 0.0
    %2218 = vadd.xlane.f32.xlu0 %v2217
    %v2219 = vpop.xlane.xlu0 %2218
    %v2220 = vsel %vm230, %v2204, 0.0
    %2221 = vadd.xlane.f32.xlu0 %v2220
    %v2222 = vpop.xlane.xlu0 %2221
    %v2223 = vmul.f32 %v2207, %v255
    %v2224 = vmul.f32 %v2210, %v255
    %v2225 = vmul.f32 %v2213, %v255
    %v2226 = vmul.f32 %v2216, %v255
    %v2227 = vmul.f32 %v2219, %v255
    %v2228 = vmul.f32 %v2222, %v255
    %v2229 = vadd.f32 %v2223, 1e-06
    %v2230 = vadd.f32 %v2224, 1e-06
    %v2231 = vadd.f32 %v2225, 1e-06
    %v2232 = vadd.f32 %v2226, 1e-06
    %v2233 = vadd.f32 %v2227, 1e-06
    %v2234 = vadd.f32 %v2228, 1e-06
    %v2235 = vrsqrt.pop %v2229
    %v2236 = vmul.f32 %v2235, %v2229
    %v2237 = vmul.f32 %v2236, %v2235
    %v2238 = vmul.f32 0.5, %v2237
    %v2239 = vsub.f32 1.5, %v2238
    %v2240 = vmul.f32 %v2235, %v2239
    %vm2241 = vweird.f32 %v2229
    %vm2242 = vweird.f32 %v2235
    %vm2243 = vmor %vm2241, %vm2242
    %v2244 = vsel %vm2243, %v2235, %v2240
    %v2245 = vrsqrt.pop %v2230
    %v2246 = vmul.f32 %v2245, %v2230
    %v2247 = vmul.f32 %v2246, %v2245
    %v2248 = vmul.f32 0.5, %v2247
    %v2249 = vsub.f32 1.5, %v2248
    %v2250 = vmul.f32 %v2245, %v2249
    %vm2251 = vweird.f32 %v2230
    %vm2252 = vweird.f32 %v2245
    %vm2253 = vmor %vm2251, %vm2252
    %v2254 = vsel %vm2253, %v2245, %v2250
    %v2255 = vrsqrt.pop %v2231
    %v2256 = vmul.f32 %v2255, %v2231
    %v2257 = vmul.f32 %v2256, %v2255
    %v2258 = vmul.f32 0.5, %v2257
    %v2259 = vsub.f32 1.5, %v2258
    %v2260 = vmul.f32 %v2255, %v2259
    %vm2261 = vweird.f32 %v2231
    %vm2262 = vweird.f32 %v2255
    %vm2263 = vmor %vm2261, %vm2262
    %v2264 = vsel %vm2263, %v2255, %v2260
    %v2265 = vrsqrt.pop %v2232
    %v2266 = vmul.f32 %v2265, %v2232
    %v2267 = vmul.f32 %v2266, %v2265
    %v2268 = vmul.f32 0.5, %v2267
    %v2269 = vsub.f32 1.5, %v2268
    %v2270 = vmul.f32 %v2265, %v2269
    %vm2271 = vweird.f32 %v2232
    %vm2272 = vweird.f32 %v2265
    %vm2273 = vmor %vm2271, %vm2272
    %v2274 = vsel %vm2273, %v2265, %v2270
    %v2275 = vrsqrt.pop %v2233
    %v2276 = vmul.f32 %v2275, %v2233
    %v2277 = vmul.f32 %v2276, %v2275
    %v2278 = vmul.f32 0.5, %v2277
    %v2279 = vsub.f32 1.5, %v2278
    %v2280 = vmul.f32 %v2275, %v2279
    %vm2281 = vweird.f32 %v2233
    %vm2282 = vweird.f32 %v2275
    %vm2283 = vmor %vm2281, %vm2282
    %v2284 = vsel %vm2283, %v2275, %v2280
    %v2285 = vrsqrt.pop %v2234
    %v2286 = vmul.f32 %v2285, %v2234
    %v2287 = vmul.f32 %v2286, %v2285
    %v2288 = vmul.f32 0.5, %v2287
    %v2289 = vsub.f32 1.5, %v2288
    %v2290 = vmul.f32 %v2285, %v2289
    %vm2291 = vweird.f32 %v2234
    %vm2292 = vweird.f32 %v2285
    %vm2293 = vmor %vm2291, %vm2292
    %v2294 = vsel %vm2293, %v2285, %v2290
    %v2295 = vmul.f32 %v2193, %v2244
    %v2296 = vmul.f32 %v2194, %v2254
    %v2297 = vmul.f32 %v2195, %v2264
    %v2298 = vmul.f32 %v2196, %v2274
    %v2299 = vmul.f32 %v2197, %v2284
    %v2300 = vmul.f32 %v2198, %v2294
    %v2302 = vperm.slane %v206, 0
    %v2304 = vmul.f32 %v2295, %v2302
    %v2305 = vmul.f32 %v2296, %v2302
    %v2306 = vmul.f32 %v2297, %v2302
    %v2307 = vmul.f32 %v2298, %v2302
    %v2308 = vmul.f32 %v2299, %v2302
    %v2309 = vmul.f32 %v2300, %v2302
    %v2311 = vperm.slane %v207, 0
    %v2313 = vadd.f32 %v2304, %v2311
    %v2314 = vadd.f32 %v2305, %v2311
    %v2315 = vadd.f32 %v2306, %v2311
    %v2316 = vadd.f32 %v2307, %v2311
    %v2317 = vadd.f32 %v2308, %v2311
    %v2318 = vadd.f32 %v2309, %v2311
    %v2319 = vpack.c.bf16 %v2314, %v2313
    %v2320 = vpack.c.bf16 %v2316, %v2315
    %v2321 = vpack.c.bf16 %v2318, %v2317
    %v2322 = vpack.c.bf16 %v209, %v208
    %v2323 = vpack.c.bf16 %v211, %v210
    %v2325 = vperm.slane %v212, 0
    %v2328 = vsel %vm230, %v2319, 0
    %v2331 = vsel %vm230, %v2320, 0
    %v2334 = vsel %vm230, %v2321, 0
    %2336 = vmatpush.bf16.msra.mxu0 0
    %2337 = vmatpush.bf16.msra.mxu0 0
    %2338 = vmatpush.bf16.msra.mxu0 0
    %2339 = vmatpush.bf16.msra.mxu0 0
    %2340 = vmatpush.bf16.msra.mxu0 0
    %2341 = vmatpush.bf16.msra.mxu0 0
    %2342 = vmatpush.bf16.msra.mxu0 %v2323
    %2343 = vmatpush.bf16.msra.mxu0 %v2322
    %2344 = vmatmul.bf16.gmra.mxu0 %v2328
    %v2345 = vpop.f32.mrf.mxu0
    %v2346 = vadd.f32 %v2325, %v2345
    %v2347 = vpop.f32.mrf.mxu0
    %v2348 = vadd.f32 %v2325, %v2347
    %2349 = vmatmul.bf16.gmra.mxu0 %v2331
    %v2350 = vpop.f32.mrf.mxu0
    %v2351 = vadd.f32 %v2325, %v2350
    %v2352 = vpop.f32.mrf.mxu0
    %v2353 = vadd.f32 %v2325, %v2352
    %2354 = vmatmul.bf16.gmra.mxu0 %v2334
    %v2355 = vpop.f32.mrf.mxu0
    %v2356 = vadd.f32 %v2325, %v2355
    %v2357 = vpop.f32.mrf.mxu0
    %v2358 = vadd.f32 %v2325, %v2357
    %2359 = vdwg.mxu0
    %v2360 = vmul.f32 %v2346, 0.5
    %v2361 = vmul.f32 %v2348, 0.5
    %v2362 = vmul.f32 %v2351, 0.5
    %v2363 = vmul.f32 %v2353, 0.5
    %v2364 = vmul.f32 %v2356, 0.5
    %v2365 = vmul.f32 %v2358, 0.5
    %v2366 = vmul.f32 %v2346, 0.70710677
    %v2367 = vmul.f32 %v2348, 0.70710677
    %v2368 = vmul.f32 %v2351, 0.70710677
    %v2369 = vmul.f32 %v2353, 0.70710677
    %v2370 = vmul.f32 %v2356, 0.70710677
    %v2371 = vmul.f32 %v2358, 0.70710677
    %v2372 = vmul.f32 %v2366, %v2366
    %v2373 = vmin.f32 16.0, %v2372
    %v2374 = vmul.f32 %v2373, 2.1237322e-06
    %v2375 = vadd.f32 %v2374, 0.00028619796
    %v2376 = vmul.f32 %v2373, %v2375
    %v2377 = vadd.f32 %v2376, 0.0036580483
    %v2378 = vmul.f32 %v2373, %v2377
    %v2379 = vadd.f32 %v2378, 0.05243302
    %v2380 = vmul.f32 %v2373, %v2379
    %v2381 = vadd.f32 %v2380, 0.18741608
    %v2382 = vmul.f32 %v2373, %v2381
    %v2383 = vadd.f32 %v2382, 1.1283791
    %v2384 = vmul.f32 %v2366, %v2383
    %v2385 = vmul.f32 %v2373, 3.8918573e-05
    %v2386 = vadd.f32 %v2385, 0.001143296
    %v2387 = vmul.f32 %v2373, %v2386
    %v2388 = vadd.f32 %v2387, 0.014752088
    %v2389 = vmul.f32 %v2373, %v2388
    %v2390 = vadd.f32 %v2389, 0.112945676
    %v2391 = vmul.f32 %v2373, %v2390
    %v2392 = vadd.f32 %v2391, 0.4994258
    %v2393 = vmul.f32 %v2373, %v2392
    %v2394 = vadd.f32 %v2393, 1.0
    %v2395 = vrcp.pop %v2394
    %v2396 = vmul.f32 %v2394, %v2395
    %v2397 = vsub.f32 1.0, %v2396
    %v2398 = vmul.f32 %v2395, %v2397
    %v2399 = vadd.f32 %v2395, %v2398
    %vm2400 = vweird.f32 %v2394
    %vm2401 = vweird.f32 %v2395
    %vm2402 = vmor %vm2400, %vm2401
    %v2403 = vsel %vm2402, %v2395, %v2399
    %v2404 = vand.u32 2147483647, %v2394
    %vm2405 = vcmp.eq.f32.partialorder %v2404, 8.507059e+37
    %v2406 = vand.u32 %v2394, 2147483648
    %v2407 = vor.u32 1.1754944e-38, %v2406
    %v2408 = vsel %vm2405, %v2407, %v2403
    %v2409 = vmul.f32 %v2384, %v2408
    %v2410 = vmin.f32 %v2409, 1.0
    %v2411 = vmax.f32 %v2410, -1.0
    %v2412 = vmul.f32 %v2367, %v2367
    %v2413 = vmin.f32 16.0, %v2412
    %v2414 = vmul.f32 %v2413, 2.1237322e-06
    %v2415 = vadd.f32 %v2414, 0.00028619796
    %v2416 = vmul.f32 %v2413, %v2415
    %v2417 = vadd.f32 %v2416, 0.0036580483
    %v2418 = vmul.f32 %v2413, %v2417
    %v2419 = vadd.f32 %v2418, 0.05243302
    %v2420 = vmul.f32 %v2413, %v2419
    %v2421 = vadd.f32 %v2420, 0.18741608
    %v2422 = vmul.f32 %v2413, %v2421
    %v2423 = vadd.f32 %v2422, 1.1283791
    %v2424 = vmul.f32 %v2367, %v2423
    %v2425 = vmul.f32 %v2413, 3.8918573e-05
    %v2426 = vadd.f32 %v2425, 0.001143296
    %v2427 = vmul.f32 %v2413, %v2426
    %v2428 = vadd.f32 %v2427, 0.014752088
    %v2429 = vmul.f32 %v2413, %v2428
    %v2430 = vadd.f32 %v2429, 0.112945676
    %v2431 = vmul.f32 %v2413, %v2430
    %v2432 = vadd.f32 %v2431, 0.4994258
    %v2433 = vmul.f32 %v2413, %v2432
    %v2434 = vadd.f32 %v2433, 1.0
    %v2435 = vrcp.pop %v2434
    %v2436 = vmul.f32 %v2434, %v2435
    %v2437 = vsub.f32 1.0, %v2436
    %v2438 = vmul.f32 %v2435, %v2437
    %v2439 = vadd.f32 %v2435, %v2438
    %vm2440 = vweird.f32 %v2434
    %vm2441 = vweird.f32 %v2435
    %vm2442 = vmor %vm2440, %vm2441
    %v2443 = vsel %vm2442, %v2435, %v2439
    %v2444 = vand.u32 2147483647, %v2434
    %vm2445 = vcmp.eq.f32.partialorder %v2444, 8.507059e+37
    %v2446 = vand.u32 %v2434, 2147483648
    %v2447 = vor.u32 1.1754944e-38, %v2446
    %v2448 = vsel %vm2445, %v2447, %v2443
    %v2449 = vmul.f32 %v2424, %v2448
    %v2450 = vmin.f32 %v2449, 1.0
    %v2451 = vmax.f32 %v2450, -1.0
    %v2452 = vmul.f32 %v2368, %v2368
    %v2453 = vmin.f32 16.0, %v2452
    %v2454 = vmul.f32 %v2453, 2.1237322e-06
    %v2455 = vadd.f32 %v2454, 0.00028619796
    %v2456 = vmul.f32 %v2453, %v2455
    %v2457 = vadd.f32 %v2456, 0.0036580483
    %v2458 = vmul.f32 %v2453, %v2457
    %v2459 = vadd.f32 %v2458, 0.05243302
    %v2460 = vmul.f32 %v2453, %v2459
    %v2461 = vadd.f32 %v2460, 0.18741608
    %v2462 = vmul.f32 %v2453, %v2461
    %v2463 = vadd.f32 %v2462, 1.1283791
    %v2464 = vmul.f32 %v2368, %v2463
    %v2465 = vmul.f32 %v2453, 3.8918573e-05
    %v2466 = vadd.f32 %v2465, 0.001143296
    %v2467 = vmul.f32 %v2453, %v2466
    %v2468 = vadd.f32 %v2467, 0.014752088
    %v2469 = vmul.f32 %v2453, %v2468
    %v2470 = vadd.f32 %v2469, 0.112945676
    %v2471 = vmul.f32 %v2453, %v2470
    %v2472 = vadd.f32 %v2471, 0.4994258
    %v2473 = vmul.f32 %v2453, %v2472
    %v2474 = vadd.f32 %v2473, 1.0
    %v2475 = vrcp.pop %v2474
    %v2476 = vmul.f32 %v2474, %v2475
    %v2477 = vsub.f32 1.0, %v2476
    %v2478 = vmul.f32 %v2475, %v2477
    %v2479 = vadd.f32 %v2475, %v2478
    %vm2480 = vweird.f32 %v2474
    %vm2481 = vweird.f32 %v2475
    %vm2482 = vmor %vm2480, %vm2481
    %v2483 = vsel %vm2482, %v2475, %v2479
    %v2484 = vand.u32 2147483647, %v2474
    %vm2485 = vcmp.eq.f32.partialorder %v2484, 8.507059e+37
    %v2486 = vand.u32 %v2474, 2147483648
    %v2487 = vor.u32 1.1754944e-38, %v2486
    %v2488 = vsel %vm2485, %v2487, %v2483
    %v2489 = vmul.f32 %v2464, %v2488
    %v2490 = vmin.f32 %v2489, 1.0
    %v2491 = vmax.f32 %v2490, -1.0
    %v2492 = vmul.f32 %v2369, %v2369
    %v2493 = vmin.f32 16.0, %v2492
    %v2494 = vmul.f32 %v2493, 2.1237322e-06
    %v2495 = vadd.f32 %v2494, 0.00028619796
    %v2496 = vmul.f32 %v2493, %v2495
    %v2497 = vadd.f32 %v2496, 0.0036580483
    %v2498 = vmul.f32 %v2493, %v2497
    %v2499 = vadd.f32 %v2498, 0.05243302
    %v2500 = vmul.f32 %v2493, %v2499
    %v2501 = vadd.f32 %v2500, 0.18741608
    %v2502 = vmul.f32 %v2493, %v2501
    %v2503 = vadd.f32 %v2502, 1.1283791
    %v2504 = vmul.f32 %v2369, %v2503
    %v2505 = vmul.f32 %v2493, 3.8918573e-05
    %v2506 = vadd.f32 %v2505, 0.001143296
    %v2507 = vmul.f32 %v2493, %v2506
    %v2508 = vadd.f32 %v2507, 0.014752088
    %v2509 = vmul.f32 %v2493, %v2508
    %v2510 = vadd.f32 %v2509, 0.112945676
    %v2511 = vmul.f32 %v2493, %v2510
    %v2512 = vadd.f32 %v2511, 0.4994258
    %v2513 = vmul.f32 %v2493, %v2512
    %v2514 = vadd.f32 %v2513, 1.0
    %v2515 = vrcp.pop %v2514
    %v2516 = vmul.f32 %v2514, %v2515
    %v2517 = vsub.f32 1.0, %v2516
    %v2518 = vmul.f32 %v2515, %v2517
    %v2519 = vadd.f32 %v2515, %v2518
    %vm2520 = vweird.f32 %v2514
    %vm2521 = vweird.f32 %v2515
    %vm2522 = vmor %vm2520, %vm2521
    %v2523 = vsel %vm2522, %v2515, %v2519
    %v2524 = vand.u32 2147483647, %v2514
    %vm2525 = vcmp.eq.f32.partialorder %v2524, 8.507059e+37
    %v2526 = vand.u32 %v2514, 2147483648
    %v2527 = vor.u32 1.1754944e-38, %v2526
    %v2528 = vsel %vm2525, %v2527, %v2523
    %v2529 = vmul.f32 %v2504, %v2528
    %v2530 = vmin.f32 %v2529, 1.0
    %v2531 = vmax.f32 %v2530, -1.0
    %v2532 = vmul.f32 %v2370, %v2370
    %v2533 = vmin.f32 16.0, %v2532
    %v2534 = vmul.f32 %v2533, 2.1237322e-06
    %v2535 = vadd.f32 %v2534, 0.00028619796
    %v2536 = vmul.f32 %v2533, %v2535
    %v2537 = vadd.f32 %v2536, 0.0036580483
    %v2538 = vmul.f32 %v2533, %v2537
    %v2539 = vadd.f32 %v2538, 0.05243302
    %v2540 = vmul.f32 %v2533, %v2539
    %v2541 = vadd.f32 %v2540, 0.18741608
    %v2542 = vmul.f32 %v2533, %v2541
    %v2543 = vadd.f32 %v2542, 1.1283791
    %v2544 = vmul.f32 %v2370, %v2543
    %v2545 = vmul.f32 %v2533, 3.8918573e-05
    %v2546 = vadd.f32 %v2545, 0.001143296
    %v2547 = vmul.f32 %v2533, %v2546
    %v2548 = vadd.f32 %v2547, 0.014752088
    %v2549 = vmul.f32 %v2533, %v2548
    %v2550 = vadd.f32 %v2549, 0.112945676
    %v2551 = vmul.f32 %v2533, %v2550
    %v2552 = vadd.f32 %v2551, 0.4994258
    %v2553 = vmul.f32 %v2533, %v2552
    %v2554 = vadd.f32 %v2553, 1.0
    %v2555 = vrcp.pop %v2554
    %v2556 = vmul.f32 %v2554, %v2555
    %v2557 = vsub.f32 1.0, %v2556
    %v2558 = vmul.f32 %v2555, %v2557
    %v2559 = vadd.f32 %v2555, %v2558
    %vm2560 = vweird.f32 %v2554
    %vm2561 = vweird.f32 %v2555
    %vm2562 = vmor %vm2560, %vm2561
    %v2563 = vsel %vm2562, %v2555, %v2559
    %v2564 = vand.u32 2147483647, %v2554
    %vm2565 = vcmp.eq.f32.partialorder %v2564, 8.507059e+37
    %v2566 = vand.u32 %v2554, 2147483648
    %v2567 = vor.u32 1.1754944e-38, %v2566
    %v2568 = vsel %vm2565, %v2567, %v2563
    %v2569 = vmul.f32 %v2544, %v2568
    %v2570 = vmin.f32 %v2569, 1.0
    %v2571 = vmax.f32 %v2570, -1.0
    %v2572 = vmul.f32 %v2371, %v2371
    %v2573 = vmin.f32 16.0, %v2572
    %v2574 = vmul.f32 %v2573, 2.1237322e-06
    %v2575 = vadd.f32 %v2574, 0.00028619796
    %v2576 = vmul.f32 %v2573, %v2575
    %v2577 = vadd.f32 %v2576, 0.0036580483
    %v2578 = vmul.f32 %v2573, %v2577
    %v2579 = vadd.f32 %v2578, 0.05243302
    %v2580 = vmul.f32 %v2573, %v2579
    %v2581 = vadd.f32 %v2580, 0.18741608
    %v2582 = vmul.f32 %v2573, %v2581
    %v2583 = vadd.f32 %v2582, 1.1283791
    %v2584 = vmul.f32 %v2371, %v2583
    %v2585 = vmul.f32 %v2573, 3.8918573e-05
    %v2586 = vadd.f32 %v2585, 0.001143296
    %v2587 = vmul.f32 %v2573, %v2586
    %v2588 = vadd.f32 %v2587, 0.014752088
    %v2589 = vmul.f32 %v2573, %v2588
    %v2590 = vadd.f32 %v2589, 0.112945676
    %v2591 = vmul.f32 %v2573, %v2590
    %v2592 = vadd.f32 %v2591, 0.4994258
    %v2593 = vmul.f32 %v2573, %v2592
    %v2594 = vadd.f32 %v2593, 1.0
    %v2595 = vrcp.pop %v2594
    %v2596 = vmul.f32 %v2594, %v2595
    %v2597 = vsub.f32 1.0, %v2596
    %v2598 = vmul.f32 %v2595, %v2597
    %v2599 = vadd.f32 %v2595, %v2598
    %vm2600 = vweird.f32 %v2594
    %vm2601 = vweird.f32 %v2595
    %vm2602 = vmor %vm2600, %vm2601
    %v2603 = vsel %vm2602, %v2595, %v2599
    %v2604 = vand.u32 2147483647, %v2594
    %vm2605 = vcmp.eq.f32.partialorder %v2604, 8.507059e+37
    %v2606 = vand.u32 %v2594, 2147483648
    %v2607 = vor.u32 1.1754944e-38, %v2606
    %v2608 = vsel %vm2605, %v2607, %v2603
    %v2609 = vmul.f32 %v2584, %v2608
    %v2610 = vmin.f32 %v2609, 1.0
    %v2611 = vmax.f32 %v2610, -1.0
    %v2612 = vadd.f32 %v2411, 1.0
    %v2613 = vadd.f32 %v2451, 1.0
    %v2614 = vadd.f32 %v2491, 1.0
    %v2615 = vadd.f32 %v2531, 1.0
    %v2616 = vadd.f32 %v2571, 1.0
    %v2617 = vadd.f32 %v2611, 1.0
    %v2618 = vmul.f32 %v2360, %v2612
    %v2619 = vmul.f32 %v2361, %v2613
    %v2620 = vmul.f32 %v2362, %v2614
    %v2621 = vmul.f32 %v2363, %v2615
    %v2622 = vmul.f32 %v2364, %v2616
    %v2623 = vmul.f32 %v2365, %v2617
    %v2624 = vpack.c.bf16 %v2619, %v2618
    %v2625 = vpack.c.bf16 %v2621, %v2620
    %v2626 = vpack.c.bf16 %v2623, %v2622
    %v2627 = vpack.c.bf16 %v214, %v213
    %v2628 = vpack.c.bf16 %v216, %v215
    %v2629 = vpack.c.bf16 %v218, %v217
    %v2630 = vpack.c.bf16 %v220, %v219
    %v2631 = vpack.c.bf16 %v222, %v221
    %v2632 = vpack.c.bf16 %v224, %v223
    %v2633 = vpack.c.bf16 %v226, %v225
    %v2634 = vpack.c.bf16 %v228, %v227
    %2635 = vmatpush.bf16.msra.mxu0 %v2634
    %2636 = vmatpush.bf16.msra.mxu0 %v2633
    %2637 = vmatpush.bf16.msra.mxu0 %v2632
    %2638 = vmatpush.bf16.msra.mxu0 %v2631
    %2639 = vmatpush.bf16.msra.mxu0 %v2630
    %2640 = vmatpush.bf16.msra.mxu0 %v2629
    %2641 = vmatpush.bf16.msra.mxu0 %v2628
    %2642 = vmatpush.bf16.msra.mxu0 %v2627
    %2643 = vmatmul.bf16.gmra.mxu0 %v2624
    %v2644 = vpop.f32.mrf.mxu0
    %v2645 = vadd.f32 0.0, %v2644
    %v2646 = vpop.f32.mrf.mxu0
    %v2647 = vadd.f32 0.0, %v2646
    %2648 = vmatmul.bf16.gmra.mxu0 %v2625
    %v2649 = vpop.f32.mrf.mxu0
    %v2650 = vadd.f32 0.0, %v2649
    %v2651 = vpop.f32.mrf.mxu0
    %v2652 = vadd.f32 0.0, %v2651
    %2653 = vmatmul.bf16.gmra.mxu0 %v2626
    %v2654 = vpop.f32.mrf.mxu0
    %v2655 = vadd.f32 0.0, %v2654
    %v2656 = vpop.f32.mrf.mxu0
    %v2657 = vadd.f32 0.0, %v2656
    %2658 = vdwg.mxu0
    %v2659 = vadd.f32 %v2163, %v2645
    %v2660 = vadd.f32 %v2164, %v2647
    %v2661 = vadd.f32 %v2165, %v2650
    %v2662 = vadd.f32 %v2166, %v2652
    %v2663 = vadd.f32 %v2167, %v2655
    %v2664 = vadd.f32 %v2168, %v2657
    %v2666 = vperm.slane %v229, 0
    %v2668 = vadd.f32 %v2659, %v2666
    %v2669 = vadd.f32 %v2660, %v2666
    %v2670 = vadd.f32 %v2661, %v2666
    %v2671 = vadd.f32 %v2662, %v2666
    %v2672 = vadd.f32 %v2663, %v2666
    %v2673 = vadd.f32 %v2664, %v2666
    %v2674 = vld [vmem:[%s31] sm:$0x1]
    %v2675 = vld [vmem:[%s33] sm:$0x1]
    %v2676 = vld [vmem:[%s35] sm:$0xff]
    %v2677 = vld [vmem:[%s35 + $0x8] sm:$0xff]
    %v2678 = vld [vmem:[%s35 + $0x10] sm:$0xff]
    %v2679 = vld [vmem:[%s35 + $0x18] sm:$0xff]
    %v2680 = vld [vmem:[%s37] sm:$0x1]
    %v2681 = vld [vmem:[%s39] sm:$0xff]
    %v2682 = vld [vmem:[%s39 + $0x8] sm:$0xff]
    %v2683 = vld [vmem:[%s39 + $0x10] sm:$0xff]
    %v2684 = vld [vmem:[%s39 + $0x18] sm:$0xff]
    %v2685 = vld [vmem:[%s41] sm:$0x1]
    %v2686 = vld [vmem:[%s43] sm:$0x1]
    %v2687 = vld [vmem:[%s45] sm:$0x1]
    %v2688 = vld [vmem:[%s47] sm:$0xff]
    %v2689 = vld [vmem:[%s47 + $0x8] sm:$0xff]
    %v2690 = vld [vmem:[%s47 + $0x10] sm:$0xff]
    %v2691 = vld [vmem:[%s47 + $0x18] sm:$0xff]
    %v2692 = vld [vmem:[%s49] sm:$0x1]
    %v2693 = vld [vmem:[%s51] sm:$0xff]
    %v2694 = vld [vmem:[%s51 + $0x8] sm:$0xff]
    %v2695 = vld [vmem:[%s51 + $0x10] sm:$0xff]
    %v2696 = vld [vmem:[%s51 + $0x18] sm:$0xff]
    %v2697 = vld [vmem:[%s51 + $0x20] sm:$0xff]
    %v2698 = vld [vmem:[%s51 + $0x28] sm:$0xff]
    %v2699 = vld [vmem:[%s51 + $0x30] sm:$0xff]
    %v2700 = vld [vmem:[%s51 + $0x38] sm:$0xff]
    %v2701 = vld [vmem:[%s51 + $0x40] sm:$0xff]
    %v2702 = vld [vmem:[%s51 + $0x48] sm:$0xff]
    %v2703 = vld [vmem:[%s51 + $0x50] sm:$0xff]
    %v2704 = vld [vmem:[%s51 + $0x58] sm:$0xff]
    %v2705 = vld [vmem:[%s51 + $0x60] sm:$0xff]
    %v2706 = vld [vmem:[%s51 + $0x68] sm:$0xff]
    %v2707 = vld [vmem:[%s51 + $0x70] sm:$0xff]
    %v2708 = vld [vmem:[%s51 + $0x78] sm:$0xff]
    %v2709 = vld [vmem:[%s53] sm:$0x1]
    %v2710 = vsel %vm230, %v2668, 0.0
    %2711 = vadd.xlane.f32.xlu0 %v2710
    %v2712 = vpop.xlane.xlu0 %2711
    %v2713 = vsel %vm230, %v2669, 0.0
    %2714 = vadd.xlane.f32.xlu0 %v2713
    %v2715 = vpop.xlane.xlu0 %2714
    %v2716 = vsel %vm230, %v2670, 0.0
    %2717 = vadd.xlane.f32.xlu0 %v2716
    %v2718 = vpop.xlane.xlu0 %2717
    %v2719 = vsel %vm230, %v2671, 0.0
    %2720 = vadd.xlane.f32.xlu0 %v2719
    %v2721 = vpop.xlane.xlu0 %2720
    %v2722 = vsel %vm230, %v2672, 0.0
    %2723 = vadd.xlane.f32.xlu0 %v2722
    %v2724 = vpop.xlane.xlu0 %2723
    %v2725 = vsel %vm230, %v2673, 0.0
    %2726 = vadd.xlane.f32.xlu0 %v2725
    %v2727 = vpop.xlane.xlu0 %2726
    %v2728 = vmul.f32 %v2712, %v255
    %v2729 = vmul.f32 %v2715, %v255
    %v2730 = vmul.f32 %v2718, %v255
    %v2731 = vmul.f32 %v2721, %v255
    %v2732 = vmul.f32 %v2724, %v255
    %v2733 = vmul.f32 %v2727, %v255
    %v2734 = vsub.f32 %v2668, %v2728
    %v2735 = vsub.f32 %v2669, %v2729
    %v2736 = vsub.f32 %v2670, %v2730
    %v2737 = vsub.f32 %v2671, %v2731
    %v2738 = vsub.f32 %v2672, %v2732
    %v2739 = vsub.f32 %v2673, %v2733
    %v2740 = vmul.f32 %v2734, %v2734
    %v2741 = vmul.f32 %v2735, %v2735
    %v2742 = vmul.f32 %v2736, %v2736
    %v2743 = vmul.f32 %v2737, %v2737
    %v2744 = vmul.f32 %v2738, %v2738
    %v2745 = vmul.f32 %v2739, %v2739
    %v2746 = vsel %vm230, %v2740, 0.0
    %2747 = vadd.xlane.f32.xlu0 %v2746
    %v2748 = vpop.xlane.xlu0 %2747
    %v2749 = vsel %vm230, %v2741, 0.0
    %2750 = vadd.xlane.f32.xlu0 %v2749
    %v2751 = vpop.xlane.xlu0 %2750
    %v2752 = vsel %vm230, %v2742, 0.0
    %2753 = vadd.xlane.f32.xlu0 %v2752
    %v2754 = vpop.xlane.xlu0 %2753
    %v2755 = vsel %vm230, %v2743, 0.0
    %2756 = vadd.xlane.f32.xlu0 %v2755
    %v2757 = vpop.xlane.xlu0 %2756
    %v2758 = vsel %vm230, %v2744, 0.0
    %2759 = vadd.xlane.f32.xlu0 %v2758
    %v2760 = vpop.xlane.xlu0 %2759
    %v2761 = vsel %vm230, %v2745, 0.0
    %2762 = vadd.xlane.f32.xlu0 %v2761
    %v2763 = vpop.xlane.xlu0 %2762
    %v2764 = vmul.f32 %v2748, %v255
    %v2765 = vmul.f32 %v2751, %v255
    %v2766 = vmul.f32 %v2754, %v255
    %v2767 = vmul.f32 %v2757, %v255
    %v2768 = vmul.f32 %v2760, %v255
    %v2769 = vmul.f32 %v2763, %v255
    %v2770 = vadd.f32 %v2764, 1e-06
    %v2771 = vadd.f32 %v2765, 1e-06
    %v2772 = vadd.f32 %v2766, 1e-06
    %v2773 = vadd.f32 %v2767, 1e-06
    %v2774 = vadd.f32 %v2768, 1e-06
    %v2775 = vadd.f32 %v2769, 1e-06
    %v2776 = vrsqrt.pop %v2770
    %v2777 = vmul.f32 %v2776, %v2770
    %v2778 = vmul.f32 %v2777, %v2776
    %v2779 = vmul.f32 0.5, %v2778
    %v2780 = vsub.f32 1.5, %v2779
    %v2781 = vmul.f32 %v2776, %v2780
    %vm2782 = vweird.f32 %v2770
    %vm2783 = vweird.f32 %v2776
    %vm2784 = vmor %vm2782, %vm2783
    %v2785 = vsel %vm2784, %v2776, %v2781
    %v2786 = vrsqrt.pop %v2771
    %v2787 = vmul.f32 %v2786, %v2771
    %v2788 = vmul.f32 %v2787, %v2786
    %v2789 = vmul.f32 0.5, %v2788
    %v2790 = vsub.f32 1.5, %v2789
    %v2791 = vmul.f32 %v2786, %v2790
    %vm2792 = vweird.f32 %v2771
    %vm2793 = vweird.f32 %v2786
    %vm2794 = vmor %vm2792, %vm2793
    %v2795 = vsel %vm2794, %v2786, %v2791
    %v2796 = vrsqrt.pop %v2772
    %v2797 = vmul.f32 %v2796, %v2772
    %v2798 = vmul.f32 %v2797, %v2796
    %v2799 = vmul.f32 0.5, %v2798
    %v2800 = vsub.f32 1.5, %v2799
    %v2801 = vmul.f32 %v2796, %v2800
    %vm2802 = vweird.f32 %v2772
    %vm2803 = vweird.f32 %v2796
    %vm2804 = vmor %vm2802, %vm2803
    %v2805 = vsel %vm2804, %v2796, %v2801
    %v2806 = vrsqrt.pop %v2773
    %v2807 = vmul.f32 %v2806, %v2773
    %v2808 = vmul.f32 %v2807, %v2806
    %v2809 = vmul.f32 0.5, %v2808
    %v2810 = vsub.f32 1.5, %v2809
    %v2811 = vmul.f32 %v2806, %v2810
    %vm2812 = vweird.f32 %v2773
    %vm2813 = vweird.f32 %v2806
    %vm2814 = vmor %vm2812, %vm2813
    %v2815 = vsel %vm2814, %v2806, %v2811
    %v2816 = vrsqrt.pop %v2774
    %v2817 = vmul.f32 %v2816, %v2774
    %v2818 = vmul.f32 %v2817, %v2816
    %v2819 = vmul.f32 0.5, %v2818
    %v2820 = vsub.f32 1.5, %v2819
    %v2821 = vmul.f32 %v2816, %v2820
    %vm2822 = vweird.f32 %v2774
    %vm2823 = vweird.f32 %v2816
    %vm2824 = vmor %vm2822, %vm2823
    %v2825 = vsel %vm2824, %v2816, %v2821
    %v2826 = vrsqrt.pop %v2775
    %v2827 = vmul.f32 %v2826, %v2775
    %v2828 = vmul.f32 %v2827, %v2826
    %v2829 = vmul.f32 0.5, %v2828
    %v2830 = vsub.f32 1.5, %v2829
    %v2831 = vmul.f32 %v2826, %v2830
    %vm2832 = vweird.f32 %v2775
    %vm2833 = vweird.f32 %v2826
    %vm2834 = vmor %vm2832, %vm2833
    %v2835 = vsel %vm2834, %v2826, %v2831
    %v2836 = vmul.f32 %v2734, %v2785
    %v2837 = vmul.f32 %v2735, %v2795
    %v2838 = vmul.f32 %v2736, %v2805
    %v2839 = vmul.f32 %v2737, %v2815
    %v2840 = vmul.f32 %v2738, %v2825
    %v2841 = vmul.f32 %v2739, %v2835
    %v2843 = vperm.slane %v2674, 0
    %v2845 = vmul.f32 %v2836, %v2843
    %v2846 = vmul.f32 %v2837, %v2843
    %v2847 = vmul.f32 %v2838, %v2843
    %v2848 = vmul.f32 %v2839, %v2843
    %v2849 = vmul.f32 %v2840, %v2843
    %v2850 = vmul.f32 %v2841, %v2843
    %v2852 = vperm.slane %v2675, 0
    %v2854 = vadd.f32 %v2845, %v2852
    %v2855 = vadd.f32 %v2846, %v2852
    %v2856 = vadd.f32 %v2847, %v2852
    %v2857 = vadd.f32 %v2848, %v2852
    %v2858 = vadd.f32 %v2849, %v2852
    %v2859 = vadd.f32 %v2850, %v2852
    %v2860 = vpack.c.bf16 %v2855, %v2854
    %v2861 = vpack.c.bf16 %v2857, %v2856
    %v2862 = vpack.c.bf16 %v2859, %v2858
    %v2863 = vpack.c.bf16 %v2677, %v2676
    %v2864 = vpack.c.bf16 %v2679, %v2678
    %v2866 = vperm.slane %v2680, 0
    %v2869 = vsel %vm230, %v2860, 0
    %v2872 = vsel %vm230, %v2861, 0
    %v2875 = vsel %vm230, %v2862, 0
    %2877 = vmatpush.bf16.msra.mxu0 0
    %2878 = vmatpush.bf16.msra.mxu0 0
    %2879 = vmatpush.bf16.msra.mxu0 0
    %2880 = vmatpush.bf16.msra.mxu0 0
    %2881 = vmatpush.bf16.msra.mxu0 0
    %2882 = vmatpush.bf16.msra.mxu0 0
    %2883 = vmatpush.bf16.msra.mxu0 %v2864
    %2884 = vmatpush.bf16.msra.mxu0 %v2863
    %2885 = vmatmul.bf16.gmra.mxu0 %v2869
    %v2886 = vpop.f32.mrf.mxu0
    %v2887 = vadd.f32 %v2866, %v2886
    %v2888 = vpop.f32.mrf.mxu0
    %v2889 = vadd.f32 %v2866, %v2888
    %2890 = vmatmul.bf16.gmra.mxu0 %v2872
    %v2891 = vpop.f32.mrf.mxu0
    %v2892 = vadd.f32 %v2866, %v2891
    %v2893 = vpop.f32.mrf.mxu0
    %v2894 = vadd.f32 %v2866, %v2893
    %2895 = vmatmul.bf16.gmra.mxu0 %v2875
    %v2896 = vpop.f32.mrf.mxu0
    %v2897 = vadd.f32 %v2866, %v2896
    %v2898 = vpop.f32.mrf.mxu0
    %v2899 = vadd.f32 %v2866, %v2898
    %2900 = vdwg.mxu0
    %2904 = vrot.lane.b32.xlu0 %v2887, 96
    %v2905 = vpop.permute.xlu0 %2904
    %2906 = vrot.lane.b32.xlu0 %v2889, 96
    %v2907 = vpop.permute.xlu0 %2906
    %2908 = vrot.lane.b32.xlu0 %v2892, 96
    %v2909 = vpop.permute.xlu0 %2908
    %2913 = vxpose.xlu0.b32.start [1/16] %v2905, 128
    %2914 = vxpose.xlu0.b32.cont [2/16] %v2907, 128
    %2915 = vxpose.xlu0.b32.cont [3/16] %v2909, 128
    %2916 = vxpose.xlu0.b32.cont [4/16] 0.0, 128
    %2917 = vxpose.xlu0.b32.cont [5/16] 0.0, 128
    %2918 = vxpose.xlu0.b32.cont [6/16] 0.0, 128
    %2919 = vxpose.xlu0.b32.cont [7/16] 0.0, 128
    %2920 = vxpose.xlu0.b32.cont [8/16] 0.0, 128
    %2921 = vxpose.xlu0.b32.cont [9/16] 0.0, 128
    %2922 = vxpose.xlu0.b32.cont [10/16] 0.0, 128
    %2923 = vxpose.xlu0.b32.cont [11/16] 0.0, 128
    %2924 = vxpose.xlu0.b32.cont [12/16] 0.0, 128
    %2925 = vxpose.xlu0.b32.cont [13/16] 0.0, 128
    %2926 = vxpose.xlu0.b32.cont [14/16] 0.0, 128
    %2927 = vxpose.xlu0.b32.cont [15/16] 0.0, 128
    %2928 = vxpose.xlu0.b32.end [16/16] 0.0, 128
    %v2929 = vpop.trf.xlu0
    %v2930 = vpop.trf.xlu0
    %v2931 = vpop.trf.xlu0
    %v2932 = vpop.trf.xlu0
    %v2933 = vpop.trf.xlu0
    %v2934 = vpop.trf.xlu0
    %v2935 = vpop.trf.xlu0
    %v2936 = vpop.trf.xlu0
    %v2937 = vpop.trf.xlu0
    %v2938 = vpop.trf.xlu0
    %v2939 = vpop.trf.xlu0
    %v2940 = vpop.trf.xlu0
    %v2941 = vpop.trf.xlu0
    %v2942 = vpop.trf.xlu0
    %v2943 = vpop.trf.xlu0
    %v2944 = vpop.trf.xlu0
    %v2945 = vpack.c.bf16 %v2889, %v2887
    %v2946 = vpack.c.bf16 %v2892, %v2892
    %v2947 = vpack.c.bf16 %v2929, %v2929
    %v2949 = vsel %vm476, %v2945, 0
    %v2952 = vsel %vm476, %v2946, 0
    %v2955 = vsel %vm483, %v2947, 0
    %2957 = vmatpush.bf16.msra.mxu0 0
    %2958 = vmatpush.bf16.msra.mxu0 0
    %2959 = vmatpush.bf16.msra.mxu0 0
    %2960 = vmatpush.bf16.msra.mxu0 0
    %2961 = vmatpush.bf16.msra.mxu0 0
    %2962 = vmatpush.bf16.msra.mxu0 0
    %2963 = vmatpush.bf16.msra.mxu0 0
    %2964 = vmatpush.bf16.msra.mxu0 %v2955
    %2965 = vmatmul.bf16.gmra.mxu0 %v2949
    %v2966 = vpop.f32.mrf.mxu0
    %v2967 = vadd.f32 0.0, %v2966
    %v2968 = vpop.f32.mrf.mxu0
    %v2969 = vadd.f32 0.0, %v2968
    %2970 = vmatmul.bf16.gmra.mxu0 %v2952
    %v2971 = vpop.f32.mrf.mxu0
    %v2972 = vadd.f32 0.0, %v2971
    %v2973 = vpop.f32.mrf.mxu0
    %2974 = vdwg.mxu0
    %v2975 = vmul.f32 %v2967, 0.35355338
    %v2976 = vmul.f32 %v2969, 0.35355338
    %v2977 = vmul.f32 %v2972, 0.35355338
    %v2978 = vadd.f32 %v2975, %v135
    %v2979 = vadd.f32 %v2976, %v135
    %v2980 = vadd.f32 %v2977, %v135
    %v2981 = vsel %vm511, %v2978, -inf
    %2982 = vmax.xlane.f32.xlu0 %v2981
    %v2983 = vpop.xlane.xlu0 %2982
    %v2984 = vsel %vm511, %v2979, -inf
    %2985 = vmax.xlane.f32.xlu0 %v2984
    %v2986 = vpop.xlane.xlu0 %2985
    %v2987 = vsel %vm511, %v2980, -inf
    %2988 = vmax.xlane.f32.xlu0 %v2987
    %v2989 = vpop.xlane.xlu0 %2988
    %v2990 = vsub.f32 %v2978, %v2983
    %v2991 = vsub.f32 %v2979, %v2986
    %v2992 = vsub.f32 %v2980, %v2989
    %v2993 = vmul.f32 %v2990, 1.442695
    %v2994 = vpow.pop %v2993
    %v2995 = vmul.f32 %v2991, 1.442695
    %v2996 = vpow.pop %v2995
    %v2997 = vmul.f32 %v2992, 1.442695
    %v2998 = vpow.pop %v2997
    %v2999 = vsel %vm511, %v2994, 0.0
    %3000 = vadd.xlane.f32.xlu0 %v2999
    %v3001 = vpop.xlane.xlu0 %3000
    %v3002 = vsel %vm511, %v2996, 0.0
    %3003 = vadd.xlane.f32.xlu0 %v3002
    %v3004 = vpop.xlane.xlu0 %3003
    %v3005 = vsel %vm511, %v2998, 0.0
    %3006 = vadd.xlane.f32.xlu0 %v3005
    %v3007 = vpop.xlane.xlu0 %3006
    %v3008 = vrcp.pop %v3001
    %v3009 = vmul.f32 %v3001, %v3008
    %v3010 = vsub.f32 1.0, %v3009
    %v3011 = vmul.f32 %v3008, %v3010
    %v3012 = vadd.f32 %v3008, %v3011
    %vm3013 = vweird.f32 %v3001
    %vm3014 = vweird.f32 %v3008
    %vm3015 = vmor %vm3013, %vm3014
    %v3016 = vsel %vm3015, %v3008, %v3012
    %v3017 = vand.u32 2147483647, %v3001
    %vm3018 = vcmp.eq.f32.partialorder %v3017, 8.507059e+37
    %v3019 = vand.u32 %v3001, 2147483648
    %v3020 = vor.u32 1.1754944e-38, %v3019
    %v3021 = vsel %vm3018, %v3020, %v3016
    %v3022 = vmul.f32 %v2994, %v3021
    %v3023 = vrcp.pop %v3004
    %v3024 = vmul.f32 %v3004, %v3023
    %v3025 = vsub.f32 1.0, %v3024
    %v3026 = vmul.f32 %v3023, %v3025
    %v3027 = vadd.f32 %v3023, %v3026
    %vm3028 = vweird.f32 %v3004
    %vm3029 = vweird.f32 %v3023
    %vm3030 = vmor %vm3028, %vm3029
    %v3031 = vsel %vm3030, %v3023, %v3027
    %v3032 = vand.u32 2147483647, %v3004
    %vm3033 = vcmp.eq.f32.partialorder %v3032, 8.507059e+37
    %v3034 = vand.u32 %v3004, 2147483648
    %v3035 = vor.u32 1.1754944e-38, %v3034
    %v3036 = vsel %vm3033, %v3035, %v3031
    %v3037 = vmul.f32 %v2996, %v3036
    %v3038 = vrcp.pop %v3007
    %v3039 = vmul.f32 %v3007, %v3038
    %v3040 = vsub.f32 1.0, %v3039
    %v3041 = vmul.f32 %v3038, %v3040
    %v3042 = vadd.f32 %v3038, %v3041
    %vm3043 = vweird.f32 %v3007
    %vm3044 = vweird.f32 %v3038
    %vm3045 = vmor %vm3043, %vm3044
    %v3046 = vsel %vm3045, %v3038, %v3042
    %v3047 = vand.u32 2147483647, %v3007
    %vm3048 = vcmp.eq.f32.partialorder %v3047, 8.507059e+37
    %v3049 = vand.u32 %v3007, 2147483648
    %v3050 = vor.u32 1.1754944e-38, %v3049
    %v3051 = vsel %vm3048, %v3050, %v3046
    %v3052 = vmul.f32 %v2998, %v3051
    %v3053 = vpack.c.bf16 %v3037, %v3022
    %v3054 = vpack.c.bf16 %v3052, %v3052
    %3057 = vrot.lane.b32.xlu0 %v2945, 64
    %v3058 = vpop.permute.xlu0 %3057
    %3059 = vrot.lane.b32.xlu0 %v2946, 64
    %v3060 = vpop.permute.xlu0 %3059
    %v3063 = vsel %vm511, %v3053, 0
    %v3066 = vsel %vm511, %v3054, 0
    %v3069 = vsel %vm483, %v3060, 0
    %3071 = vmatpush.bf16.msra.mxu0 0
    %3072 = vmatpush.bf16.msra.mxu0 0
    %3073 = vmatpush.bf16.msra.mxu0 0
    %3074 = vmatpush.bf16.msra.mxu0 0
    %3075 = vmatpush.bf16.msra.mxu0 0
    %3076 = vmatpush.bf16.msra.mxu0 0
    %3077 = vmatpush.bf16.msra.mxu0 %v3069
    %3078 = vmatpush.bf16.msra.mxu0 %v3058
    %3079 = vmatmul.bf16.gmra.mxu0 %v3063
    %v3080 = vpop.f32.mrf.mxu0
    %v3081 = vadd.f32 0.0, %v3080
    %v3082 = vpop.f32.mrf.mxu0
    %v3083 = vadd.f32 0.0, %v3082
    %3084 = vmatmul.bf16.gmra.mxu0 %v3066
    %v3085 = vpop.f32.mrf.mxu0
    %v3086 = vadd.f32 0.0, %v3085
    %v3087 = vpop.f32.mrf.mxu0
    %3088 = vdwg.mxu0
    %v3089 = vpack.c.bf16 %v3083, %v3081
    %v3090 = vpack.c.bf16 %v3086, %v3086
    %v3091 = vpack.c.bf16 %v2681, %v2681
    %3092 = vrot.lane.b32.xlu0 %v2887, 88
    %v3093 = vpop.permute.xlu0 %3092
    %3094 = vrot.lane.b32.xlu0 %v2889, 88
    %v3095 = vpop.permute.xlu0 %3094
    %3096 = vrot.lane.b32.xlu0 %v2892, 88
    %v3097 = vpop.permute.xlu0 %3096
    %3101 = vxpose.xlu0.b32.start [1/16] %v3093, 128
    %3102 = vxpose.xlu0.b32.cont [2/16] %v3095, 128
    %3103 = vxpose.xlu0.b32.cont [3/16] %v3097, 128
    %3104 = vxpose.xlu0.b32.cont [4/16] 0.0, 128
    %3105 = vxpose.xlu0.b32.cont [5/16] 0.0, 128
    %3106 = vxpose.xlu0.b32.cont [6/16] 0.0, 128
    %3107 = vxpose.xlu0.b32.cont [7/16] 0.0, 128
    %3108 = vxpose.xlu0.b32.cont [8/16] 0.0, 128
    %3109 = vxpose.xlu0.b32.cont [9/16] 0.0, 128
    %3110 = vxpose.xlu0.b32.cont [10/16] 0.0, 128
    %3111 = vxpose.xlu0.b32.cont [11/16] 0.0, 128
    %3112 = vxpose.xlu0.b32.cont [12/16] 0.0, 128
    %3113 = vxpose.xlu0.b32.cont [13/16] 0.0, 128
    %3114 = vxpose.xlu0.b32.cont [14/16] 0.0, 128
    %3115 = vxpose.xlu0.b32.cont [15/16] 0.0, 128
    %3116 = vxpose.xlu0.b32.end [16/16] 0.0, 128
    %v3117 = vpop.trf.xlu0
    %v3118 = vpop.trf.xlu0
    %v3119 = vpop.trf.xlu0
    %v3120 = vpop.trf.xlu0
    %v3121 = vpop.trf.xlu0
    %v3122 = vpop.trf.xlu0
    %v3123 = vpop.trf.xlu0
    %v3124 = vpop.trf.xlu0
    %v3125 = vpop.trf.xlu0
    %v3126 = vpop.trf.xlu0
    %v3127 = vpop.trf.xlu0
    %v3128 = vpop.trf.xlu0
    %v3129 = vpop.trf.xlu0
    %v3130 = vpop.trf.xlu0
    %v3131 = vpop.trf.xlu0
    %v3132 = vpop.trf.xlu0
    %v3133 = vpack.c.bf16 %v3117, %v3117
    %3134 = vrot.lane.b32.xlu0 %v2945, 120
    %v3135 = vpop.permute.xlu0 %3134
    %3136 = vrot.lane.b32.xlu0 %v2946, 120
    %v3137 = vpop.permute.xlu0 %3136
    %v3139 = vsel %vm476, %v3135, 0
    %v3142 = vsel %vm476, %v3137, 0
    %v3145 = vsel %vm483, %v3133, 0
    %3147 = vmatpush.bf16.msra.mxu0 0
    %3148 = vmatpush.bf16.msra.mxu0 0
    %3149 = vmatpush.bf16.msra.mxu0 0
    %3150 = vmatpush.bf16.msra.mxu0 0
    %3151 = vmatpush.bf16.msra.mxu0 0
    %3152 = vmatpush.bf16.msra.mxu0 0
    %3153 = vmatpush.bf16.msra.mxu0 0
    %3154 = vmatpush.bf16.msra.mxu0 %v3145
    %3155 = vmatmul.bf16.gmra.mxu0 %v3139
    %v3156 = vpop.f32.mrf.mxu0
    %v3157 = vadd.f32 0.0, %v3156
    %v3158 = vpop.f32.mrf.mxu0
    %v3159 = vadd.f32 0.0, %v3158
    %3160 = vmatmul.bf16.gmra.mxu0 %v3142
    %v3161 = vpop.f32.mrf.mxu0
    %v3162 = vadd.f32 0.0, %v3161
    %v3163 = vpop.f32.mrf.mxu0
    %3164 = vdwg.mxu0
    %v3165 = vmul.f32 %v3157, 0.35355338
    %v3166 = vmul.f32 %v3159, 0.35355338
    %v3167 = vmul.f32 %v3162, 0.35355338
    %v3168 = vadd.f32 %v3165, %v135
    %v3169 = vadd.f32 %v3166, %v135
    %v3170 = vadd.f32 %v3167, %v135
    %v3171 = vsel %vm511, %v3168, -inf
    %3172 = vmax.xlane.f32.xlu0 %v3171
    %v3173 = vpop.xlane.xlu0 %3172
    %v3174 = vsel %vm511, %v3169, -inf
    %3175 = vmax.xlane.f32.xlu0 %v3174
    %v3176 = vpop.xlane.xlu0 %3175
    %v3177 = vsel %vm511, %v3170, -inf
    %3178 = vmax.xlane.f32.xlu0 %v3177
    %v3179 = vpop.xlane.xlu0 %3178
    %v3180 = vsub.f32 %v3168, %v3173
    %v3181 = vsub.f32 %v3169, %v3176
    %v3182 = vsub.f32 %v3170, %v3179
    %v3183 = vmul.f32 %v3180, 1.442695
    %v3184 = vpow.pop %v3183
    %v3185 = vmul.f32 %v3181, 1.442695
    %v3186 = vpow.pop %v3185
    %v3187 = vmul.f32 %v3182, 1.442695
    %v3188 = vpow.pop %v3187
    %v3189 = vsel %vm511, %v3184, 0.0
    %3190 = vadd.xlane.f32.xlu0 %v3189
    %v3191 = vpop.xlane.xlu0 %3190
    %v3192 = vsel %vm511, %v3186, 0.0
    %3193 = vadd.xlane.f32.xlu0 %v3192
    %v3194 = vpop.xlane.xlu0 %3193
    %v3195 = vsel %vm511, %v3188, 0.0
    %3196 = vadd.xlane.f32.xlu0 %v3195
    %v3197 = vpop.xlane.xlu0 %3196
    %v3198 = vrcp.pop %v3191
    %v3199 = vmul.f32 %v3191, %v3198
    %v3200 = vsub.f32 1.0, %v3199
    %v3201 = vmul.f32 %v3198, %v3200
    %v3202 = vadd.f32 %v3198, %v3201
    %vm3203 = vweird.f32 %v3191
    %vm3204 = vweird.f32 %v3198
    %vm3205 = vmor %vm3203, %vm3204
    %v3206 = vsel %vm3205, %v3198, %v3202
    %v3207 = vand.u32 2147483647, %v3191
    %vm3208 = vcmp.eq.f32.partialorder %v3207, 8.507059e+37
    %v3209 = vand.u32 %v3191, 2147483648
    %v3210 = vor.u32 1.1754944e-38, %v3209
    %v3211 = vsel %vm3208, %v3210, %v3206
    %v3212 = vmul.f32 %v3184, %v3211
    %v3213 = vrcp.pop %v3194
    %v3214 = vmul.f32 %v3194, %v3213
    %v3215 = vsub.f32 1.0, %v3214
    %v3216 = vmul.f32 %v3213, %v3215
    %v3217 = vadd.f32 %v3213, %v3216
    %vm3218 = vweird.f32 %v3194
    %vm3219 = vweird.f32 %v3213
    %vm3220 = vmor %vm3218, %vm3219
    %v3221 = vsel %vm3220, %v3213, %v3217
    %v3222 = vand.u32 2147483647, %v3194
    %vm3223 = vcmp.eq.f32.partialorder %v3222, 8.507059e+37
    %v3224 = vand.u32 %v3194, 2147483648
    %v3225 = vor.u32 1.1754944e-38, %v3224
    %v3226 = vsel %vm3223, %v3225, %v3221
    %v3227 = vmul.f32 %v3186, %v3226
    %v3228 = vrcp.pop %v3197
    %v3229 = vmul.f32 %v3197, %v3228
    %v3230 = vsub.f32 1.0, %v3229
    %v3231 = vmul.f32 %v3228, %v3230
    %v3232 = vadd.f32 %v3228, %v3231
    %vm3233 = vweird.f32 %v3197
    %vm3234 = vweird.f32 %v3228
    %vm3235 = vmor %vm3233, %vm3234
    %v3236 = vsel %vm3235, %v3228, %v3232
    %v3237 = vand.u32 2147483647, %v3197
    %vm3238 = vcmp.eq.f32.partialorder %v3237, 8.507059e+37
    %v3239 = vand.u32 %v3197, 2147483648
    %v3240 = vor.u32 1.1754944e-38, %v3239
    %v3241 = vsel %vm3238, %v3240, %v3236
    %v3242 = vmul.f32 %v3188, %v3241
    %v3243 = vpack.c.bf16 %v3227, %v3212
    %v3244 = vpack.c.bf16 %v3242, %v3242
    %3245 = vrot.lane.b32.xlu0 %v2945, 56
    %v3246 = vpop.permute.xlu0 %3245
    %3247 = vrot.lane.b32.xlu0 %v2946, 56
    %v3248 = vpop.permute.xlu0 %3247
    %v3251 = vsel %vm511, %v3243, 0
    %v3254 = vsel %vm511, %v3244, 0
    %v3257 = vsel %vm483, %v3248, 0
    %3259 = vmatpush.bf16.msra.mxu0 0
    %3260 = vmatpush.bf16.msra.mxu0 0
    %3261 = vmatpush.bf16.msra.mxu0 0
    %3262 = vmatpush.bf16.msra.mxu0 0
    %3263 = vmatpush.bf16.msra.mxu0 0
    %3264 = vmatpush.bf16.msra.mxu0 0
    %3265 = vmatpush.bf16.msra.mxu0 %v3257
    %3266 = vmatpush.bf16.msra.mxu0 %v3246
    %3267 = vmatmul.bf16.gmra.mxu0 %v3251
    %v3268 = vpop.f32.mrf.mxu0
    %v3269 = vadd.f32 0.0, %v3268
    %v3270 = vpop.f32.mrf.mxu0
    %v3271 = vadd.f32 0.0, %v3270
    %3272 = vmatmul.bf16.gmra.mxu0 %v3254
    %v3273 = vpop.f32.mrf.mxu0
    %v3274 = vadd.f32 0.0, %v3273
    %v3275 = vpop.f32.mrf.mxu0
    %3276 = vdwg.mxu0
    %v3277 = vpack.c.bf16 %v3271, %v3269
    %v3278 = vpack.c.bf16 %v3274, %v3274
    %v3279 = vpack.c.bf16 %v2682, %v2682
    %v3281 = vsel %vm476, %v3277, 0
    %v3284 = vsel %vm476, %v3278, 0
    %v3287 = vsel %vm483, %v3279, 0
    %3289 = vmatpush.bf16.msra.mxu0 0
    %3290 = vmatpush.bf16.msra.mxu0 0
    %3291 = vmatpush.bf16.msra.mxu0 0
    %3292 = vmatpush.bf16.msra.mxu0 0
    %3293 = vmatpush.bf16.msra.mxu0 0
    %3294 = vmatpush.bf16.msra.mxu0 0
    %3295 = vmatpush.bf16.msra.mxu0 0
    %3296 = vmatpush.bf16.msra.mxu0 %v3287
    %3297 = vmatmul.bf16.gmra.mxu0 %v3281
    %v3298 = vpop.f32.mrf.mxu0
    %v3299 = vadd.f32 0.0, %v3298
    %v3300 = vpop.f32.mrf.mxu0
    %v3301 = vadd.f32 0.0, %v3300
    %3302 = vmatmul.bf16.gmra.mxu0 %v3284
    %v3303 = vpop.f32.mrf.mxu0
    %v3304 = vadd.f32 0.0, %v3303
    %v3305 = vpop.f32.mrf.mxu0
    %3306 = vdwg.mxu0
    %v3308 = vsel %vm476, %v3089, 0
    %v3311 = vsel %vm476, %v3090, 0
    %v3314 = vsel %vm483, %v3091, 0
    %3316 = vmatpush.bf16.msra.mxu0 0
    %3317 = vmatpush.bf16.msra.mxu0 0
    %3318 = vmatpush.bf16.msra.mxu0 0
    %3319 = vmatpush.bf16.msra.mxu0 0
    %3320 = vmatpush.bf16.msra.mxu0 0
    %3321 = vmatpush.bf16.msra.mxu0 0
    %3322 = vmatpush.bf16.msra.mxu0 0
    %3323 = vmatpush.bf16.msra.mxu0 %v3314
    %3324 = vmatmul.bf16.gmra.mxu0 %v3308
    %v3325 = vpop.f32.mrf.mxu0
    %v3326 = vadd.f32 %v3299, %v3325
    %v3327 = vpop.f32.mrf.mxu0
    %v3328 = vadd.f32 %v3301, %v3327
    %3329 = vmatmul.bf16.gmra.mxu0 %v3311
    %v3330 = vpop.f32.mrf.mxu0
    %v3331 = vadd.f32 %v3304, %v3330
    %v3332 = vpop.f32.mrf.mxu0
    %3333 = vdwg.mxu0
    %3334 = vrot.lane.b32.xlu0 %v2887, 80
    %v3335 = vpop.permute.xlu0 %3334
    %3336 = vrot.lane.b32.xlu0 %v2889, 80
    %v3337 = vpop.permute.xlu0 %3336
    %3338 = vrot.lane.b32.xlu0 %v2892, 80
    %v3339 = vpop.permute.xlu0 %3338
    %3343 = vxpose.xlu0.b32.start [1/16] %v3335, 128
    %3344 = vxpose.xlu0.b32.cont [2/16] %v3337, 128
    %3345 = vxpose.xlu0.b32.cont [3/16] %v3339, 128
    %3346 = vxpose.xlu0.b32.cont [4/16] 0.0, 128
    %3347 = vxpose.xlu0.b32.cont [5/16] 0.0, 128
    %3348 = vxpose.xlu0.b32.cont [6/16] 0.0, 128
    %3349 = vxpose.xlu0.b32.cont [7/16] 0.0, 128
    %3350 = vxpose.xlu0.b32.cont [8/16] 0.0, 128
    %3351 = vxpose.xlu0.b32.cont [9/16] 0.0, 128
    %3352 = vxpose.xlu0.b32.cont [10/16] 0.0, 128
    %3353 = vxpose.xlu0.b32.cont [11/16] 0.0, 128
    %3354 = vxpose.xlu0.b32.cont [12/16] 0.0, 128
    %3355 = vxpose.xlu0.b32.cont [13/16] 0.0, 128
    %3356 = vxpose.xlu0.b32.cont [14/16] 0.0, 128
    %3357 = vxpose.xlu0.b32.cont [15/16] 0.0, 128
    %3358 = vxpose.xlu0.b32.end [16/16] 0.0, 128
    %v3359 = vpop.trf.xlu0
    %v3360 = vpop.trf.xlu0
    %v3361 = vpop.trf.xlu0
    %v3362 = vpop.trf.xlu0
    %v3363 = vpop.trf.xlu0
    %v3364 = vpop.trf.xlu0
    %v3365 = vpop.trf.xlu0
    %v3366 = vpop.trf.xlu0
    %v3367 = vpop.trf.xlu0
    %v3368 = vpop.trf.xlu0
    %v3369 = vpop.trf.xlu0
    %v3370 = vpop.trf.xlu0
    %v3371 = vpop.trf.xlu0
    %v3372 = vpop.trf.xlu0
    %v3373 = vpop.trf.xlu0
    %v3374 = vpop.trf.xlu0
    %v3375 = vpack.c.bf16 %v3359, %v3359
    %3376 = vrot.lane.b32.xlu0 %v2945, 112
    %v3377 = vpop.permute.xlu0 %3376
    %3378 = vrot.lane.b32.xlu0 %v2946, 112
    %v3379 = vpop.permute.xlu0 %3378
    %v3381 = vsel %vm476, %v3377, 0
    %v3384 = vsel %vm476, %v3379, 0
    %v3387 = vsel %vm483, %v3375, 0
    %3389 = vmatpush.bf16.msra.mxu0 0
    %3390 = vmatpush.bf16.msra.mxu0 0
    %3391 = vmatpush.bf16.msra.mxu0 0
    %3392 = vmatpush.bf16.msra.mxu0 0
    %3393 = vmatpush.bf16.msra.mxu0 0
    %3394 = vmatpush.bf16.msra.mxu0 0
    %3395 = vmatpush.bf16.msra.mxu0 0
    %3396 = vmatpush.bf16.msra.mxu0 %v3387
    %3397 = vmatmul.bf16.gmra.mxu0 %v3381
    %v3398 = vpop.f32.mrf.mxu0
    %v3399 = vadd.f32 0.0, %v3398
    %v3400 = vpop.f32.mrf.mxu0
    %v3401 = vadd.f32 0.0, %v3400
    %3402 = vmatmul.bf16.gmra.mxu0 %v3384
    %v3403 = vpop.f32.mrf.mxu0
    %v3404 = vadd.f32 0.0, %v3403
    %v3405 = vpop.f32.mrf.mxu0
    %3406 = vdwg.mxu0
    %v3407 = vmul.f32 %v3399, 0.35355338
    %v3408 = vmul.f32 %v3401, 0.35355338
    %v3409 = vmul.f32 %v3404, 0.35355338
    %v3410 = vadd.f32 %v3407, %v135
    %v3411 = vadd.f32 %v3408, %v135
    %v3412 = vadd.f32 %v3409, %v135
    %v3413 = vsel %vm511, %v3410, -inf
    %3414 = vmax.xlane.f32.xlu0 %v3413
    %v3415 = vpop.xlane.xlu0 %3414
    %v3416 = vsel %vm511, %v3411, -inf
    %3417 = vmax.xlane.f32.xlu0 %v3416
    %v3418 = vpop.xlane.xlu0 %3417
    %v3419 = vsel %vm511, %v3412, -inf
    %3420 = vmax.xlane.f32.xlu0 %v3419
    %v3421 = vpop.xlane.xlu0 %3420
    %v3422 = vsub.f32 %v3410, %v3415
    %v3423 = vsub.f32 %v3411, %v3418
    %v3424 = vsub.f32 %v3412, %v3421
    %v3425 = vmul.f32 %v3422, 1.442695
    %v3426 = vpow.pop %v3425
    %v3427 = vmul.f32 %v3423, 1.442695
    %v3428 = vpow.pop %v3427
    %v3429 = vmul.f32 %v3424, 1.442695
    %v3430 = vpow.pop %v3429
    %v3431 = vsel %vm511, %v3426, 0.0
    %3432 = vadd.xlane.f32.xlu0 %v3431
    %v3433 = vpop.xlane.xlu0 %3432
    %v3434 = vsel %vm511, %v3428, 0.0
    %3435 = vadd.xlane.f32.xlu0 %v3434
    %v3436 = vpop.xlane.xlu0 %3435
    %v3437 = vsel %vm511, %v3430, 0.0
    %3438 = vadd.xlane.f32.xlu0 %v3437
    %v3439 = vpop.xlane.xlu0 %3438
    %v3440 = vrcp.pop %v3433
    %v3441 = vmul.f32 %v3433, %v3440
    %v3442 = vsub.f32 1.0, %v3441
    %v3443 = vmul.f32 %v3440, %v3442
    %v3444 = vadd.f32 %v3440, %v3443
    %vm3445 = vweird.f32 %v3433
    %vm3446 = vweird.f32 %v3440
    %vm3447 = vmor %vm3445, %vm3446
    %v3448 = vsel %vm3447, %v3440, %v3444
    %v3449 = vand.u32 2147483647, %v3433
    %vm3450 = vcmp.eq.f32.partialorder %v3449, 8.507059e+37
    %v3451 = vand.u32 %v3433, 2147483648
    %v3452 = vor.u32 1.1754944e-38, %v3451
    %v3453 = vsel %vm3450, %v3452, %v3448
    %v3454 = vmul.f32 %v3426, %v3453
    %v3455 = vrcp.pop %v3436
    %v3456 = vmul.f32 %v3436, %v3455
    %v3457 = vsub.f32 1.0, %v3456
    %v3458 = vmul.f32 %v3455, %v3457
    %v3459 = vadd.f32 %v3455, %v3458
    %vm3460 = vweird.f32 %v3436
    %vm3461 = vweird.f32 %v3455
    %vm3462 = vmor %vm3460, %vm3461
    %v3463 = vsel %vm3462, %v3455, %v3459
    %v3464 = vand.u32 2147483647, %v3436
    %vm3465 = vcmp.eq.f32.partialorder %v3464, 8.507059e+37
    %v3466 = vand.u32 %v3436, 2147483648
    %v3467 = vor.u32 1.1754944e-38, %v3466
    %v3468 = vsel %vm3465, %v3467, %v3463
    %v3469 = vmul.f32 %v3428, %v3468
    %v3470 = vrcp.pop %v3439
    %v3471 = vmul.f32 %v3439, %v3470
    %v3472 = vsub.f32 1.0, %v3471
    %v3473 = vmul.f32 %v3470, %v3472
    %v3474 = vadd.f32 %v3470, %v3473
    %vm3475 = vweird.f32 %v3439
    %vm3476 = vweird.f32 %v3470
    %vm3477 = vmor %vm3475, %vm3476
    %v3478 = vsel %vm3477, %v3470, %v3474
    %v3479 = vand.u32 2147483647, %v3439
    %vm3480 = vcmp.eq.f32.partialorder %v3479, 8.507059e+37
    %v3481 = vand.u32 %v3439, 2147483648
    %v3482 = vor.u32 1.1754944e-38, %v3481
    %v3483 = vsel %vm3480, %v3482, %v3478
    %v3484 = vmul.f32 %v3430, %v3483
    %v3485 = vpack.c.bf16 %v3469, %v3454
    %v3486 = vpack.c.bf16 %v3484, %v3484
    %3487 = vrot.lane.b32.xlu0 %v2945, 48
    %v3488 = vpop.permute.xlu0 %3487
    %3489 = vrot.lane.b32.xlu0 %v2946, 48
    %v3490 = vpop.permute.xlu0 %3489
    %v3493 = vsel %vm511, %v3485, 0
    %v3496 = vsel %vm511, %v3486, 0
    %v3499 = vsel %vm483, %v3490, 0
    %3501 = vmatpush.bf16.msra.mxu0 0
    %3502 = vmatpush.bf16.msra.mxu0 0
    %3503 = vmatpush.bf16.msra.mxu0 0
    %3504 = vmatpush.bf16.msra.mxu0 0
    %3505 = vmatpush.bf16.msra.mxu0 0
    %3506 = vmatpush.bf16.msra.mxu0 0
    %3507 = vmatpush.bf16.msra.mxu0 %v3499
    %3508 = vmatpush.bf16.msra.mxu0 %v3488
    %3509 = vmatmul.bf16.gmra.mxu0 %v3493
    %v3510 = vpop.f32.mrf.mxu0
    %v3511 = vadd.f32 0.0, %v3510
    %v3512 = vpop.f32.mrf.mxu0
    %v3513 = vadd.f32 0.0, %v3512
    %3514 = vmatmul.bf16.gmra.mxu0 %v3496
    %v3515 = vpop.f32.mrf.mxu0
    %v3516 = vadd.f32 0.0, %v3515
    %v3517 = vpop.f32.mrf.mxu0
    %3518 = vdwg.mxu0
    %v3519 = vpack.c.bf16 %v3513, %v3511
    %v3520 = vpack.c.bf16 %v3516, %v3516
    %v3521 = vpack.c.bf16 %v2683, %v2683
    %v3523 = vsel %vm476, %v3519, 0
    %v3526 = vsel %vm476, %v3520, 0
    %v3529 = vsel %vm483, %v3521, 0
    %3531 = vmatpush.bf16.msra.mxu0 0
    %3532 = vmatpush.bf16.msra.mxu0 0
    %3533 = vmatpush.bf16.msra.mxu0 0
    %3534 = vmatpush.bf16.msra.mxu0 0
    %3535 = vmatpush.bf16.msra.mxu0 0
    %3536 = vmatpush.bf16.msra.mxu0 0
    %3537 = vmatpush.bf16.msra.mxu0 0
    %3538 = vmatpush.bf16.msra.mxu0 %v3529
    %3539 = vmatmul.bf16.gmra.mxu0 %v3523
    %v3540 = vpop.f32.mrf.mxu0
    %v3541 = vadd.f32 0.0, %v3540
    %v3542 = vpop.f32.mrf.mxu0
    %v3543 = vadd.f32 0.0, %v3542
    %3544 = vmatmul.bf16.gmra.mxu0 %v3526
    %v3545 = vpop.f32.mrf.mxu0
    %v3546 = vadd.f32 0.0, %v3545
    %v3547 = vpop.f32.mrf.mxu0
    %3548 = vdwg.mxu0
    %v3549 = vadd.f32 %v3326, %v3541
    %v3550 = vadd.f32 %v3328, %v3543
    %v3551 = vadd.f32 %v3331, %v3546
    %3552 = vrot.lane.b32.xlu0 %v2887, 72
    %v3553 = vpop.permute.xlu0 %3552
    %3554 = vrot.lane.b32.xlu0 %v2889, 72
    %v3555 = vpop.permute.xlu0 %3554
    %3556 = vrot.lane.b32.xlu0 %v2892, 72
    %v3557 = vpop.permute.xlu0 %3556
    %3561 = vxpose.xlu0.b32.start [1/16] %v3553, 128
    %3562 = vxpose.xlu0.b32.cont [2/16] %v3555, 128
    %3563 = vxpose.xlu0.b32.cont [3/16] %v3557, 128
    %3564 = vxpose.xlu0.b32.cont [4/16] 0.0, 128
    %3565 = vxpose.xlu0.b32.cont [5/16] 0.0, 128
    %3566 = vxpose.xlu0.b32.cont [6/16] 0.0, 128
    %3567 = vxpose.xlu0.b32.cont [7/16] 0.0, 128
    %3568 = vxpose.xlu0.b32.cont [8/16] 0.0, 128
    %3569 = vxpose.xlu0.b32.cont [9/16] 0.0, 128
    %3570 = vxpose.xlu0.b32.cont [10/16] 0.0, 128
    %3571 = vxpose.xlu0.b32.cont [11/16] 0.0, 128
    %3572 = vxpose.xlu0.b32.cont [12/16] 0.0, 128
    %3573 = vxpose.xlu0.b32.cont [13/16] 0.0, 128
    %3574 = vxpose.xlu0.b32.cont [14/16] 0.0, 128
    %3575 = vxpose.xlu0.b32.cont [15/16] 0.0, 128
    %3576 = vxpose.xlu0.b32.end [16/16] 0.0, 128
    %v3577 = vpop.trf.xlu0
    %v3578 = vpop.trf.xlu0
    %v3579 = vpop.trf.xlu0
    %v3580 = vpop.trf.xlu0
    %v3581 = vpop.trf.xlu0
    %v3582 = vpop.trf.xlu0
    %v3583 = vpop.trf.xlu0
    %v3584 = vpop.trf.xlu0
    %v3585 = vpop.trf.xlu0
    %v3586 = vpop.trf.xlu0
    %v3587 = vpop.trf.xlu0
    %v3588 = vpop.trf.xlu0
    %v3589 = vpop.trf.xlu0
    %v3590 = vpop.trf.xlu0
    %v3591 = vpop.trf.xlu0
    %v3592 = vpop.trf.xlu0
    %v3593 = vpack.c.bf16 %v3577, %v3577
    %3594 = vrot.lane.b32.xlu0 %v2945, 104
    %v3595 = vpop.permute.xlu0 %3594
    %3596 = vrot.lane.b32.xlu0 %v2946, 104
    %v3597 = vpop.permute.xlu0 %3596
    %v3599 = vsel %vm476, %v3595, 0
    %v3602 = vsel %vm476, %v3597, 0
    %v3605 = vsel %vm483, %v3593, 0
    %3607 = vmatpush.bf16.msra.mxu0 0
    %3608 = vmatpush.bf16.msra.mxu0 0
    %3609 = vmatpush.bf16.msra.mxu0 0
    %3610 = vmatpush.bf16.msra.mxu0 0
    %3611 = vmatpush.bf16.msra.mxu0 0
    %3612 = vmatpush.bf16.msra.mxu0 0
    %3613 = vmatpush.bf16.msra.mxu0 0
    %3614 = vmatpush.bf16.msra.mxu0 %v3605
    %3615 = vmatmul.bf16.gmra.mxu0 %v3599
    %v3616 = vpop.f32.mrf.mxu0
    %v3617 = vadd.f32 0.0, %v3616
    %v3618 = vpop.f32.mrf.mxu0
    %v3619 = vadd.f32 0.0, %v3618
    %3620 = vmatmul.bf16.gmra.mxu0 %v3602
    %v3621 = vpop.f32.mrf.mxu0
    %v3622 = vadd.f32 0.0, %v3621
    %v3623 = vpop.f32.mrf.mxu0
    %3624 = vdwg.mxu0
    %v3625 = vmul.f32 %v3617, 0.35355338
    %v3626 = vmul.f32 %v3619, 0.35355338
    %v3627 = vmul.f32 %v3622, 0.35355338
    %v3628 = vadd.f32 %v3625, %v135
    %v3629 = vadd.f32 %v3626, %v135
    %v3630 = vadd.f32 %v3627, %v135
    %v3631 = vsel %vm511, %v3628, -inf
    %3632 = vmax.xlane.f32.xlu0 %v3631
    %v3633 = vpop.xlane.xlu0 %3632
    %v3634 = vsel %vm511, %v3629, -inf
    %3635 = vmax.xlane.f32.xlu0 %v3634
    %v3636 = vpop.xlane.xlu0 %3635
    %v3637 = vsel %vm511, %v3630, -inf
    %3638 = vmax.xlane.f32.xlu0 %v3637
    %v3639 = vpop.xlane.xlu0 %3638
    %v3640 = vsub.f32 %v3628, %v3633
    %v3641 = vsub.f32 %v3629, %v3636
    %v3642 = vsub.f32 %v3630, %v3639
    %v3643 = vmul.f32 %v3640, 1.442695
    %v3644 = vpow.pop %v3643
    %v3645 = vmul.f32 %v3641, 1.442695
    %v3646 = vpow.pop %v3645
    %v3647 = vmul.f32 %v3642, 1.442695
    %v3648 = vpow.pop %v3647
    %v3649 = vsel %vm511, %v3644, 0.0
    %3650 = vadd.xlane.f32.xlu0 %v3649
    %v3651 = vpop.xlane.xlu0 %3650
    %v3652 = vsel %vm511, %v3646, 0.0
    %3653 = vadd.xlane.f32.xlu0 %v3652
    %v3654 = vpop.xlane.xlu0 %3653
    %v3655 = vsel %vm511, %v3648, 0.0
    %3656 = vadd.xlane.f32.xlu0 %v3655
    %v3657 = vpop.xlane.xlu0 %3656
    %v3658 = vrcp.pop %v3651
    %v3659 = vmul.f32 %v3651, %v3658
    %v3660 = vsub.f32 1.0, %v3659
    %v3661 = vmul.f32 %v3658, %v3660
    %v3662 = vadd.f32 %v3658, %v3661
    %vm3663 = vweird.f32 %v3651
    %vm3664 = vweird.f32 %v3658
    %vm3665 = vmor %vm3663, %vm3664
    %v3666 = vsel %vm3665, %v3658, %v3662
    %v3667 = vand.u32 2147483647, %v3651
    %vm3668 = vcmp.eq.f32.partialorder %v3667, 8.507059e+37
    %v3669 = vand.u32 %v3651, 2147483648
    %v3670 = vor.u32 1.1754944e-38, %v3669
    %v3671 = vsel %vm3668, %v3670, %v3666
    %v3672 = vmul.f32 %v3644, %v3671
    %v3673 = vrcp.pop %v3654
    %v3674 = vmul.f32 %v3654, %v3673
    %v3675 = vsub.f32 1.0, %v3674
    %v3676 = vmul.f32 %v3673, %v3675
    %v3677 = vadd.f32 %v3673, %v3676
    %vm3678 = vweird.f32 %v3654
    %vm3679 = vweird.f32 %v3673
    %vm3680 = vmor %vm3678, %vm3679
    %v3681 = vsel %vm3680, %v3673, %v3677
    %v3682 = vand.u32 2147483647, %v3654
    %vm3683 = vcmp.eq.f32.partialorder %v3682, 8.507059e+37
    %v3684 = vand.u32 %v3654, 2147483648
    %v3685 = vor.u32 1.1754944e-38, %v3684
    %v3686 = vsel %vm3683, %v3685, %v3681
    %v3687 = vmul.f32 %v3646, %v3686
    %v3688 = vrcp.pop %v3657
    %v3689 = vmul.f32 %v3657, %v3688
    %v3690 = vsub.f32 1.0, %v3689
    %v3691 = vmul.f32 %v3688, %v3690
    %v3692 = vadd.f32 %v3688, %v3691
    %vm3693 = vweird.f32 %v3657
    %vm3694 = vweird.f32 %v3688
    %vm3695 = vmor %vm3693, %vm3694
    %v3696 = vsel %vm3695, %v3688, %v3692
    %v3697 = vand.u32 2147483647, %v3657
    %vm3698 = vcmp.eq.f32.partialorder %v3697, 8.507059e+37
    %v3699 = vand.u32 %v3657, 2147483648
    %v3700 = vor.u32 1.1754944e-38, %v3699
    %v3701 = vsel %vm3698, %v3700, %v3696
    %v3702 = vmul.f32 %v3648, %v3701
    %v3703 = vpack.c.bf16 %v3687, %v3672
    %v3704 = vpack.c.bf16 %v3702, %v3702
    %3705 = vrot.lane.b32.xlu0 %v2945, 40
    %v3706 = vpop.permute.xlu0 %3705
    %3707 = vrot.lane.b32.xlu0 %v2946, 40
    %v3708 = vpop.permute.xlu0 %3707
    %v3711 = vsel %vm511, %v3703, 0
    %v3714 = vsel %vm511, %v3704, 0
    %v3717 = vsel %vm483, %v3708, 0
    %3719 = vmatpush.bf16.msra.mxu0 0
    %3720 = vmatpush.bf16.msra.mxu0 0
    %3721 = vmatpush.bf16.msra.mxu0 0
    %3722 = vmatpush.bf16.msra.mxu0 0
    %3723 = vmatpush.bf16.msra.mxu0 0
    %3724 = vmatpush.bf16.msra.mxu0 0
    %3725 = vmatpush.bf16.msra.mxu0 %v3717
    %3726 = vmatpush.bf16.msra.mxu0 %v3706
    %3727 = vmatmul.bf16.gmra.mxu0 %v3711
    %v3728 = vpop.f32.mrf.mxu0
    %v3729 = vadd.f32 0.0, %v3728
    %v3730 = vpop.f32.mrf.mxu0
    %v3731 = vadd.f32 0.0, %v3730
    %3732 = vmatmul.bf16.gmra.mxu0 %v3714
    %v3733 = vpop.f32.mrf.mxu0
    %v3734 = vadd.f32 0.0, %v3733
    %v3735 = vpop.f32.mrf.mxu0
    %3736 = vdwg.mxu0
    %v3737 = vpack.c.bf16 %v3731, %v3729
    %v3738 = vpack.c.bf16 %v3734, %v3734
    %v3739 = vpack.c.bf16 %v2684, %v2684
    %v3741 = vsel %vm476, %v3737, 0
    %v3744 = vsel %vm476, %v3738, 0
    %v3747 = vsel %vm483, %v3739, 0
    %3749 = vmatpush.bf16.msra.mxu0 0
    %3750 = vmatpush.bf16.msra.mxu0 0
    %3751 = vmatpush.bf16.msra.mxu0 0
    %3752 = vmatpush.bf16.msra.mxu0 0
    %3753 = vmatpush.bf16.msra.mxu0 0
    %3754 = vmatpush.bf16.msra.mxu0 0
    %3755 = vmatpush.bf16.msra.mxu0 0
    %3756 = vmatpush.bf16.msra.mxu0 %v3747
    %3757 = vmatmul.bf16.gmra.mxu0 %v3741
    %v3758 = vpop.f32.mrf.mxu0
    %v3759 = vadd.f32 0.0, %v3758
    %v3760 = vpop.f32.mrf.mxu0
    %v3761 = vadd.f32 0.0, %v3760
    %3762 = vmatmul.bf16.gmra.mxu0 %v3744
    %v3763 = vpop.f32.mrf.mxu0
    %v3764 = vadd.f32 0.0, %v3763
    %v3765 = vpop.f32.mrf.mxu0
    %3766 = vdwg.mxu0
    %v3767 = vadd.f32 %v3549, %v3759
    %v3768 = vadd.f32 %v3550, %v3761
    %v3769 = vadd.f32 %v3551, %v3764
    %3773 = vrot.lane.b32.xlu0 %v2894, 96
    %v3774 = vpop.permute.xlu0 %3773
    %3775 = vrot.lane.b32.xlu0 %v2897, 96
    %v3776 = vpop.permute.xlu0 %3775
    %3777 = vrot.lane.b32.xlu0 %v2899, 96
    %v3778 = vpop.permute.xlu0 %3777
    %3782 = vxpose.xlu0.b32.start [1/16] %v3774, 128
    %3783 = vxpose.xlu0.b32.cont [2/16] %v3776, 128
    %3784 = vxpose.xlu0.b32.cont [3/16] %v3778, 128
    %3785 = vxpose.xlu0.b32.cont [4/16] 0.0, 128
    %3786 = vxpose.xlu0.b32.cont [5/16] 0.0, 128
    %3787 = vxpose.xlu0.b32.cont [6/16] 0.0, 128
    %3788 = vxpose.xlu0.b32.cont [7/16] 0.0, 128
    %3789 = vxpose.xlu0.b32.cont [8/16] 0.0, 128
    %3790 = vxpose.xlu0.b32.cont [9/16] 0.0, 128
    %3791 = vxpose.xlu0.b32.cont [10/16] 0.0, 128
    %3792 = vxpose.xlu0.b32.cont [11/16] 0.0, 128
    %3793 = vxpose.xlu0.b32.cont [12/16] 0.0, 128
    %3794 = vxpose.xlu0.b32.cont [13/16] 0.0, 128
    %3795 = vxpose.xlu0.b32.cont [14/16] 0.0, 128
    %3796 = vxpose.xlu0.b32.cont [15/16] 0.0, 128
    %3797 = vxpose.xlu0.b32.end [16/16] 0.0, 128
    %v3798 = vpop.trf.xlu0
    %v3799 = vpop.trf.xlu0
    %v3800 = vpop.trf.xlu0
    %v3801 = vpop.trf.xlu0
    %v3802 = vpop.trf.xlu0
    %v3803 = vpop.trf.xlu0
    %v3804 = vpop.trf.xlu0
    %v3805 = vpop.trf.xlu0
    %v3806 = vpop.trf.xlu0
    %v3807 = vpop.trf.xlu0
    %v3808 = vpop.trf.xlu0
    %v3809 = vpop.trf.xlu0
    %v3810 = vpop.trf.xlu0
    %v3811 = vpop.trf.xlu0
    %v3812 = vpop.trf.xlu0
    %v3813 = vpop.trf.xlu0
    %v3814 = vpack.c.bf16 %v2897, %v2894
    %v3815 = vpack.c.bf16 %v2899, %v2899
    %v3816 = vpack.c.bf16 %v3798, %v3798
    %v3818 = vsel %vm476, %v3814, 0
    %v3821 = vsel %vm476, %v3815, 0
    %v3824 = vsel %vm483, %v3816, 0
    %3826 = vmatpush.bf16.msra.mxu0 0
    %3827 = vmatpush.bf16.msra.mxu0 0
    %3828 = vmatpush.bf16.msra.mxu0 0
    %3829 = vmatpush.bf16.msra.mxu0 0
    %3830 = vmatpush.bf16.msra.mxu0 0
    %3831 = vmatpush.bf16.msra.mxu0 0
    %3832 = vmatpush.bf16.msra.mxu0 0
    %3833 = vmatpush.bf16.msra.mxu0 %v3824
    %3834 = vmatmul.bf16.gmra.mxu0 %v3818
    %v3835 = vpop.f32.mrf.mxu0
    %v3836 = vadd.f32 0.0, %v3835
    %v3837 = vpop.f32.mrf.mxu0
    %v3838 = vadd.f32 0.0, %v3837
    %3839 = vmatmul.bf16.gmra.mxu0 %v3821
    %v3840 = vpop.f32.mrf.mxu0
    %v3841 = vadd.f32 0.0, %v3840
    %v3842 = vpop.f32.mrf.mxu0
    %3843 = vdwg.mxu0
    %v3844 = vmul.f32 %v3836, 0.35355338
    %v3845 = vmul.f32 %v3838, 0.35355338
    %v3846 = vmul.f32 %v3841, 0.35355338
    %v3847 = vadd.f32 %v3844, %v135
    %v3848 = vadd.f32 %v3845, %v135
    %v3849 = vadd.f32 %v3846, %v135
    %v3850 = vsel %vm511, %v3847, -inf
    %3851 = vmax.xlane.f32.xlu0 %v3850
    %v3852 = vpop.xlane.xlu0 %3851
    %v3853 = vsel %vm511, %v3848, -inf
    %3854 = vmax.xlane.f32.xlu0 %v3853
    %v3855 = vpop.xlane.xlu0 %3854
    %v3856 = vsel %vm511, %v3849, -inf
    %3857 = vmax.xlane.f32.xlu0 %v3856
    %v3858 = vpop.xlane.xlu0 %3857
    %v3859 = vsub.f32 %v3847, %v3852
    %v3860 = vsub.f32 %v3848, %v3855
    %v3861 = vsub.f32 %v3849, %v3858
    %v3862 = vmul.f32 %v3859, 1.442695
    %v3863 = vpow.pop %v3862
    %v3864 = vmul.f32 %v3860, 1.442695
    %v3865 = vpow.pop %v3864
    %v3866 = vmul.f32 %v3861, 1.442695
    %v3867 = vpow.pop %v3866
    %v3868 = vsel %vm511, %v3863, 0.0
    %3869 = vadd.xlane.f32.xlu0 %v3868
    %v3870 = vpop.xlane.xlu0 %3869
    %v3871 = vsel %vm511, %v3865, 0.0
    %3872 = vadd.xlane.f32.xlu0 %v3871
    %v3873 = vpop.xlane.xlu0 %3872
    %v3874 = vsel %vm511, %v3867, 0.0
    %3875 = vadd.xlane.f32.xlu0 %v3874
    %v3876 = vpop.xlane.xlu0 %3875
    %v3877 = vrcp.pop %v3870
    %v3878 = vmul.f32 %v3870, %v3877
    %v3879 = vsub.f32 1.0, %v3878
    %v3880 = vmul.f32 %v3877, %v3879
    %v3881 = vadd.f32 %v3877, %v3880
    %vm3882 = vweird.f32 %v3870
    %vm3883 = vweird.f32 %v3877
    %vm3884 = vmor %vm3882, %vm3883
    %v3885 = vsel %vm3884, %v3877, %v3881
    %v3886 = vand.u32 2147483647, %v3870
    %vm3887 = vcmp.eq.f32.partialorder %v3886, 8.507059e+37
    %v3888 = vand.u32 %v3870, 2147483648
    %v3889 = vor.u32 1.1754944e-38, %v3888
    %v3890 = vsel %vm3887, %v3889, %v3885
    %v3891 = vmul.f32 %v3863, %v3890
    %v3892 = vrcp.pop %v3873
    %v3893 = vmul.f32 %v3873, %v3892
    %v3894 = vsub.f32 1.0, %v3893
    %v3895 = vmul.f32 %v3892, %v3894
    %v3896 = vadd.f32 %v3892, %v3895
    %vm3897 = vweird.f32 %v3873
    %vm3898 = vweird.f32 %v3892
    %vm3899 = vmor %vm3897, %vm3898
    %v3900 = vsel %vm3899, %v3892, %v3896
    %v3901 = vand.u32 2147483647, %v3873
    %vm3902 = vcmp.eq.f32.partialorder %v3901, 8.507059e+37
    %v3903 = vand.u32 %v3873, 2147483648
    %v3904 = vor.u32 1.1754944e-38, %v3903
    %v3905 = vsel %vm3902, %v3904, %v3900
    %v3906 = vmul.f32 %v3865, %v3905
    %v3907 = vrcp.pop %v3876
    %v3908 = vmul.f32 %v3876, %v3907
    %v3909 = vsub.f32 1.0, %v3908
    %v3910 = vmul.f32 %v3907, %v3909
    %v3911 = vadd.f32 %v3907, %v3910
    %vm3912 = vweird.f32 %v3876
    %vm3913 = vweird.f32 %v3907
    %vm3914 = vmor %vm3912, %vm3913
    %v3915 = vsel %vm3914, %v3907, %v3911
    %v3916 = vand.u32 2147483647, %v3876
    %vm3917 = vcmp.eq.f32.partialorder %v3916, 8.507059e+37
    %v3918 = vand.u32 %v3876, 2147483648
    %v3919 = vor.u32 1.1754944e-38, %v3918
    %v3920 = vsel %vm3917, %v3919, %v3915
    %v3921 = vmul.f32 %v3867, %v3920
    %v3922 = vpack.c.bf16 %v3906, %v3891
    %v3923 = vpack.c.bf16 %v3921, %v3921
    %3926 = vrot.lane.b32.xlu0 %v3814, 64
    %v3927 = vpop.permute.xlu0 %3926
    %3928 = vrot.lane.b32.xlu0 %v3815, 64
    %v3929 = vpop.permute.xlu0 %3928
    %v3932 = vsel %vm511, %v3922, 0
    %v3935 = vsel %vm511, %v3923, 0
    %v3938 = vsel %vm483, %v3929, 0
    %3940 = vmatpush.bf16.msra.mxu0 0
    %3941 = vmatpush.bf16.msra.mxu0 0
    %3942 = vmatpush.bf16.msra.mxu0 0
    %3943 = vmatpush.bf16.msra.mxu0 0
    %3944 = vmatpush.bf16.msra.mxu0 0
    %3945 = vmatpush.bf16.msra.mxu0 0
    %3946 = vmatpush.bf16.msra.mxu0 %v3938
    %3947 = vmatpush.bf16.msra.mxu0 %v3927
    %3948 = vmatmul.bf16.gmra.mxu0 %v3932
    %v3949 = vpop.f32.mrf.mxu0
    %v3950 = vadd.f32 0.0, %v3949
    %v3951 = vpop.f32.mrf.mxu0
    %v3952 = vadd.f32 0.0, %v3951
    %3953 = vmatmul.bf16.gmra.mxu0 %v3935
    %v3954 = vpop.f32.mrf.mxu0
    %v3955 = vadd.f32 0.0, %v3954
    %v3956 = vpop.f32.mrf.mxu0
    %3957 = vdwg.mxu0
    %v3958 = vpack.c.bf16 %v3952, %v3950
    %v3959 = vpack.c.bf16 %v3955, %v3955
    %3960 = vrot.lane.b32.xlu0 %v2894, 88
    %v3961 = vpop.permute.xlu0 %3960
    %3962 = vrot.lane.b32.xlu0 %v2897, 88
    %v3963 = vpop.permute.xlu0 %3962
    %3964 = vrot.lane.b32.xlu0 %v2899, 88
    %v3965 = vpop.permute.xlu0 %3964
    %3969 = vxpose.xlu0.b32.start [1/16] %v3961, 128
    %3970 = vxpose.xlu0.b32.cont [2/16] %v3963, 128
    %3971 = vxpose.xlu0.b32.cont [3/16] %v3965, 128
    %3972 = vxpose.xlu0.b32.cont [4/16] 0.0, 128
    %3973 = vxpose.xlu0.b32.cont [5/16] 0.0, 128
    %3974 = vxpose.xlu0.b32.cont [6/16] 0.0, 128
    %3975 = vxpose.xlu0.b32.cont [7/16] 0.0, 128
    %3976 = vxpose.xlu0.b32.cont [8/16] 0.0, 128
    %3977 = vxpose.xlu0.b32.cont [9/16] 0.0, 128
    %3978 = vxpose.xlu0.b32.cont [10/16] 0.0, 128
    %3979 = vxpose.xlu0.b32.cont [11/16] 0.0, 128
    %3980 = vxpose.xlu0.b32.cont [12/16] 0.0, 128
    %3981 = vxpose.xlu0.b32.cont [13/16] 0.0, 128
    %3982 = vxpose.xlu0.b32.cont [14/16] 0.0, 128
    %3983 = vxpose.xlu0.b32.cont [15/16] 0.0, 128
    %3984 = vxpose.xlu0.b32.end [16/16] 0.0, 128
    %v3985 = vpop.trf.xlu0
    %v3986 = vpop.trf.xlu0
    %v3987 = vpop.trf.xlu0
    %v3988 = vpop.trf.xlu0
    %v3989 = vpop.trf.xlu0
    %v3990 = vpop.trf.xlu0
    %v3991 = vpop.trf.xlu0
    %v3992 = vpop.trf.xlu0
    %v3993 = vpop.trf.xlu0
    %v3994 = vpop.trf.xlu0
    %v3995 = vpop.trf.xlu0
    %v3996 = vpop.trf.xlu0
    %v3997 = vpop.trf.xlu0
    %v3998 = vpop.trf.xlu0
    %v3999 = vpop.trf.xlu0
    %v4000 = vpop.trf.xlu0
    %v4001 = vpack.c.bf16 %v3985, %v3985
    %4002 = vrot.lane.b32.xlu0 %v3814, 120
    %v4003 = vpop.permute.xlu0 %4002
    %4004 = vrot.lane.b32.xlu0 %v3815, 120
    %v4005 = vpop.permute.xlu0 %4004
    %v4007 = vsel %vm476, %v4003, 0
    %v4010 = vsel %vm476, %v4005, 0
    %v4013 = vsel %vm483, %v4001, 0
    %4015 = vmatpush.bf16.msra.mxu0 0
    %4016 = vmatpush.bf16.msra.mxu0 0
    %4017 = vmatpush.bf16.msra.mxu0 0
    %4018 = vmatpush.bf16.msra.mxu0 0
    %4019 = vmatpush.bf16.msra.mxu0 0
    %4020 = vmatpush.bf16.msra.mxu0 0
    %4021 = vmatpush.bf16.msra.mxu0 0
    %4022 = vmatpush.bf16.msra.mxu0 %v4013
    %4023 = vmatmul.bf16.gmra.mxu0 %v4007
    %v4024 = vpop.f32.mrf.mxu0
    %v4025 = vadd.f32 0.0, %v4024
    %v4026 = vpop.f32.mrf.mxu0
    %v4027 = vadd.f32 0.0, %v4026
    %4028 = vmatmul.bf16.gmra.mxu0 %v4010
    %v4029 = vpop.f32.mrf.mxu0
    %v4030 = vadd.f32 0.0, %v4029
    %v4031 = vpop.f32.mrf.mxu0
    %4032 = vdwg.mxu0
    %v4033 = vmul.f32 %v4025, 0.35355338
    %v4034 = vmul.f32 %v4027, 0.35355338
    %v4035 = vmul.f32 %v4030, 0.35355338
    %v4036 = vadd.f32 %v4033, %v135
    %v4037 = vadd.f32 %v4034, %v135
    %v4038 = vadd.f32 %v4035, %v135
    %v4039 = vsel %vm511, %v4036, -inf
    %4040 = vmax.xlane.f32.xlu0 %v4039
    %v4041 = vpop.xlane.xlu0 %4040
    %v4042 = vsel %vm511, %v4037, -inf
    %4043 = vmax.xlane.f32.xlu0 %v4042
    %v4044 = vpop.xlane.xlu0 %4043
    %v4045 = vsel %vm511, %v4038, -inf
    %4046 = vmax.xlane.f32.xlu0 %v4045
    %v4047 = vpop.xlane.xlu0 %4046
    %v4048 = vsub.f32 %v4036, %v4041
    %v4049 = vsub.f32 %v4037, %v4044
    %v4050 = vsub.f32 %v4038, %v4047
    %v4051 = vmul.f32 %v4048, 1.442695
    %v4052 = vpow.pop %v4051
    %v4053 = vmul.f32 %v4049, 1.442695
    %v4054 = vpow.pop %v4053
    %v4055 = vmul.f32 %v4050, 1.442695
    %v4056 = vpow.pop %v4055
    %v4057 = vsel %vm511, %v4052, 0.0
    %4058 = vadd.xlane.f32.xlu0 %v4057
    %v4059 = vpop.xlane.xlu0 %4058
    %v4060 = vsel %vm511, %v4054, 0.0
    %4061 = vadd.xlane.f32.xlu0 %v4060
    %v4062 = vpop.xlane.xlu0 %4061
    %v4063 = vsel %vm511, %v4056, 0.0
    %4064 = vadd.xlane.f32.xlu0 %v4063
    %v4065 = vpop.xlane.xlu0 %4064
    %v4066 = vrcp.pop %v4059
    %v4067 = vmul.f32 %v4059, %v4066
    %v4068 = vsub.f32 1.0, %v4067
    %v4069 = vmul.f32 %v4066, %v4068
    %v4070 = vadd.f32 %v4066, %v4069
    %vm4071 = vweird.f32 %v4059
    %vm4072 = vweird.f32 %v4066
    %vm4073 = vmor %vm4071, %vm4072
    %v4074 = vsel %vm4073, %v4066, %v4070
    %v4075 = vand.u32 2147483647, %v4059
    %vm4076 = vcmp.eq.f32.partialorder %v4075, 8.507059e+37
    %v4077 = vand.u32 %v4059, 2147483648
    %v4078 = vor.u32 1.1754944e-38, %v4077
    %v4079 = vsel %vm4076, %v4078, %v4074
    %v4080 = vmul.f32 %v4052, %v4079
    %v4081 = vrcp.pop %v4062
    %v4082 = vmul.f32 %v4062, %v4081
    %v4083 = vsub.f32 1.0, %v4082
    %v4084 = vmul.f32 %v4081, %v4083
    %v4085 = vadd.f32 %v4081, %v4084
    %vm4086 = vweird.f32 %v4062
    %vm4087 = vweird.f32 %v4081
    %vm4088 = vmor %vm4086, %vm4087
    %v4089 = vsel %vm4088, %v4081, %v4085
    %v4090 = vand.u32 2147483647, %v4062
    %vm4091 = vcmp.eq.f32.partialorder %v4090, 8.507059e+37
    %v4092 = vand.u32 %v4062, 2147483648
    %v4093 = vor.u32 1.1754944e-38, %v4092
    %v4094 = vsel %vm4091, %v4093, %v4089
    %v4095 = vmul.f32 %v4054, %v4094
    %v4096 = vrcp.pop %v4065
    %v4097 = vmul.f32 %v4065, %v4096
    %v4098 = vsub.f32 1.0, %v4097
    %v4099 = vmul.f32 %v4096, %v4098
    %v4100 = vadd.f32 %v4096, %v4099
    %vm4101 = vweird.f32 %v4065
    %vm4102 = vweird.f32 %v4096
    %vm4103 = vmor %vm4101, %vm4102
    %v4104 = vsel %vm4103, %v4096, %v4100
    %v4105 = vand.u32 2147483647, %v4065
    %vm4106 = vcmp.eq.f32.partialorder %v4105, 8.507059e+37
    %v4107 = vand.u32 %v4065, 2147483648
    %v4108 = vor.u32 1.1754944e-38, %v4107
    %v4109 = vsel %vm4106, %v4108, %v4104
    %v4110 = vmul.f32 %v4056, %v4109
    %v4111 = vpack.c.bf16 %v4095, %v4080
    %v4112 = vpack.c.bf16 %v4110, %v4110
    %4113 = vrot.lane.b32.xlu0 %v3814, 56
    %v4114 = vpop.permute.xlu0 %4113
    %4115 = vrot.lane.b32.xlu0 %v3815, 56
    %v4116 = vpop.permute.xlu0 %4115
    %v4119 = vsel %vm511, %v4111, 0
    %v4122 = vsel %vm511, %v4112, 0
    %v4125 = vsel %vm483, %v4116, 0
    %4127 = vmatpush.bf16.msra.mxu0 0
    %4128 = vmatpush.bf16.msra.mxu0 0
    %4129 = vmatpush.bf16.msra.mxu0 0
    %4130 = vmatpush.bf16.msra.mxu0 0
    %4131 = vmatpush.bf16.msra.mxu0 0
    %4132 = vmatpush.bf16.msra.mxu0 0
    %4133 = vmatpush.bf16.msra.mxu0 %v4125
    %4134 = vmatpush.bf16.msra.mxu0 %v4114
    %4135 = vmatmul.bf16.gmra.mxu0 %v4119
    %v4136 = vpop.f32.mrf.mxu0
    %v4137 = vadd.f32 0.0, %v4136
    %v4138 = vpop.f32.mrf.mxu0
    %v4139 = vadd.f32 0.0, %v4138
    %4140 = vmatmul.bf16.gmra.mxu0 %v4122
    %v4141 = vpop.f32.mrf.mxu0
    %v4142 = vadd.f32 0.0, %v4141
    %v4143 = vpop.f32.mrf.mxu0
    %4144 = vdwg.mxu0
    %v4145 = vpack.c.bf16 %v4139, %v4137
    %v4146 = vpack.c.bf16 %v4142, %v4142
    %v4148 = vsel %vm476, %v4145, 0
    %v4151 = vsel %vm476, %v4146, 0
    %4153 = vmatpush.bf16.msra.mxu0 0
    %4154 = vmatpush.bf16.msra.mxu0 0
    %4155 = vmatpush.bf16.msra.mxu0 0
    %4156 = vmatpush.bf16.msra.mxu0 0
    %4157 = vmatpush.bf16.msra.mxu0 0
    %4158 = vmatpush.bf16.msra.mxu0 0
    %4159 = vmatpush.bf16.msra.mxu0 0
    %4160 = vmatpush.bf16.msra.mxu0 %v3287
    %4161 = vmatmul.bf16.gmra.mxu0 %v4148
    %v4162 = vpop.f32.mrf.mxu0
    %v4163 = vadd.f32 0.0, %v4162
    %v4164 = vpop.f32.mrf.mxu0
    %v4165 = vadd.f32 0.0, %v4164
    %4166 = vmatmul.bf16.gmra.mxu0 %v4151
    %v4167 = vpop.f32.mrf.mxu0
    %v4168 = vadd.f32 0.0, %v4167
    %v4169 = vpop.f32.mrf.mxu0
    %4170 = vdwg.mxu0
    %v4172 = vsel %vm476, %v3958, 0
    %v4175 = vsel %vm476, %v3959, 0
    %4177 = vmatpush.bf16.msra.mxu0 0
    %4178 = vmatpush.bf16.msra.mxu0 0
    %4179 = vmatpush.bf16.msra.mxu0 0
    %4180 = vmatpush.bf16.msra.mxu0 0
    %4181 = vmatpush.bf16.msra.mxu0 0
    %4182 = vmatpush.bf16.msra.mxu0 0
    %4183 = vmatpush.bf16.msra.mxu0 0
    %4184 = vmatpush.bf16.msra.mxu0 %v3314
    %4185 = vmatmul.bf16.gmra.mxu0 %v4172
    %v4186 = vpop.f32.mrf.mxu0
    %v4187 = vadd.f32 %v4163, %v4186
    %v4188 = vpop.f32.mrf.mxu0
    %v4189 = vadd.f32 %v4165, %v4188
    %4190 = vmatmul.bf16.gmra.mxu0 %v4175
    %v4191 = vpop.f32.mrf.mxu0
    %v4192 = vadd.f32 %v4168, %v4191
    %v4193 = vpop.f32.mrf.mxu0
    %4194 = vdwg.mxu0
    %4195 = vrot.lane.b32.xlu0 %v2894, 80
    %v4196 = vpop.permute.xlu0 %4195
    %4197 = vrot.lane.b32.xlu0 %v2897, 80
    %v4198 = vpop.permute.xlu0 %4197
    %4199 = vrot.lane.b32.xlu0 %v2899, 80
    %v4200 = vpop.permute.xlu0 %4199
    %4204 = vxpose.xlu0.b32.start [1/16] %v4196, 128
    %4205 = vxpose.xlu0.b32.cont [2/16] %v4198, 128
    %4206 = vxpose.xlu0.b32.cont [3/16] %v4200, 128
    %4207 = vxpose.xlu0.b32.cont [4/16] 0.0, 128
    %4208 = vxpose.xlu0.b32.cont [5/16] 0.0, 128
    %4209 = vxpose.xlu0.b32.cont [6/16] 0.0, 128
    %4210 = vxpose.xlu0.b32.cont [7/16] 0.0, 128
    %4211 = vxpose.xlu0.b32.cont [8/16] 0.0, 128
    %4212 = vxpose.xlu0.b32.cont [9/16] 0.0, 128
    %4213 = vxpose.xlu0.b32.cont [10/16] 0.0, 128
    %4214 = vxpose.xlu0.b32.cont [11/16] 0.0, 128
    %4215 = vxpose.xlu0.b32.cont [12/16] 0.0, 128
    %4216 = vxpose.xlu0.b32.cont [13/16] 0.0, 128
    %4217 = vxpose.xlu0.b32.cont [14/16] 0.0, 128
    %4218 = vxpose.xlu0.b32.cont [15/16] 0.0, 128
    %4219 = vxpose.xlu0.b32.end [16/16] 0.0, 128
    %v4220 = vpop.trf.xlu0
    %v4221 = vpop.trf.xlu0
    %v4222 = vpop.trf.xlu0
    %v4223 = vpop.trf.xlu0
    %v4224 = vpop.trf.xlu0
    %v4225 = vpop.trf.xlu0
    %v4226 = vpop.trf.xlu0
    %v4227 = vpop.trf.xlu0
    %v4228 = vpop.trf.xlu0
    %v4229 = vpop.trf.xlu0
    %v4230 = vpop.trf.xlu0
    %v4231 = vpop.trf.xlu0
    %v4232 = vpop.trf.xlu0
    %v4233 = vpop.trf.xlu0
    %v4234 = vpop.trf.xlu0
    %v4235 = vpop.trf.xlu0
    %v4236 = vpack.c.bf16 %v4220, %v4220
    %4237 = vrot.lane.b32.xlu0 %v3814, 112
    %v4238 = vpop.permute.xlu0 %4237
    %4239 = vrot.lane.b32.xlu0 %v3815, 112
    %v4240 = vpop.permute.xlu0 %4239
    %v4242 = vsel %vm476, %v4238, 0
    %v4245 = vsel %vm476, %v4240, 0
    %v4248 = vsel %vm483, %v4236, 0
    %4250 = vmatpush.bf16.msra.mxu0 0
    %4251 = vmatpush.bf16.msra.mxu0 0
    %4252 = vmatpush.bf16.msra.mxu0 0
    %4253 = vmatpush.bf16.msra.mxu0 0
    %4254 = vmatpush.bf16.msra.mxu0 0
    %4255 = vmatpush.bf16.msra.mxu0 0
    %4256 = vmatpush.bf16.msra.mxu0 0
    %4257 = vmatpush.bf16.msra.mxu0 %v4248
    %4258 = vmatmul.bf16.gmra.mxu0 %v4242
    %v4259 = vpop.f32.mrf.mxu0
    %v4260 = vadd.f32 0.0, %v4259
    %v4261 = vpop.f32.mrf.mxu0
    %v4262 = vadd.f32 0.0, %v4261
    %4263 = vmatmul.bf16.gmra.mxu0 %v4245
    %v4264 = vpop.f32.mrf.mxu0
    %v4265 = vadd.f32 0.0, %v4264
    %v4266 = vpop.f32.mrf.mxu0
    %4267 = vdwg.mxu0
    %v4268 = vmul.f32 %v4260, 0.35355338
    %v4269 = vmul.f32 %v4262, 0.35355338
    %v4270 = vmul.f32 %v4265, 0.35355338
    %v4271 = vadd.f32 %v4268, %v135
    %v4272 = vadd.f32 %v4269, %v135
    %v4273 = vadd.f32 %v4270, %v135
    %v4274 = vsel %vm511, %v4271, -inf
    %4275 = vmax.xlane.f32.xlu0 %v4274
    %v4276 = vpop.xlane.xlu0 %4275
    %v4277 = vsel %vm511, %v4272, -inf
    %4278 = vmax.xlane.f32.xlu0 %v4277
    %v4279 = vpop.xlane.xlu0 %4278
    %v4280 = vsel %vm511, %v4273, -inf
    %4281 = vmax.xlane.f32.xlu0 %v4280
    %v4282 = vpop.xlane.xlu0 %4281
    %v4283 = vsub.f32 %v4271, %v4276
    %v4284 = vsub.f32 %v4272, %v4279
    %v4285 = vsub.f32 %v4273, %v4282
    %v4286 = vmul.f32 %v4283, 1.442695
    %v4287 = vpow.pop %v4286
    %v4288 = vmul.f32 %v4284, 1.442695
    %v4289 = vpow.pop %v4288
    %v4290 = vmul.f32 %v4285, 1.442695
    %v4291 = vpow.pop %v4290
    %v4292 = vsel %vm511, %v4287, 0.0
    %4293 = vadd.xlane.f32.xlu0 %v4292
    %v4294 = vpop.xlane.xlu0 %4293
    %v4295 = vsel %vm511, %v4289, 0.0
    %4296 = vadd.xlane.f32.xlu0 %v4295
    %v4297 = vpop.xlane.xlu0 %4296
    %v4298 = vsel %vm511, %v4291, 0.0
    %4299 = vadd.xlane.f32.xlu0 %v4298
    %v4300 = vpop.xlane.xlu0 %4299
    %v4301 = vrcp.pop %v4294
    %v4302 = vmul.f32 %v4294, %v4301
    %v4303 = vsub.f32 1.0, %v4302
    %v4304 = vmul.f32 %v4301, %v4303
    %v4305 = vadd.f32 %v4301, %v4304
    %vm4306 = vweird.f32 %v4294
    %vm4307 = vweird.f32 %v4301
    %vm4308 = vmor %vm4306, %vm4307
    %v4309 = vsel %vm4308, %v4301, %v4305
    %v4310 = vand.u32 2147483647, %v4294
    %vm4311 = vcmp.eq.f32.partialorder %v4310, 8.507059e+37
    %v4312 = vand.u32 %v4294, 2147483648
    %v4313 = vor.u32 1.1754944e-38, %v4312
    %v4314 = vsel %vm4311, %v4313, %v4309
    %v4315 = vmul.f32 %v4287, %v4314
    %v4316 = vrcp.pop %v4297
    %v4317 = vmul.f32 %v4297, %v4316
    %v4318 = vsub.f32 1.0, %v4317
    %v4319 = vmul.f32 %v4316, %v4318
    %v4320 = vadd.f32 %v4316, %v4319
    %vm4321 = vweird.f32 %v4297
    %vm4322 = vweird.f32 %v4316
    %vm4323 = vmor %vm4321, %vm4322
    %v4324 = vsel %vm4323, %v4316, %v4320
    %v4325 = vand.u32 2147483647, %v4297
    %vm4326 = vcmp.eq.f32.partialorder %v4325, 8.507059e+37
    %v4327 = vand.u32 %v4297, 2147483648
    %v4328 = vor.u32 1.1754944e-38, %v4327
    %v4329 = vsel %vm4326, %v4328, %v4324
    %v4330 = vmul.f32 %v4289, %v4329
    %v4331 = vrcp.pop %v4300
    %v4332 = vmul.f32 %v4300, %v4331
    %v4333 = vsub.f32 1.0, %v4332
    %v4334 = vmul.f32 %v4331, %v4333
    %v4335 = vadd.f32 %v4331, %v4334
    %vm4336 = vweird.f32 %v4300
    %vm4337 = vweird.f32 %v4331
    %vm4338 = vmor %vm4336, %vm4337
    %v4339 = vsel %vm4338, %v4331, %v4335
    %v4340 = vand.u32 2147483647, %v4300
    %vm4341 = vcmp.eq.f32.partialorder %v4340, 8.507059e+37
    %v4342 = vand.u32 %v4300, 2147483648
    %v4343 = vor.u32 1.1754944e-38, %v4342
    %v4344 = vsel %vm4341, %v4343, %v4339
    %v4345 = vmul.f32 %v4291, %v4344
    %v4346 = vpack.c.bf16 %v4330, %v4315
    %v4347 = vpack.c.bf16 %v4345, %v4345
    %4348 = vrot.lane.b32.xlu0 %v3814, 48
    %v4349 = vpop.permute.xlu0 %4348
    %4350 = vrot.lane.b32.xlu0 %v3815, 48
    %v4351 = vpop.permute.xlu0 %4350
    %v4354 = vsel %vm511, %v4346, 0
    %v4357 = vsel %vm511, %v4347, 0
    %v4360 = vsel %vm483, %v4351, 0
    %4362 = vmatpush.bf16.msra.mxu0 0
    %4363 = vmatpush.bf16.msra.mxu0 0
    %4364 = vmatpush.bf16.msra.mxu0 0
    %4365 = vmatpush.bf16.msra.mxu0 0
    %4366 = vmatpush.bf16.msra.mxu0 0
    %4367 = vmatpush.bf16.msra.mxu0 0
    %4368 = vmatpush.bf16.msra.mxu0 %v4360
    %4369 = vmatpush.bf16.msra.mxu0 %v4349
    %4370 = vmatmul.bf16.gmra.mxu0 %v4354
    %v4371 = vpop.f32.mrf.mxu0
    %v4372 = vadd.f32 0.0, %v4371
    %v4373 = vpop.f32.mrf.mxu0
    %v4374 = vadd.f32 0.0, %v4373
    %4375 = vmatmul.bf16.gmra.mxu0 %v4357
    %v4376 = vpop.f32.mrf.mxu0
    %v4377 = vadd.f32 0.0, %v4376
    %v4378 = vpop.f32.mrf.mxu0
    %4379 = vdwg.mxu0
    %v4380 = vpack.c.bf16 %v4374, %v4372
    %v4381 = vpack.c.bf16 %v4377, %v4377
    %v4383 = vsel %vm476, %v4380, 0
    %v4386 = vsel %vm476, %v4381, 0
    %4388 = vmatpush.bf16.msra.mxu0 0
    %4389 = vmatpush.bf16.msra.mxu0 0
    %4390 = vmatpush.bf16.msra.mxu0 0
    %4391 = vmatpush.bf16.msra.mxu0 0
    %4392 = vmatpush.bf16.msra.mxu0 0
    %4393 = vmatpush.bf16.msra.mxu0 0
    %4394 = vmatpush.bf16.msra.mxu0 0
    %4395 = vmatpush.bf16.msra.mxu0 %v3529
    %4396 = vmatmul.bf16.gmra.mxu0 %v4383
    %v4397 = vpop.f32.mrf.mxu0
    %v4398 = vadd.f32 0.0, %v4397
    %v4399 = vpop.f32.mrf.mxu0
    %v4400 = vadd.f32 0.0, %v4399
    %4401 = vmatmul.bf16.gmra.mxu0 %v4386
    %v4402 = vpop.f32.mrf.mxu0
    %v4403 = vadd.f32 0.0, %v4402
    %v4404 = vpop.f32.mrf.mxu0
    %4405 = vdwg.mxu0
    %v4406 = vadd.f32 %v4187, %v4398
    %v4407 = vadd.f32 %v4189, %v4400
    %v4408 = vadd.f32 %v4192, %v4403
    %4409 = vrot.lane.b32.xlu0 %v2894, 72
    %v4410 = vpop.permute.xlu0 %4409
    %4411 = vrot.lane.b32.xlu0 %v2897, 72
    %v4412 = vpop.permute.xlu0 %4411
    %4413 = vrot.lane.b32.xlu0 %v2899, 72
    %v4414 = vpop.permute.xlu0 %4413
    %4418 = vxpose.xlu0.b32.start [1/16] %v4410, 128
    %4419 = vxpose.xlu0.b32.cont [2/16] %v4412, 128
    %4420 = vxpose.xlu0.b32.cont [3/16] %v4414, 128
    %4421 = vxpose.xlu0.b32.cont [4/16] 0.0, 128
    %4422 = vxpose.xlu0.b32.cont [5/16] 0.0, 128
    %4423 = vxpose.xlu0.b32.cont [6/16] 0.0, 128
    %4424 = vxpose.xlu0.b32.cont [7/16] 0.0, 128
    %4425 = vxpose.xlu0.b32.cont [8/16] 0.0, 128
    %4426 = vxpose.xlu0.b32.cont [9/16] 0.0, 128
    %4427 = vxpose.xlu0.b32.cont [10/16] 0.0, 128
    %4428 = vxpose.xlu0.b32.cont [11/16] 0.0, 128
    %4429 = vxpose.xlu0.b32.cont [12/16] 0.0, 128
    %4430 = vxpose.xlu0.b32.cont [13/16] 0.0, 128
    %4431 = vxpose.xlu0.b32.cont [14/16] 0.0, 128
    %4432 = vxpose.xlu0.b32.cont [15/16] 0.0, 128
    %4433 = vxpose.xlu0.b32.end [16/16] 0.0, 128
    %v4434 = vpop.trf.xlu0
    %v4435 = vpop.trf.xlu0
    %v4436 = vpop.trf.xlu0
    %v4437 = vpop.trf.xlu0
    %v4438 = vpop.trf.xlu0
    %v4439 = vpop.trf.xlu0
    %v4440 = vpop.trf.xlu0
    %v4441 = vpop.trf.xlu0
    %v4442 = vpop.trf.xlu0
    %v4443 = vpop.trf.xlu0
    %v4444 = vpop.trf.xlu0
    %v4445 = vpop.trf.xlu0
    %v4446 = vpop.trf.xlu0
    %v4447 = vpop.trf.xlu0
    %v4448 = vpop.trf.xlu0
    %v4449 = vpop.trf.xlu0
    %v4450 = vpack.c.bf16 %v4434, %v4434
    %4451 = vrot.lane.b32.xlu0 %v3814, 104
    %v4452 = vpop.permute.xlu0 %4451
    %4453 = vrot.lane.b32.xlu0 %v3815, 104
    %v4454 = vpop.permute.xlu0 %4453
    %v4456 = vsel %vm476, %v4452, 0
    %v4459 = vsel %vm476, %v4454, 0
    %v4462 = vsel %vm483, %v4450, 0
    %4464 = vmatpush.bf16.msra.mxu0 0
    %4465 = vmatpush.bf16.msra.mxu0 0
    %4466 = vmatpush.bf16.msra.mxu0 0
    %4467 = vmatpush.bf16.msra.mxu0 0
    %4468 = vmatpush.bf16.msra.mxu0 0
    %4469 = vmatpush.bf16.msra.mxu0 0
    %4470 = vmatpush.bf16.msra.mxu0 0
    %4471 = vmatpush.bf16.msra.mxu0 %v4462
    %4472 = vmatmul.bf16.gmra.mxu0 %v4456
    %v4473 = vpop.f32.mrf.mxu0
    %v4474 = vadd.f32 0.0, %v4473
    %v4475 = vpop.f32.mrf.mxu0
    %v4476 = vadd.f32 0.0, %v4475
    %4477 = vmatmul.bf16.gmra.mxu0 %v4459
    %v4478 = vpop.f32.mrf.mxu0
    %v4479 = vadd.f32 0.0, %v4478
    %v4480 = vpop.f32.mrf.mxu0
    %4481 = vdwg.mxu0
    %v4482 = vmul.f32 %v4474, 0.35355338
    %v4483 = vmul.f32 %v4476, 0.35355338
    %v4484 = vmul.f32 %v4479, 0.35355338
    %v4485 = vadd.f32 %v4482, %v135
    %v4486 = vadd.f32 %v4483, %v135
    %v4487 = vadd.f32 %v4484, %v135
    %v4488 = vsel %vm511, %v4485, -inf
    %4489 = vmax.xlane.f32.xlu0 %v4488
    %v4490 = vpop.xlane.xlu0 %4489
    %v4491 = vsel %vm511, %v4486, -inf
    %4492 = vmax.xlane.f32.xlu0 %v4491
    %v4493 = vpop.xlane.xlu0 %4492
    %v4494 = vsel %vm511, %v4487, -inf
    %4495 = vmax.xlane.f32.xlu0 %v4494
    %v4496 = vpop.xlane.xlu0 %4495
    %v4497 = vsub.f32 %v4485, %v4490
    %v4498 = vsub.f32 %v4486, %v4493
    %v4499 = vsub.f32 %v4487, %v4496
    %v4500 = vmul.f32 %v4497, 1.442695
    %v4501 = vpow.pop %v4500
    %v4502 = vmul.f32 %v4498, 1.442695
    %v4503 = vpow.pop %v4502
    %v4504 = vmul.f32 %v4499, 1.442695
    %v4505 = vpow.pop %v4504
    %v4506 = vsel %vm511, %v4501, 0.0
    %4507 = vadd.xlane.f32.xlu0 %v4506
    %v4508 = vpop.xlane.xlu0 %4507
    %v4509 = vsel %vm511, %v4503, 0.0
    %4510 = vadd.xlane.f32.xlu0 %v4509
    %v4511 = vpop.xlane.xlu0 %4510
    %v4512 = vsel %vm511, %v4505, 0.0
    %4513 = vadd.xlane.f32.xlu0 %v4512
    %v4514 = vpop.xlane.xlu0 %4513
    %v4515 = vrcp.pop %v4508
    %v4516 = vmul.f32 %v4508, %v4515
    %v4517 = vsub.f32 1.0, %v4516
    %v4518 = vmul.f32 %v4515, %v4517
    %v4519 = vadd.f32 %v4515, %v4518
    %vm4520 = vweird.f32 %v4508
    %vm4521 = vweird.f32 %v4515
    %vm4522 = vmor %vm4520, %vm4521
    %v4523 = vsel %vm4522, %v4515, %v4519
    %v4524 = vand.u32 2147483647, %v4508
    %vm4525 = vcmp.eq.f32.partialorder %v4524, 8.507059e+37
    %v4526 = vand.u32 %v4508, 2147483648
    %v4527 = vor.u32 1.1754944e-38, %v4526
    %v4528 = vsel %vm4525, %v4527, %v4523
    %v4529 = vmul.f32 %v4501, %v4528
    %v4530 = vrcp.pop %v4511
    %v4531 = vmul.f32 %v4511, %v4530
    %v4532 = vsub.f32 1.0, %v4531
    %v4533 = vmul.f32 %v4530, %v4532
    %v4534 = vadd.f32 %v4530, %v4533
    %vm4535 = vweird.f32 %v4511
    %vm4536 = vweird.f32 %v4530
    %vm4537 = vmor %vm4535, %vm4536
    %v4538 = vsel %vm4537, %v4530, %v4534
    %v4539 = vand.u32 2147483647, %v4511
    %vm4540 = vcmp.eq.f32.partialorder %v4539, 8.507059e+37
    %v4541 = vand.u32 %v4511, 2147483648
    %v4542 = vor.u32 1.1754944e-38, %v4541
    %v4543 = vsel %vm4540, %v4542, %v4538
    %v4544 = vmul.f32 %v4503, %v4543
    %v4545 = vrcp.pop %v4514
    %v4546 = vmul.f32 %v4514, %v4545
    %v4547 = vsub.f32 1.0, %v4546
    %v4548 = vmul.f32 %v4545, %v4547
    %v4549 = vadd.f32 %v4545, %v4548
    %vm4550 = vweird.f32 %v4514
    %vm4551 = vweird.f32 %v4545
    %vm4552 = vmor %vm4550, %vm4551
    %v4553 = vsel %vm4552, %v4545, %v4549
    %v4554 = vand.u32 2147483647, %v4514
    %vm4555 = vcmp.eq.f32.partialorder %v4554, 8.507059e+37
    %v4556 = vand.u32 %v4514, 2147483648
    %v4557 = vor.u32 1.1754944e-38, %v4556
    %v4558 = vsel %vm4555, %v4557, %v4553
    %v4559 = vmul.f32 %v4505, %v4558
    %v4560 = vpack.c.bf16 %v4544, %v4529
    %v4561 = vpack.c.bf16 %v4559, %v4559
    %4562 = vrot.lane.b32.xlu0 %v3814, 40
    %v4563 = vpop.permute.xlu0 %4562
    %4564 = vrot.lane.b32.xlu0 %v3815, 40
    %v4565 = vpop.permute.xlu0 %4564
    %v4568 = vsel %vm511, %v4560, 0
    %v4571 = vsel %vm511, %v4561, 0
    %v4574 = vsel %vm483, %v4565, 0
    %4576 = vmatpush.bf16.msra.mxu0 0
    %4577 = vmatpush.bf16.msra.mxu0 0
    %4578 = vmatpush.bf16.msra.mxu0 0
    %4579 = vmatpush.bf16.msra.mxu0 0
    %4580 = vmatpush.bf16.msra.mxu0 0
    %4581 = vmatpush.bf16.msra.mxu0 0
    %4582 = vmatpush.bf16.msra.mxu0 %v4574
    %4583 = vmatpush.bf16.msra.mxu0 %v4563
    %4584 = vmatmul.bf16.gmra.mxu0 %v4568
    %v4585 = vpop.f32.mrf.mxu0
    %v4586 = vadd.f32 0.0, %v4585
    %v4587 = vpop.f32.mrf.mxu0
    %v4588 = vadd.f32 0.0, %v4587
    %4589 = vmatmul.bf16.gmra.mxu0 %v4571
    %v4590 = vpop.f32.mrf.mxu0
    %v4591 = vadd.f32 0.0, %v4590
    %v4592 = vpop.f32.mrf.mxu0
    %4593 = vdwg.mxu0
    %v4594 = vpack.c.bf16 %v4588, %v4586
    %v4595 = vpack.c.bf16 %v4591, %v4591
    %v4597 = vsel %vm476, %v4594, 0
    %v4600 = vsel %vm476, %v4595, 0
    %4602 = vmatpush.bf16.msra.mxu0 0
    %4603 = vmatpush.bf16.msra.mxu0 0
    %4604 = vmatpush.bf16.msra.mxu0 0
    %4605 = vmatpush.bf16.msra.mxu0 0
    %4606 = vmatpush.bf16.msra.mxu0 0
    %4607 = vmatpush.bf16.msra.mxu0 0
    %4608 = vmatpush.bf16.msra.mxu0 0
    %4609 = vmatpush.bf16.msra.mxu0 %v3747
    %4610 = vmatmul.bf16.gmra.mxu0 %v4597
    %v4611 = vpop.f32.mrf.mxu0
    %v4612 = vadd.f32 0.0, %v4611
    %v4613 = vpop.f32.mrf.mxu0
    %v4614 = vadd.f32 0.0, %v4613
    %4615 = vmatmul.bf16.gmra.mxu0 %v4600
    %v4616 = vpop.f32.mrf.mxu0
    %v4617 = vadd.f32 0.0, %v4616
    %v4618 = vpop.f32.mrf.mxu0
    %4619 = vdwg.mxu0
    %v4620 = vadd.f32 %v4406, %v4612
    %v4621 = vadd.f32 %v4407, %v4614
    %v4622 = vadd.f32 %v4408, %v4617
    %v4623 = vadd.f32 %v2668, %v3767
    %v4624 = vadd.f32 %v2669, %v3768
    %v4625 = vadd.f32 %v2670, %v3769
    %v4626 = vadd.f32 %v2671, %v4620
    %v4627 = vadd.f32 %v2672, %v4621
    %v4628 = vadd.f32 %v2673, %v4622
    %v4630 = vperm.slane %v2685, 0
    %v4632 = vadd.f32 %v4623, %v4630
    %v4633 = vadd.f32 %v4624, %v4630
    %v4634 = vadd.f32 %v4625, %v4630
    %v4635 = vadd.f32 %v4626, %v4630
    %v4636 = vadd.f32 %v4627, %v4630
    %v4637 = vadd.f32 %v4628, %v4630
    %v4638 = vsel %vm230, %v4632, 0.0
    %4639 = vadd.xlane.f32.xlu0 %v4638
    %v4640 = vpop.xlane.xlu0 %4639
    %v4641 = vsel %vm230, %v4633, 0.0
    %4642 = vadd.xlane.f32.xlu0 %v4641
    %v4643 = vpop.xlane.xlu0 %4642
    %v4644 = vsel %vm230, %v4634, 0.0
    %4645 = vadd.xlane.f32.xlu0 %v4644
    %v4646 = vpop.xlane.xlu0 %4645
    %v4647 = vsel %vm230, %v4635, 0.0
    %4648 = vadd.xlane.f32.xlu0 %v4647
    %v4649 = vpop.xlane.xlu0 %4648
    %v4650 = vsel %vm230, %v4636, 0.0
    %4651 = vadd.xlane.f32.xlu0 %v4650
    %v4652 = vpop.xlane.xlu0 %4651
    %v4653 = vsel %vm230, %v4637, 0.0
    %4654 = vadd.xlane.f32.xlu0 %v4653
    %v4655 = vpop.xlane.xlu0 %4654
    %v4656 = vmul.f32 %v4640, %v255
    %v4657 = vmul.f32 %v4643, %v255
    %v4658 = vmul.f32 %v4646, %v255
    %v4659 = vmul.f32 %v4649, %v255
    %v4660 = vmul.f32 %v4652, %v255
    %v4661 = vmul.f32 %v4655, %v255
    %v4662 = vsub.f32 %v4632, %v4656
    %v4663 = vsub.f32 %v4633, %v4657
    %v4664 = vsub.f32 %v4634, %v4658
    %v4665 = vsub.f32 %v4635, %v4659
    %v4666 = vsub.f32 %v4636, %v4660
    %v4667 = vsub.f32 %v4637, %v4661
    %v4668 = vmul.f32 %v4662, %v4662
    %v4669 = vmul.f32 %v4663, %v4663
    %v4670 = vmul.f32 %v4664, %v4664
    %v4671 = vmul.f32 %v4665, %v4665
    %v4672 = vmul.f32 %v4666, %v4666
    %v4673 = vmul.f32 %v4667, %v4667
    %v4674 = vsel %vm230, %v4668, 0.0
    %4675 = vadd.xlane.f32.xlu0 %v4674
    %v4676 = vpop.xlane.xlu0 %4675
    %v4677 = vsel %vm230, %v4669, 0.0
    %4678 = vadd.xlane.f32.xlu0 %v4677
    %v4679 = vpop.xlane.xlu0 %4678
    %v4680 = vsel %vm230, %v4670, 0.0
    %4681 = vadd.xlane.f32.xlu0 %v4680
    %v4682 = vpop.xlane.xlu0 %4681
    %v4683 = vsel %vm230, %v4671, 0.0
    %4684 = vadd.xlane.f32.xlu0 %v4683
    %v4685 = vpop.xlane.xlu0 %4684
    %v4686 = vsel %vm230, %v4672, 0.0
    %4687 = vadd.xlane.f32.xlu0 %v4686
    %v4688 = vpop.xlane.xlu0 %4687
    %v4689 = vsel %vm230, %v4673, 0.0
    %4690 = vadd.xlane.f32.xlu0 %v4689
    %v4691 = vpop.xlane.xlu0 %4690
    %v4692 = vmul.f32 %v4676, %v255
    %v4693 = vmul.f32 %v4679, %v255
    %v4694 = vmul.f32 %v4682, %v255
    %v4695 = vmul.f32 %v4685, %v255
    %v4696 = vmul.f32 %v4688, %v255
    %v4697 = vmul.f32 %v4691, %v255
    %v4698 = vadd.f32 %v4692, 1e-06
    %v4699 = vadd.f32 %v4693, 1e-06
    %v4700 = vadd.f32 %v4694, 1e-06
    %v4701 = vadd.f32 %v4695, 1e-06
    %v4702 = vadd.f32 %v4696, 1e-06
    %v4703 = vadd.f32 %v4697, 1e-06
    %v4704 = vrsqrt.pop %v4698
    %v4705 = vmul.f32 %v4704, %v4698
    %v4706 = vmul.f32 %v4705, %v4704
    %v4707 = vmul.f32 0.5, %v4706
    %v4708 = vsub.f32 1.5, %v4707
    %v4709 = vmul.f32 %v4704, %v4708
    %vm4710 = vweird.f32 %v4698
    %vm4711 = vweird.f32 %v4704
    %vm4712 = vmor %vm4710, %vm4711
    %v4713 = vsel %vm4712, %v4704, %v4709
    %v4714 = vrsqrt.pop %v4699
    %v4715 = vmul.f32 %v4714, %v4699
    %v4716 = vmul.f32 %v4715, %v4714
    %v4717 = vmul.f32 0.5, %v4716
    %v4718 = vsub.f32 1.5, %v4717
    %v4719 = vmul.f32 %v4714, %v4718
    %vm4720 = vweird.f32 %v4699
    %vm4721 = vweird.f32 %v4714
    %vm4722 = vmor %vm4720, %vm4721
    %v4723 = vsel %vm4722, %v4714, %v4719
    %v4724 = vrsqrt.pop %v4700
    %v4725 = vmul.f32 %v4724, %v4700
    %v4726 = vmul.f32 %v4725, %v4724
    %v4727 = vmul.f32 0.5, %v4726
    %v4728 = vsub.f32 1.5, %v4727
    %v4729 = vmul.f32 %v4724, %v4728
    %vm4730 = vweird.f32 %v4700
    %vm4731 = vweird.f32 %v4724
    %vm4732 = vmor %vm4730, %vm4731
    %v4733 = vsel %vm4732, %v4724, %v4729
    %v4734 = vrsqrt.pop %v4701
    %v4735 = vmul.f32 %v4734, %v4701
    %v4736 = vmul.f32 %v4735, %v4734
    %v4737 = vmul.f32 0.5, %v4736
    %v4738 = vsub.f32 1.5, %v4737
    %v4739 = vmul.f32 %v4734, %v4738
    %vm4740 = vweird.f32 %v4701
    %vm4741 = vweird.f32 %v4734
    %vm4742 = vmor %vm4740, %vm4741
    %v4743 = vsel %vm4742, %v4734, %v4739
    %v4744 = vrsqrt.pop %v4702
    %v4745 = vmul.f32 %v4744, %v4702
    %v4746 = vmul.f32 %v4745, %v4744
    %v4747 = vmul.f32 0.5, %v4746
    %v4748 = vsub.f32 1.5, %v4747
    %v4749 = vmul.f32 %v4744, %v4748
    %vm4750 = vweird.f32 %v4702
    %vm4751 = vweird.f32 %v4744
    %vm4752 = vmor %vm4750, %vm4751
    %v4753 = vsel %vm4752, %v4744, %v4749
    %v4754 = vrsqrt.pop %v4703
    %v4755 = vmul.f32 %v4754, %v4703
    %v4756 = vmul.f32 %v4755, %v4754
    %v4757 = vmul.f32 0.5, %v4756
    %v4758 = vsub.f32 1.5, %v4757
    %v4759 = vmul.f32 %v4754, %v4758
    %vm4760 = vweird.f32 %v4703
    %vm4761 = vweird.f32 %v4754
    %vm4762 = vmor %vm4760, %vm4761
    %v4763 = vsel %vm4762, %v4754, %v4759
    %v4764 = vmul.f32 %v4662, %v4713
    %v4765 = vmul.f32 %v4663, %v4723
    %v4766 = vmul.f32 %v4664, %v4733
    %v4767 = vmul.f32 %v4665, %v4743
    %v4768 = vmul.f32 %v4666, %v4753
    %v4769 = vmul.f32 %v4667, %v4763
    %v4771 = vperm.slane %v2686, 0
    %v4773 = vmul.f32 %v4764, %v4771
    %v4774 = vmul.f32 %v4765, %v4771
    %v4775 = vmul.f32 %v4766, %v4771
    %v4776 = vmul.f32 %v4767, %v4771
    %v4777 = vmul.f32 %v4768, %v4771
    %v4778 = vmul.f32 %v4769, %v4771
    %v4780 = vperm.slane %v2687, 0
    %v4782 = vadd.f32 %v4773, %v4780
    %v4783 = vadd.f32 %v4774, %v4780
    %v4784 = vadd.f32 %v4775, %v4780
    %v4785 = vadd.f32 %v4776, %v4780
    %v4786 = vadd.f32 %v4777, %v4780
    %v4787 = vadd.f32 %v4778, %v4780
    %v4788 = vpack.c.bf16 %v4783, %v4782
    %v4789 = vpack.c.bf16 %v4785, %v4784
    %v4790 = vpack.c.bf16 %v4787, %v4786
    %v4791 = vpack.c.bf16 %v2689, %v2688
    %v4792 = vpack.c.bf16 %v2691, %v2690
    %v4794 = vperm.slane %v2692, 0
    %v4797 = vsel %vm230, %v4788, 0
    %v4800 = vsel %vm230, %v4789, 0
    %v4803 = vsel %vm230, %v4790, 0
    %4805 = vmatpush.bf16.msra.mxu0 0
    %4806 = vmatpush.bf16.msra.mxu0 0
    %4807 = vmatpush.bf16.msra.mxu0 0
    %4808 = vmatpush.bf16.msra.mxu0 0
    %4809 = vmatpush.bf16.msra.mxu0 0
    %4810 = vmatpush.bf16.msra.mxu0 0
    %4811 = vmatpush.bf16.msra.mxu0 %v4792
    %4812 = vmatpush.bf16.msra.mxu0 %v4791
    %4813 = vmatmul.bf16.gmra.mxu0 %v4797
    %v4814 = vpop.f32.mrf.mxu0
    %v4815 = vadd.f32 %v4794, %v4814
    %v4816 = vpop.f32.mrf.mxu0
    %v4817 = vadd.f32 %v4794, %v4816
    %4818 = vmatmul.bf16.gmra.mxu0 %v4800
    %v4819 = vpop.f32.mrf.mxu0
    %v4820 = vadd.f32 %v4794, %v4819
    %v4821 = vpop.f32.mrf.mxu0
    %v4822 = vadd.f32 %v4794, %v4821
    %4823 = vmatmul.bf16.gmra.mxu0 %v4803
    %v4824 = vpop.f32.mrf.mxu0
    %v4825 = vadd.f32 %v4794, %v4824
    %v4826 = vpop.f32.mrf.mxu0
    %v4827 = vadd.f32 %v4794, %v4826
    %4828 = vdwg.mxu0
    %v4829 = vmul.f32 %v4815, 0.5
    %v4830 = vmul.f32 %v4817, 0.5
    %v4831 = vmul.f32 %v4820, 0.5
    %v4832 = vmul.f32 %v4822, 0.5
    %v4833 = vmul.f32 %v4825, 0.5
    %v4834 = vmul.f32 %v4827, 0.5
    %v4835 = vmul.f32 %v4815, 0.70710677
    %v4836 = vmul.f32 %v4817, 0.70710677
    %v4837 = vmul.f32 %v4820, 0.70710677
    %v4838 = vmul.f32 %v4822, 0.70710677
    %v4839 = vmul.f32 %v4825, 0.70710677
    %v4840 = vmul.f32 %v4827, 0.70710677
    %v4841 = vmul.f32 %v4835, %v4835
    %v4842 = vmin.f32 16.0, %v4841
    %v4843 = vmul.f32 %v4842, 2.1237322e-06
    %v4844 = vadd.f32 %v4843, 0.00028619796
    %v4845 = vmul.f32 %v4842, %v4844
    %v4846 = vadd.f32 %v4845, 0.0036580483
    %v4847 = vmul.f32 %v4842, %v4846
    %v4848 = vadd.f32 %v4847, 0.05243302
    %v4849 = vmul.f32 %v4842, %v4848
    %v4850 = vadd.f32 %v4849, 0.18741608
    %v4851 = vmul.f32 %v4842, %v4850
    %v4852 = vadd.f32 %v4851, 1.1283791
    %v4853 = vmul.f32 %v4835, %v4852
    %v4854 = vmul.f32 %v4842, 3.8918573e-05
    %v4855 = vadd.f32 %v4854, 0.001143296
    %v4856 = vmul.f32 %v4842, %v4855
    %v4857 = vadd.f32 %v4856, 0.014752088
    %v4858 = vmul.f32 %v4842, %v4857
    %v4859 = vadd.f32 %v4858, 0.112945676
    %v4860 = vmul.f32 %v4842, %v4859
    %v4861 = vadd.f32 %v4860, 0.4994258
    %v4862 = vmul.f32 %v4842, %v4861
    %v4863 = vadd.f32 %v4862, 1.0
    %v4864 = vrcp.pop %v4863
    %v4865 = vmul.f32 %v4863, %v4864
    %v4866 = vsub.f32 1.0, %v4865
    %v4867 = vmul.f32 %v4864, %v4866
    %v4868 = vadd.f32 %v4864, %v4867
    %vm4869 = vweird.f32 %v4863
    %vm4870 = vweird.f32 %v4864
    %vm4871 = vmor %vm4869, %vm4870
    %v4872 = vsel %vm4871, %v4864, %v4868
    %v4873 = vand.u32 2147483647, %v4863
    %vm4874 = vcmp.eq.f32.partialorder %v4873, 8.507059e+37
    %v4875 = vand.u32 %v4863, 2147483648
    %v4876 = vor.u32 1.1754944e-38, %v4875
    %v4877 = vsel %vm4874, %v4876, %v4872
    %v4878 = vmul.f32 %v4853, %v4877
    %v4879 = vmin.f32 %v4878, 1.0
    %v4880 = vmax.f32 %v4879, -1.0
    %v4881 = vmul.f32 %v4836, %v4836
    %v4882 = vmin.f32 16.0, %v4881
    %v4883 = vmul.f32 %v4882, 2.1237322e-06
    %v4884 = vadd.f32 %v4883, 0.00028619796
    %v4885 = vmul.f32 %v4882, %v4884
    %v4886 = vadd.f32 %v4885, 0.0036580483
    %v4887 = vmul.f32 %v4882, %v4886
    %v4888 = vadd.f32 %v4887, 0.05243302
    %v4889 = vmul.f32 %v4882, %v4888
    %v4890 = vadd.f32 %v4889, 0.18741608
    %v4891 = vmul.f32 %v4882, %v4890
    %v4892 = vadd.f32 %v4891, 1.1283791
    %v4893 = vmul.f32 %v4836, %v4892
    %v4894 = vmul.f32 %v4882, 3.8918573e-05
    %v4895 = vadd.f32 %v4894, 0.001143296
    %v4896 = vmul.f32 %v4882, %v4895
    %v4897 = vadd.f32 %v4896, 0.014752088
    %v4898 = vmul.f32 %v4882, %v4897
    %v4899 = vadd.f32 %v4898, 0.112945676
    %v4900 = vmul.f32 %v4882, %v4899
    %v4901 = vadd.f32 %v4900, 0.4994258
    %v4902 = vmul.f32 %v4882, %v4901
    %v4903 = vadd.f32 %v4902, 1.0
    %v4904 = vrcp.pop %v4903
    %v4905 = vmul.f32 %v4903, %v4904
    %v4906 = vsub.f32 1.0, %v4905
    %v4907 = vmul.f32 %v4904, %v4906
    %v4908 = vadd.f32 %v4904, %v4907
    %vm4909 = vweird.f32 %v4903
    %vm4910 = vweird.f32 %v4904
    %vm4911 = vmor %vm4909, %vm4910
    %v4912 = vsel %vm4911, %v4904, %v4908
    %v4913 = vand.u32 2147483647, %v4903
    %vm4914 = vcmp.eq.f32.partialorder %v4913, 8.507059e+37
    %v4915 = vand.u32 %v4903, 2147483648
    %v4916 = vor.u32 1.1754944e-38, %v4915
    %v4917 = vsel %vm4914, %v4916, %v4912
    %v4918 = vmul.f32 %v4893, %v4917
    %v4919 = vmin.f32 %v4918, 1.0
    %v4920 = vmax.f32 %v4919, -1.0
    %v4921 = vmul.f32 %v4837, %v4837
    %v4922 = vmin.f32 16.0, %v4921
    %v4923 = vmul.f32 %v4922, 2.1237322e-06
    %v4924 = vadd.f32 %v4923, 0.00028619796
    %v4925 = vmul.f32 %v4922, %v4924
    %v4926 = vadd.f32 %v4925, 0.0036580483
    %v4927 = vmul.f32 %v4922, %v4926
    %v4928 = vadd.f32 %v4927, 0.05243302
    %v4929 = vmul.f32 %v4922, %v4928
    %v4930 = vadd.f32 %v4929, 0.18741608
    %v4931 = vmul.f32 %v4922, %v4930
    %v4932 = vadd.f32 %v4931, 1.1283791
    %v4933 = vmul.f32 %v4837, %v4932
    %v4934 = vmul.f32 %v4922, 3.8918573e-05
    %v4935 = vadd.f32 %v4934, 0.001143296
    %v4936 = vmul.f32 %v4922, %v4935
    %v4937 = vadd.f32 %v4936, 0.014752088
    %v4938 = vmul.f32 %v4922, %v4937
    %v4939 = vadd.f32 %v4938, 0.112945676
    %v4940 = vmul.f32 %v4922, %v4939
    %v4941 = vadd.f32 %v4940, 0.4994258
    %v4942 = vmul.f32 %v4922, %v4941
    %v4943 = vadd.f32 %v4942, 1.0
    %v4944 = vrcp.pop %v4943
    %v4945 = vmul.f32 %v4943, %v4944
    %v4946 = vsub.f32 1.0, %v4945
    %v4947 = vmul.f32 %v4944, %v4946
    %v4948 = vadd.f32 %v4944, %v4947
    %vm4949 = vweird.f32 %v4943
    %vm4950 = vweird.f32 %v4944
    %vm4951 = vmor %vm4949, %vm4950
    %v4952 = vsel %vm4951, %v4944, %v4948
    %v4953 = vand.u32 2147483647, %v4943
    %vm4954 = vcmp.eq.f32.partialorder %v4953, 8.507059e+37
    %v4955 = vand.u32 %v4943, 2147483648
    %v4956 = vor.u32 1.1754944e-38, %v4955
    %v4957 = vsel %vm4954, %v4956, %v4952
    %v4958 = vmul.f32 %v4933, %v4957
    %v4959 = vmin.f32 %v4958, 1.0
    %v4960 = vmax.f32 %v4959, -1.0
    %v4961 = vmul.f32 %v4838, %v4838
    %v4962 = vmin.f32 16.0, %v4961
    %v4963 = vmul.f32 %v4962, 2.1237322e-06
    %v4964 = vadd.f32 %v4963, 0.00028619796
    %v4965 = vmul.f32 %v4962, %v4964
    %v4966 = vadd.f32 %v4965, 0.0036580483
    %v4967 = vmul.f32 %v4962, %v4966
    %v4968 = vadd.f32 %v4967, 0.05243302
    %v4969 = vmul.f32 %v4962, %v4968
    %v4970 = vadd.f32 %v4969, 0.18741608
    %v4971 = vmul.f32 %v4962, %v4970
    %v4972 = vadd.f32 %v4971, 1.1283791
    %v4973 = vmul.f32 %v4838, %v4972
    %v4974 = vmul.f32 %v4962, 3.8918573e-05
    %v4975 = vadd.f32 %v4974, 0.001143296
    %v4976 = vmul.f32 %v4962, %v4975
    %v4977 = vadd.f32 %v4976, 0.014752088
    %v4978 = vmul.f32 %v4962, %v4977
    %v4979 = vadd.f32 %v4978, 0.112945676
    %v4980 = vmul.f32 %v4962, %v4979
    %v4981 = vadd.f32 %v4980, 0.4994258
    %v4982 = vmul.f32 %v4962, %v4981
    %v4983 = vadd.f32 %v4982, 1.0
    %v4984 = vrcp.pop %v4983
    %v4985 = vmul.f32 %v4983, %v4984
    %v4986 = vsub.f32 1.0, %v4985
    %v4987 = vmul.f32 %v4984, %v4986
    %v4988 = vadd.f32 %v4984, %v4987
    %vm4989 = vweird.f32 %v4983
    %vm4990 = vweird.f32 %v4984
    %vm4991 = vmor %vm4989, %vm4990
    %v4992 = vsel %vm4991, %v4984, %v4988
    %v4993 = vand.u32 2147483647, %v4983
    %vm4994 = vcmp.eq.f32.partialorder %v4993, 8.507059e+37
    %v4995 = vand.u32 %v4983, 2147483648
    %v4996 = vor.u32 1.1754944e-38, %v4995
    %v4997 = vsel %vm4994, %v4996, %v4992
    %v4998 = vmul.f32 %v4973, %v4997
    %v4999 = vmin.f32 %v4998, 1.0
    %v5000 = vmax.f32 %v4999, -1.0
    %v5001 = vmul.f32 %v4839, %v4839
    %v5002 = vmin.f32 16.0, %v5001
    %v5003 = vmul.f32 %v5002, 2.1237322e-06
    %v5004 = vadd.f32 %v5003, 0.00028619796
    %v5005 = vmul.f32 %v5002, %v5004
    %v5006 = vadd.f32 %v5005, 0.0036580483
    %v5007 = vmul.f32 %v5002, %v5006
    %v5008 = vadd.f32 %v5007, 0.05243302
    %v5009 = vmul.f32 %v5002, %v5008
    %v5010 = vadd.f32 %v5009, 0.18741608
    %v5011 = vmul.f32 %v5002, %v5010
    %v5012 = vadd.f32 %v5011, 1.1283791
    %v5013 = vmul.f32 %v4839, %v5012
    %v5014 = vmul.f32 %v5002, 3.8918573e-05
    %v5015 = vadd.f32 %v5014, 0.001143296
    %v5016 = vmul.f32 %v5002, %v5015
    %v5017 = vadd.f32 %v5016, 0.014752088
    %v5018 = vmul.f32 %v5002, %v5017
    %v5019 = vadd.f32 %v5018, 0.112945676
    %v5020 = vmul.f32 %v5002, %v5019
    %v5021 = vadd.f32 %v5020, 0.4994258
    %v5022 = vmul.f32 %v5002, %v5021
    %v5023 = vadd.f32 %v5022, 1.0
    %v5024 = vrcp.pop %v5023
    %v5025 = vmul.f32 %v5023, %v5024
    %v5026 = vsub.f32 1.0, %v5025
    %v5027 = vmul.f32 %v5024, %v5026
    %v5028 = vadd.f32 %v5024, %v5027
    %vm5029 = vweird.f32 %v5023
    %vm5030 = vweird.f32 %v5024
    %vm5031 = vmor %vm5029, %vm5030
    %v5032 = vsel %vm5031, %v5024, %v5028
    %v5033 = vand.u32 2147483647, %v5023
    %vm5034 = vcmp.eq.f32.partialorder %v5033, 8.507059e+37
    %v5035 = vand.u32 %v5023, 2147483648
    %v5036 = vor.u32 1.1754944e-38, %v5035
    %v5037 = vsel %vm5034, %v5036, %v5032
    %v5038 = vmul.f32 %v5013, %v5037
    %v5039 = vmin.f32 %v5038, 1.0
    %v5040 = vmax.f32 %v5039, -1.0
    %v5041 = vmul.f32 %v4840, %v4840
    %v5042 = vmin.f32 16.0, %v5041
    %v5043 = vmul.f32 %v5042, 2.1237322e-06
    %v5044 = vadd.f32 %v5043, 0.00028619796
    %v5045 = vmul.f32 %v5042, %v5044
    %v5046 = vadd.f32 %v5045, 0.0036580483
    %v5047 = vmul.f32 %v5042, %v5046
    %v5048 = vadd.f32 %v5047, 0.05243302
    %v5049 = vmul.f32 %v5042, %v5048
    %v5050 = vadd.f32 %v5049, 0.18741608
    %v5051 = vmul.f32 %v5042, %v5050
    %v5052 = vadd.f32 %v5051, 1.1283791
    %v5053 = vmul.f32 %v4840, %v5052
    %v5054 = vmul.f32 %v5042, 3.8918573e-05
    %v5055 = vadd.f32 %v5054, 0.001143296
    %v5056 = vmul.f32 %v5042, %v5055
    %v5057 = vadd.f32 %v5056, 0.014752088
    %v5058 = vmul.f32 %v5042, %v5057
    %v5059 = vadd.f32 %v5058, 0.112945676
    %v5060 = vmul.f32 %v5042, %v5059
    %v5061 = vadd.f32 %v5060, 0.4994258
    %v5062 = vmul.f32 %v5042, %v5061
    %v5063 = vadd.f32 %v5062, 1.0
    %v5064 = vrcp.pop %v5063
    %v5065 = vmul.f32 %v5063, %v5064
    %v5066 = vsub.f32 1.0, %v5065
    %v5067 = vmul.f32 %v5064, %v5066
    %v5068 = vadd.f32 %v5064, %v5067
    %vm5069 = vweird.f32 %v5063
    %vm5070 = vweird.f32 %v5064
    %vm5071 = vmor %vm5069, %vm5070
    %v5072 = vsel %vm5071, %v5064, %v5068
    %v5073 = vand.u32 2147483647, %v5063
    %vm5074 = vcmp.eq.f32.partialorder %v5073, 8.507059e+37
    %v5075 = vand.u32 %v5063, 2147483648
    %v5076 = vor.u32 1.1754944e-38, %v5075
    %v5077 = vsel %vm5074, %v5076, %v5072
    %v5078 = vmul.f32 %v5053, %v5077
    %v5079 = vmin.f32 %v5078, 1.0
    %v5080 = vmax.f32 %v5079, -1.0
    %v5081 = vadd.f32 %v4880, 1.0
    %v5082 = vadd.f32 %v4920, 1.0
    %v5083 = vadd.f32 %v4960, 1.0
    %v5084 = vadd.f32 %v5000, 1.0
    %v5085 = vadd.f32 %v5040, 1.0
    %v5086 = vadd.f32 %v5080, 1.0
    %v5087 = vmul.f32 %v4829, %v5081
    %v5088 = vmul.f32 %v4830, %v5082
    %v5089 = vmul.f32 %v4831, %v5083
    %v5090 = vmul.f32 %v4832, %v5084
    %v5091 = vmul.f32 %v4833, %v5085
    %v5092 = vmul.f32 %v4834, %v5086
    %v5093 = vpack.c.bf16 %v5088, %v5087
    %v5094 = vpack.c.bf16 %v5090, %v5089
    %v5095 = vpack.c.bf16 %v5092, %v5091
    %v5096 = vpack.c.bf16 %v2694, %v2693
    %v5097 = vpack.c.bf16 %v2696, %v2695
    %v5098 = vpack.c.bf16 %v2698, %v2697
    %v5099 = vpack.c.bf16 %v2700, %v2699
    %v5100 = vpack.c.bf16 %v2702, %v2701
    %v5101 = vpack.c.bf16 %v2704, %v2703
    %v5102 = vpack.c.bf16 %v2706, %v2705
    %v5103 = vpack.c.bf16 %v2708, %v2707
    %5104 = vmatpush.bf16.msra.mxu0 %v5103
    %5105 = vmatpush.bf16.msra.mxu0 %v5102
    %5106 = vmatpush.bf16.msra.mxu0 %v5101
    %5107 = vmatpush.bf16.msra.mxu0 %v5100
    %5108 = vmatpush.bf16.msra.mxu0 %v5099
    %5109 = vmatpush.bf16.msra.mxu0 %v5098
    %5110 = vmatpush.bf16.msra.mxu0 %v5097
    %5111 = vmatpush.bf16.msra.mxu0 %v5096
    %5112 = vmatmul.bf16.gmra.mxu0 %v5093
    %v5113 = vpop.f32.mrf.mxu0
    %v5114 = vadd.f32 0.0, %v5113
    %v5115 = vpop.f32.mrf.mxu0
    %5116 = vmatmul.bf16.gmra.mxu0 %v5094
    %v5117 = vpop.f32.mrf.mxu0
    %v5118 = vpop.f32.mrf.mxu0
    %v5119 = vadd.f32 0.0, %v5118
    %5120 = vmatmul.bf16.gmra.mxu0 %v5095
    %v5121 = vpop.f32.mrf.mxu0
    %v5122 = vpop.f32.mrf.mxu0
    %5123 = vdwg.mxu0
    %v5124 = vadd.f32 %v4632, %v5114
    %v5125 = vadd.f32 %v4635, %v5119
    %v5127 = vperm.slane %v2709, 0
    %v5129 = vadd.f32 %v5124, %v5127
    %v5130 = vadd.f32 %v5125, %v5127
    %v5132 = vrot.slane %v5130, 7
    %vm5134 = vcmask 1040384
    %v5135 = vsel %vm5134, %v5129, %v5132
    %v5136 = vld [vmem:[%s55] sm:$0x1]
    %v5137 = vld [vmem:[%s57] sm:$0x1]
    %vm5138 = vcmask 254976
    %v5139 = vsel %vm5138, %v5135, 0.0
    %5140 = vadd.xlane.f32.xlu0 %v5139
    %v5141 = vpop.xlane.xlu0 %5140
    %v5142 = vmul.f32 %v5141, %v255
    %v5143 = vsub.f32 %v5135, %v5142
    %v5144 = vmul.f32 %v5143, %v5143
    %v5145 = vsel %vm5138, %v5144, 0.0
    %5146 = vadd.xlane.f32.xlu0 %v5145
    %v5147 = vpop.xlane.xlu0 %5146
    %v5148 = vmul.f32 %v5147, %v255
    %v5149 = vadd.f32 %v5148, 1e-06
    %v5150 = vrsqrt.pop %v5149
    %v5151 = vmul.f32 %v5150, %v5149
    %v5152 = vmul.f32 %v5151, %v5150
    %v5153 = vmul.f32 0.5, %v5152
    %v5154 = vsub.f32 1.5, %v5153
    %v5155 = vmul.f32 %v5150, %v5154
    %vm5156 = vweird.f32 %v5149
    %vm5157 = vweird.f32 %v5150
    %vm5158 = vmor %vm5156, %vm5157
    %v5159 = vsel %vm5158, %v5150, %v5155
    %v5160 = vmul.f32 %v5143, %v5159
    %v5162 = vperm.slane %v5136, 0
    %v5164 = vmul.f32 %v5160, %v5162
    %v5166 = vperm.slane %v5137, 0
    %v5168 = vadd.f32 %v5164, %v5166
    %v5169 = vld [vmem:[%s59] sm:$0xff]
    %v5170 = vld [vmem:[%s59 + $0x8] sm:$0xff]
    %v5171 = vld [vmem:[%s59 + $0x10] sm:$0xff]
    %v5172 = vld [vmem:[%s59 + $0x18] sm:$0xff]
    %v5173 = vpack.c.bf16 %v5168, %v5168
    %v5174 = vpack.c.bf16 %v5170, %v5169
    %v5175 = vpack.c.bf16 %v5172, %v5171
    %v5176 = vld [vmem:[%s61] sm:$0x1]
    %v5178 = vperm.slane %v5176, 0
    %v5181 = vsel %vm230, %v5173, 0
    %5183 = vmatpush.bf16.msra.mxu0 0
    %5184 = vmatpush.bf16.msra.mxu0 0
    %5185 = vmatpush.bf16.msra.mxu0 0
    %5186 = vmatpush.bf16.msra.mxu0 0
    %5187 = vmatpush.bf16.msra.mxu0 0
    %5188 = vmatpush.bf16.msra.mxu0 0
    %5189 = vmatpush.bf16.msra.mxu0 %v5175
    %5190 = vmatpush.bf16.msra.mxu0 %v5174
    %5191 = vmatmul.bf16.gmra.mxu0 %v5181
    %v5192 = vpop.f32.mrf.mxu0
    %v5193 = vadd.f32 %v5178, %v5192
    %v5194 = vpop.f32.mrf.mxu0
    %5195 = vdwg.mxu0
    %vm5196 = vcmask 74752
    %5197 = vst.msk [vmem:[#allocation2] sm:$0x3] %vm5196, %v5193
    // Predicated region
    $region126: #{vit_forward.1} parent=1 // pred_check
      _
    $region127: #{vit_forward.1} parent=1 // pred_check_branch
      %5199 = sbr.rel (0) target = $region129
    $region128: #{vit_forward.1} parent=1 // pred_region
      %5201 = vsyncadd [#allocation3], 0
      %s5203 = sshll.u32 [#allocation2], 4
      %s5204 = int_to_ptr.vmem [resolvable:$true] %s5203
      %s5205 = sshll.u32 %s63, 4
      %s5206 = int_to_ptr.hbm [resolvable:$true] %s5205
      %5208 = dma.vmem_to_hbm [thread:$0]  %s5204, 32, %s5206, [#allocation3]
    $region129: #{vit_forward.1} parent=1 // pred_fallthru
      _
    // Predicated region
    $region130: #{vit_forward.1} parent=1 // pred_check
      _
    $region131: #{vit_forward.1} parent=1 // pred_check_branch
      %5210 = sbr.rel (0) target = $region133
    $region132: #{vit_forward.1} parent=1 // pred_region
      %5212 = dma.done [#allocation3], 32
    $region133: #{vit_forward.1} parent=1 // pred_fallthru
      _
    %5213 = vsyncpa [#allocation3], 1

</llo_original>
